<compile_context>
chip_gen: v7x
topology: tpu7x:2x2x1
jax: 0.10.0
libtpu: 0.0.40
codegen_flags: <defaults>
</compile_context>

<pallas_src>
import functools

import jax
import jax.numpy as jnp
from jax.experimental import pallas as pl
from jax.experimental.pallas import tpu as pltpu

D_MODEL = 128
NHEAD = 8
HEAD_DIM = D_MODEL // NHEAD          # 16
DIM_FF = 2048                        # nn.TransformerEncoderLayer default dim_feedforward
LN_EPS = 1e-5                        # PyTorch LayerNorm default eps
OUT_DIM = 5
OUT_PAD = 128                        # lane-dense padded output width (wrapper slices :5)

# bf16 matmul weights, passed individually (kept VMEM-resident, constant index_map).
WEIGHT_ORDER = ["wqkv", "wo", "w1", "w2", "fw1", "fw2", "fw3", "fw4", "fw5"]

# Tiny f32 params packed into one (1, K) vector; every offset is a multiple of 128 lanes.
SMALL_ORDER = [
    ("n1w", 128), ("n1b", 128), ("n2w", 128), ("n2b", 128), ("n3w", 128), ("n3b", 128),
    ("bo", 128), ("b2", 128), ("fb4", 128), ("fb5", OUT_PAD),
    ("bqkv", 384), ("fb1", 256), ("fb3", 256), ("b1", DIM_FF), ("fb2", 64),
]
SMALL_OFFSETS = {}
_off = 0
for _name, _sz in SMALL_ORDER:
    SMALL_OFFSETS[_name] = (_off, _sz)
    _off += _sz
PACKED_LEN = _off                    # 4288


def _layernorm_f32(x, w, b):
    # PyTorch LayerNorm: biased variance over last dim, eps inside sqrt. All f32.
    mu = jnp.mean(x, axis=-1, keepdims=True)
    var = jnp.mean(jnp.square(x - mu), axis=-1, keepdims=True)
    return (x - mu) * jax.lax.rsqrt(var + LN_EPS) * w + b


def _model_kernel(x_ref, pk_ref, bias_ref,
                  wqkv_ref, wo_ref, w1_ref, w2_ref,
                  fw1_ref, fw2_ref, fw3_ref, fw4_ref, fw5_ref,
                  o_ref):
    def small(name):
        off, sz = SMALL_OFFSETS[name]
        return pk_ref[:, off:off + sz]                 # (1, sz) f32, broadcasts over rows

    x = x_ref[...].astype(jnp.float32)                 # (R, 128), R = S*B fused rows
    attn_bias = bias_ref[...]                          # (R, R) f32: 0 same-batch, -1e30 otherwise

    # ---------------- TransformerEncoderLayer (pre-norm) ----------------
    # x = x + SelfAttn(norm1(x))
    h = _layernorm_f32(x, small("n1w"), small("n1b"))
    qkv = jnp.dot(h.astype(jnp.bfloat16), wqkv_ref[...],
                  preferred_element_type=jnp.float32) + small("bqkv")      # (R, 384)
    q = qkv[:, 0 * D_MODEL:1 * D_MODEL]
    k = qkv[:, 1 * D_MODEL:2 * D_MODEL]
    v = qkv[:, 2 * D_MODEL:3 * D_MODEL]

    scale = 1.0 / (HEAD_DIM ** 0.5)
    attn = jnp.zeros((x.shape[0], D_MODEL), jnp.float32)
    for hd in range(NHEAD):                            # static loop; wo folded -> no concat
        lo = hd * HEAD_DIM
        qh = q[:, lo:lo + HEAD_DIM] * scale            # (R, 16)
        kh = k[:, lo:lo + HEAD_DIM]
        vh = v[:, lo:lo + HEAD_DIM]
        s = jnp.dot(qh, kh.T, preferred_element_type=jnp.float32)          # (R, R)
        s = s + attn_bias                              # block-diagonal per-batch masking
        s = s - jnp.max(s, axis=-1, keepdims=True)
        p = jnp.exp(s)
        p = p * pl.reciprocal(jnp.sum(p, axis=-1, keepdims=True), approx=True)
        ctx = jnp.dot(p, vh, preferred_element_type=jnp.float32)           # (R, 16)
        attn = attn + jnp.dot(ctx.astype(jnp.bfloat16), wo_ref[hd],
                              preferred_element_type=jnp.float32)          # (R, 128)
    x = x + attn + small("bo")

    # x = x + FF(norm2(x)),  FF = linear2(relu(linear1(.)))
    h2 = _layernorm_f32(x, small("n2w"), small("n2b"))
    ff = jnp.maximum(jnp.dot(h2.astype(jnp.bfloat16), w1_ref[...],
                             preferred_element_type=jnp.float32) + small("b1"), 0.0)  # (R, 2048)
    ff = jnp.dot(ff.astype(jnp.bfloat16), w2_ref[...],
                 preferred_element_type=jnp.float32) + small("b2")                    # (R, 128)
    x = x + ff

    # ---------------- test_model MLP ----------------
    y = _layernorm_f32(x, small("n3w"), small("n3b"))
    y = jnp.maximum(jnp.dot(y.astype(jnp.bfloat16), fw1_ref[...],
                            preferred_element_type=jnp.float32) + small("fb1"), 0.0)  # 256
    y = jnp.maximum(jnp.dot(y.astype(jnp.bfloat16), fw2_ref[...],
                            preferred_element_type=jnp.float32) + small("fb2"), 0.0)  # 64
    y = jnp.maximum(jnp.dot(y.astype(jnp.bfloat16), fw3_ref[...],
                            preferred_element_type=jnp.float32) + small("fb3"), 0.0)  # 256
    y = jnp.maximum(jnp.dot(y.astype(jnp.bfloat16), fw4_ref[...],
                            preferred_element_type=jnp.float32) + small("fb4"), 0.0)  # 128
    y = jnp.dot(y.astype(jnp.bfloat16), fw5_ref[...],
                preferred_element_type=jnp.float32) + small("fb5")                    # 128 (padded)

    o_ref[...] = y.astype(o_ref.dtype)


def auto_composite_forward(x, params):
    """x: (S, B, 128) float32 (PyTorch batch_first=False convention). Returns (S, B, 5)."""
    S, B, E = x.shape
    assert E == D_MODEL
    R = S * B
    x2 = x.reshape(R, E)                               # free reshape: row r = s*B + b

    # Block-diagonal additive attention bias over the fused rows (0 same batch, -1e30 else),
    # computed once outside the kernel (tiny; avoids in-kernel integer mod).
    r = jnp.arange(R, dtype=jnp.int32)
    same_batch = (r[:, None] % B) == (r[None, :] % B)
    attn_bias = jnp.where(same_batch, 0.0, -1e30).astype(jnp.float32)      # (R, R)

    packed = params["packed_small"]                    # (1, PACKED_LEN) f32
    weights = [params[k] for k in WEIGHT_ORDER]        # bf16 matmul weights

    def full_spec(a):
        nd = a.ndim
        return pl.BlockSpec(a.shape, lambda i, _nd=nd: (0,) * _nd)

    in_specs = ([pl.BlockSpec((R, E), lambda i: (0, 0)),
                 pl.BlockSpec((1, PACKED_LEN), lambda i: (0, 0)),
                 pl.BlockSpec((R, R), lambda i: (0, 0))]
                + [full_spec(w) for w in weights])
    out_spec = pl.BlockSpec((R, OUT_PAD), lambda i: (0, 0))

    out = pl.pallas_call(
        _model_kernel,
        grid=(1,),                                     # single step: all B*S rows at once
        in_specs=in_specs,
        out_specs=out_spec,
        out_shape=jax.ShapeDtypeStruct((R, OUT_PAD), x.dtype),
        compiler_params=pltpu.CompilerParams(dimension_semantics=("arbitrary",)),
    )(x2, packed, attn_bias, *weights)

    return out.reshape(S, B, OUT_PAD)[..., :OUT_DIM]   # lane-dense store, slice to 5 outside


def init_params(key):
    """Deterministic synthetic parameters. Matmul weights are pre-transposed (in, out) and
    stored in bfloat16; tiny params (LN affine + biases) are f32 and packed into one vector."""
    ks = iter(jax.random.split(key, 32))

    def w(shape, scale=0.02):
        return (scale * jax.random.normal(next(ks), shape, jnp.float32)).astype(jnp.bfloat16)

    def sv(shape, scale=0.01):
        return scale * jax.random.normal(next(ks), shape, jnp.float32)

    p = {}
    # MultiheadAttention in_proj / out_proj, encoder FFN, test_model MLP (bf16)
    p["wqkv"] = w((D_MODEL, 3 * D_MODEL))
    p["wo"] = w((D_MODEL, D_MODEL)).reshape(NHEAD, HEAD_DIM, D_MODEL)   # head-major for the fold
    p["w1"] = w((D_MODEL, DIM_FF))
    p["w2"] = w((DIM_FF, D_MODEL))
    p["fw1"] = w((128, 256))
    p["fw2"] = w((256, 64))
    p["fw3"] = w((64, 256))
    p["fw4"] = w((256, 128))
    fw5 = w((128, OUT_DIM))
    p["fw5"] = jnp.zeros((128, OUT_PAD), jnp.bfloat16).at[:, :OUT_DIM].set(fw5)

    small = {
        "n1w": 1.0 + sv((D_MODEL,), 0.1), "n1b": sv((D_MODEL,)),
        "n2w": 1.0 + sv((D_MODEL,), 0.1), "n2b": sv((D_MODEL,)),
        "n3w": 1.0 + sv((D_MODEL,), 0.1), "n3b": sv((D_MODEL,)),
        "bqkv": sv((3 * D_MODEL,)), "bo": sv((D_MODEL,)),
        "b1": sv((DIM_FF,)), "b2": sv((D_MODEL,)),
        "fb1": sv((256,)), "fb2": sv((64,)), "fb3": sv((256,)), "fb4": sv((128,)),
        "fb5": jnp.zeros((OUT_PAD,), jnp.float32).at[:OUT_DIM].set(sv((OUT_DIM,))),
    }
    p["small"] = small
    p["packed_small"] = jnp.concatenate([small[n] for n, _ in SMALL_ORDER]).reshape(1, PACKED_LEN)
    return p


def reference_forward(x, params):
    """Pure-JAX reference (per-batch standard MHA), same bf16 weights / f32 accumulation."""
    small = params["small"]
    S, B, E = x.shape
    wo_full = params["wo"].reshape(D_MODEL, D_MODEL)

    def ln(t, g, b):
        mu = jnp.mean(t, axis=-1, keepdims=True)
        var = jnp.mean(jnp.square(t - mu), axis=-1, keepdims=True)
        return (t - mu) * jax.lax.rsqrt(var + LN_EPS) * g + b

    def mm(t, wt):
        return jnp.dot(t.astype(jnp.bfloat16), wt, preferred_element_type=jnp.float32)

    def one_batch(xb):                                 # xb: (S, 128)
        h = ln(xb, small["n1w"], small["n1b"])
        qkv = mm(h, params["wqkv"]) + small["bqkv"]
        q, k, v = (qkv[:, i * E:(i + 1) * E].reshape(S, NHEAD, HEAD_DIM).transpose(1, 0, 2)
                   for i in range(3))
        s = jnp.einsum("hqd,hkd->hqk", q, k) / (HEAD_DIM ** 0.5)
        p = jax.nn.softmax(s, axis=-1)
        ctx = jnp.einsum("hqk,hkd->hqd", p, v).transpose(1, 0, 2).reshape(S, E)
        xb = xb + mm(ctx, wo_full) + small["bo"]
        h2 = ln(xb, small["n2w"], small["n2b"])
        ff = jnp.maximum(mm(h2, params["w1"]) + small["b1"], 0.0)
        xb = xb + mm(ff, params["w2"]) + small["b2"]
        y = ln(xb, small["n3w"], small["n3b"])
        y = jnp.maximum(mm(y, params["fw1"]) + small["fb1"], 0.0)
        y = jnp.maximum(mm(y, params["fw2"]) + small["fb2"], 0.0)
        y = jnp.maximum(mm(y, params["fw3"]) + small["fb3"], 0.0)
        y = jnp.maximum(mm(y, params["fw4"]) + small["fb4"], 0.0)
        y = mm(y, params["fw5"]) + small["fb5"]
        return y[:, :OUT_DIM]

    return jax.vmap(one_batch, in_axes=1, out_axes=1)(x.astype(jnp.float32))


if __name__ == "__main__":
    key = jax.random.PRNGKey(0)
    pkey, xkey = jax.random.split(key)
    params = init_params(pkey)

    S, B = 8, 2                                        # small shapes: seq=8, batch=2, d_model=128
    x = jax.random.normal(xkey, (S, B, D_MODEL), jnp.float32)

    y = auto_composite_forward(x, params)
    y = jax.block_until_ready(y)
    assert y.shape == (S, B, OUT_DIM) and y.dtype == jnp.float32
    assert bool(jnp.all(jnp.isfinite(y)))

    y_ref = jax.block_until_ready(reference_forward(x, params))
    max_err = float(jnp.max(jnp.abs(y - y_ref)))
    assert jnp.allclose(y, y_ref, atol=1e-2, rtol=1e-2), f"max_abs_err={max_err}"

    print("KERNEL_OK")
</pallas_src>

<mosaic_0001>
module attributes {stable_mosaic.version = 11 : i64} {
  func.func @_model_kernel(%arg0: i32, %arg1: memref<16x128xf32, #tpu.memory_space<vmem>>, %arg2: memref<1x4288xf32, #tpu.memory_space<vmem>>, %arg3: memref<16x16xf32, #tpu.memory_space<vmem>>, %arg4: memref<128x384xbf16, #tpu.memory_space<vmem>>, %arg5: memref<8x16x128xbf16, #tpu.memory_space<vmem>>, %arg6: memref<128x2048xbf16, #tpu.memory_space<vmem>>, %arg7: memref<2048x128xbf16, #tpu.memory_space<vmem>>, %arg8: memref<128x256xbf16, #tpu.memory_space<vmem>>, %arg9: memref<256x64xbf16, #tpu.memory_space<vmem>>, %arg10: memref<64x256xbf16, #tpu.memory_space<vmem>>, %arg11: memref<256x128xbf16, #tpu.memory_space<vmem>>, %arg12: memref<128x128xbf16, #tpu.memory_space<vmem>>, %arg13: memref<16x128xf32, #tpu.memory_space<vmem>>) attributes {dimension_semantics = [#tpu.dimension_semantics<arbitrary>], iteration_bounds = array<i64: 1>, scalar_prefetch = 0 : i64, scratch_operands = 0 : i64, tpu.core_type = #tpu.core_type<tc>, window_params = [{pipeline_mode = #tpu.pipeline_mode<synchronous>, transform_indices = @transform_0, window_bounds = array<i64: 16, 128>}, {pipeline_mode = #tpu.pipeline_mode<synchronous>, transform_indices = @transform_1, window_bounds = array<i64: 1, 4288>}, {pipeline_mode = #tpu.pipeline_mode<synchronous>, transform_indices = @transform_2, window_bounds = array<i64: 16, 16>}, {pipeline_mode = #tpu.pipeline_mode<synchronous>, transform_indices = @transform_3, window_bounds = array<i64: 128, 384>}, {pipeline_mode = #tpu.pipeline_mode<synchronous>, transform_indices = @transform_4, window_bounds = array<i64: 8, 16, 128>}, {pipeline_mode = #tpu.pipeline_mode<synchronous>, transform_indices = @transform_5, window_bounds = array<i64: 128, 2048>}, {pipeline_mode = #tpu.pipeline_mode<synchronous>, transform_indices = @transform_6, window_bounds = array<i64: 2048, 128>}, {pipeline_mode = #tpu.pipeline_mode<synchronous>, transform_indices = @transform_7, window_bounds = array<i64: 128, 256>}, {pipeline_mode = #tpu.pipeline_mode<synchronous>, transform_indices = @transform_8, window_bounds = array<i64: 256, 64>}, {pipeline_mode = #tpu.pipeline_mode<synchronous>, transform_indices = @transform_9, window_bounds = array<i64: 64, 256>}, {pipeline_mode = #tpu.pipeline_mode<synchronous>, transform_indices = @transform_10, window_bounds = array<i64: 256, 128>}, {pipeline_mode = #tpu.pipeline_mode<synchronous>, transform_indices = @transform_11, window_bounds = array<i64: 128, 128>}, {pipeline_mode = #tpu.pipeline_mode<synchronous>, transform_indices = @transform_12, window_bounds = array<i64: 16, 128>}]} {
    %c0 = arith.constant 0 : index
    %c0_0 = arith.constant 0 : index
    %0 = vector.load %arg1[%c0, %c0_0] : memref<16x128xf32, #tpu.memory_space<vmem>>, vector<16x128xf32>
    %c0_1 = arith.constant 0 : index
    %c0_2 = arith.constant 0 : index
    %1 = vector.load %arg3[%c0_1, %c0_2] : memref<16x16xf32, #tpu.memory_space<vmem>>, vector<16x16xf32>
    %c0_3 = arith.constant 0 : index
    %c0_4 = arith.constant 0 : index
    %2 = vector.load %arg2[%c0_3, %c0_4] : memref<1x4288xf32, #tpu.memory_space<vmem>>, vector<1x128xf32>
    %c0_5 = arith.constant 0 : index
    %c128 = arith.constant 128 : index
    %3 = vector.load %arg2[%c0_5, %c128] : memref<1x4288xf32, #tpu.memory_space<vmem>>, vector<1x128xf32>
    %cst = arith.constant dense<0.000000e+00> : vector<16xf32>
    %4 = vector.multi_reduction <add>, %0, %cst [1] : vector<16x128xf32> to vector<16xf32>
    %5 = vector.shape_cast %4 : vector<16xf32> to vector<16x1xf32>
    %cst_6 = arith.constant 1.280000e+02 : f32
    %6 = vector.broadcast %cst_6 : f32 to vector<16x1xf32>
    %7 = arith.divf %5, %6 : vector<16x1xf32>
    %8 = vector.broadcast %7 : vector<16x1xf32> to vector<16x128xf32>
    %9 = arith.subf %0, %8 : vector<16x128xf32>
    %10 = arith.mulf %9, %9 : vector<16x128xf32>
    %cst_7 = arith.constant dense<0.000000e+00> : vector<16xf32>
    %11 = vector.multi_reduction <add>, %10, %cst_7 [1] : vector<16x128xf32> to vector<16xf32>
    %12 = vector.shape_cast %11 : vector<16xf32> to vector<16x1xf32>
    %cst_8 = arith.constant 1.280000e+02 : f32
    %13 = vector.broadcast %cst_8 : f32 to vector<16x1xf32>
    %14 = arith.divf %12, %13 : vector<16x1xf32>
    %15 = vector.broadcast %7 : vector<16x1xf32> to vector<16x128xf32>
    %16 = arith.subf %0, %15 : vector<16x128xf32>
    %cst_9 = arith.constant 9.99999974E-6 : f32
    %17 = vector.broadcast %cst_9 : f32 to vector<16x1xf32>
    %18 = arith.addf %14, %17 : vector<16x1xf32>
    %19 = math.rsqrt %18 : vector<16x1xf32>
    %20 = vector.broadcast %19 : vector<16x1xf32> to vector<16x128xf32>
    %21 = arith.mulf %16, %20 : vector<16x128xf32>
    %22 = vector.broadcast %2 : vector<1x128xf32> to vector<16x128xf32>
    %23 = arith.mulf %21, %22 : vector<16x128xf32>
    %24 = vector.broadcast %3 : vector<1x128xf32> to vector<16x128xf32>
    %25 = arith.addf %23, %24 : vector<16x128xf32>
    %26 = arith.truncf %25 : vector<16x128xf32> to vector<16x128xbf16>
    %c0_10 = arith.constant 0 : index
    %c0_11 = arith.constant 0 : index
    %27 = vector.load %arg4[%c0_10, %c0_11] : memref<128x384xbf16, #tpu.memory_space<vmem>>, vector<128x384xbf16>
    %cst_12 = arith.constant dense<0.000000e+00> : vector<16x384xf32>
    %28 = tpu.matmul %26, %27, %cst_12 {dimension_numbers = #tpu.dot_dimension_numbers<[1], [0], [0], [1], [0, 0, 1, 1], [], []>} : vector<16x128xbf16>, vector<128x384xbf16>, vector<16x384xf32> -> vector<16x384xf32>
    %c0_13 = arith.constant 0 : index
    %c1280 = arith.constant 1280 : index
    %29 = vector.load %arg2[%c0_13, %c1280] : memref<1x4288xf32, #tpu.memory_space<vmem>>, vector<1x384xf32>
    %30 = vector.broadcast %29 : vector<1x384xf32> to vector<16x384xf32>
    %31 = arith.addf %28, %30 : vector<16x384xf32>
    %32 = vector.extract_strided_slice %31 {offsets = [0, 0], sizes = [16, 128], strides = [1, 1]} : vector<16x384xf32> to vector<16x128xf32>
    %33 = vector.extract_strided_slice %31 {offsets = [0, 128], sizes = [16, 128], strides = [1, 1]} : vector<16x384xf32> to vector<16x128xf32>
    %34 = vector.extract_strided_slice %31 {offsets = [0, 256], sizes = [16, 128], strides = [1, 1]} : vector<16x384xf32> to vector<16x128xf32>
    %cst_14 = arith.constant 0.000000e+00 : f32
    %35 = vector.broadcast %cst_14 : f32 to vector<16x128xf32>
    %36 = vector.extract_strided_slice %32 {offsets = [0, 0], sizes = [16, 16], strides = [1, 1]} : vector<16x128xf32> to vector<16x16xf32>
    %cst_15 = arith.constant 2.500000e-01 : f32
    %37 = vector.broadcast %cst_15 : f32 to vector<16x16xf32>
    %38 = arith.mulf %36, %37 : vector<16x16xf32>
    %39 = vector.extract_strided_slice %33 {offsets = [0, 0], sizes = [16, 16], strides = [1, 1]} : vector<16x128xf32> to vector<16x16xf32>
    %40 = vector.extract_strided_slice %34 {offsets = [0, 0], sizes = [16, 16], strides = [1, 1]} : vector<16x128xf32> to vector<16x16xf32>
    %41 = tpu.transpose %39, [1, 0] : vector<16x16xf32> -> vector<16x16xf32>
    %cst_16 = arith.constant dense<0.000000e+00> : vector<16x16xf32>
    %42 = tpu.matmul %38, %41, %cst_16 {dimension_numbers = #tpu.dot_dimension_numbers<[1], [0], [0], [1], [0, 0, 1, 1], [], []>} : vector<16x16xf32>, vector<16x16xf32>, vector<16x16xf32> -> vector<16x16xf32>
    %43 = arith.addf %42, %1 : vector<16x16xf32>
    %cst_17 = arith.constant dense<0xFF800000> : vector<16xf32>
    %44 = vector.multi_reduction <maximumf>, %43, %cst_17 [1] : vector<16x16xf32> to vector<16xf32>
    %45 = vector.shape_cast %44 : vector<16xf32> to vector<16x1xf32>
    %46 = vector.broadcast %45 : vector<16x1xf32> to vector<16x16xf32>
    %47 = arith.subf %43, %46 : vector<16x16xf32>
    %48 = math.exp %47 : vector<16x16xf32>
    %cst_18 = arith.constant dense<0.000000e+00> : vector<16xf32>
    %49 = vector.multi_reduction <add>, %48, %cst_18 [1] : vector<16x16xf32> to vector<16xf32>
    %50 = vector.shape_cast %49 : vector<16xf32> to vector<16x1xf32>
    %51 = tpu.reciprocal %50 {approx = true} : vector<16x1xf32> -> vector<16x1xf32>
    %52 = vector.broadcast %51 : vector<16x1xf32> to vector<16x16xf32>
    %53 = arith.mulf %48, %52 : vector<16x16xf32>
    %cst_19 = arith.constant dense<0.000000e+00> : vector<16x16xf32>
    %54 = tpu.matmul %53, %40, %cst_19 {dimension_numbers = #tpu.dot_dimension_numbers<[1], [0], [0], [1], [0, 0, 1, 1], [], []>} : vector<16x16xf32>, vector<16x16xf32>, vector<16x16xf32> -> vector<16x16xf32>
    %55 = arith.truncf %54 : vector<16x16xf32> to vector<16x16xbf16>
    %c0_20 = arith.constant 0 : index
    %c0_21 = arith.constant 0 : index
    %c0_22 = arith.constant 0 : index
    %56 = vector.load %arg5[%c0_20, %c0_21, %c0_22] : memref<8x16x128xbf16, #tpu.memory_space<vmem>>, vector<1x16x128xbf16>
    %57 = vector.shape_cast %56 : vector<1x16x128xbf16> to vector<16x128xbf16>
    %cst_23 = arith.constant dense<0.000000e+00> : vector<16x128xf32>
    %58 = tpu.matmul %55, %57, %cst_23 {dimension_numbers = #tpu.dot_dimension_numbers<[1], [0], [0], [1], [0, 0, 1, 1], [], []>} : vector<16x16xbf16>, vector<16x128xbf16>, vector<16x128xf32> -> vector<16x128xf32>
    %59 = arith.addf %35, %58 : vector<16x128xf32>
    %60 = vector.extract_strided_slice %32 {offsets = [0, 16], sizes = [16, 16], strides = [1, 1]} : vector<16x128xf32> to vector<16x16xf32>
    %cst_24 = arith.constant 2.500000e-01 : f32
    %61 = vector.broadcast %cst_24 : f32 to vector<16x16xf32>
    %62 = arith.mulf %60, %61 : vector<16x16xf32>
    %63 = vector.extract_strided_slice %33 {offsets = [0, 16], sizes = [16, 16], strides = [1, 1]} : vector<16x128xf32> to vector<16x16xf32>
    %64 = vector.extract_strided_slice %34 {offsets = [0, 16], sizes = [16, 16], strides = [1, 1]} : vector<16x128xf32> to vector<16x16xf32>
    %65 = tpu.transpose %63, [1, 0] : vector<16x16xf32> -> vector<16x16xf32>
    %cst_25 = arith.constant dense<0.000000e+00> : vector<16x16xf32>
    %66 = tpu.matmul %62, %65, %cst_25 {dimension_numbers = #tpu.dot_dimension_numbers<[1], [0], [0], [1], [0, 0, 1, 1], [], []>} : vector<16x16xf32>, vector<16x16xf32>, vector<16x16xf32> -> vector<16x16xf32>
    %67 = arith.addf %66, %1 : vector<16x16xf32>
    %cst_26 = arith.constant dense<0xFF800000> : vector<16xf32>
    %68 = vector.multi_reduction <maximumf>, %67, %cst_26 [1] : vector<16x16xf32> to vector<16xf32>
    %69 = vector.shape_cast %68 : vector<16xf32> to vector<16x1xf32>
    %70 = vector.broadcast %69 : vector<16x1xf32> to vector<16x16xf32>
    %71 = arith.subf %67, %70 : vector<16x16xf32>
    %72 = math.exp %71 : vector<16x16xf32>
    %cst_27 = arith.constant dense<0.000000e+00> : vector<16xf32>
    %73 = vector.multi_reduction <add>, %72, %cst_27 [1] : vector<16x16xf32> to vector<16xf32>
    %74 = vector.shape_cast %73 : vector<16xf32> to vector<16x1xf32>
    %75 = tpu.reciprocal %74 {approx = true} : vector<16x1xf32> -> vector<16x1xf32>
    %76 = vector.broadcast %75 : vector<16x1xf32> to vector<16x16xf32>
    %77 = arith.mulf %72, %76 : vector<16x16xf32>
    %cst_28 = arith.constant dense<0.000000e+00> : vector<16x16xf32>
    %78 = tpu.matmul %77, %64, %cst_28 {dimension_numbers = #tpu.dot_dimension_numbers<[1], [0], [0], [1], [0, 0, 1, 1], [], []>} : vector<16x16xf32>, vector<16x16xf32>, vector<16x16xf32> -> vector<16x16xf32>
    %79 = arith.truncf %78 : vector<16x16xf32> to vector<16x16xbf16>
    %c1 = arith.constant 1 : index
    %c0_29 = arith.constant 0 : index
    %c0_30 = arith.constant 0 : index
    %80 = vector.load %arg5[%c1, %c0_29, %c0_30] : memref<8x16x128xbf16, #tpu.memory_space<vmem>>, vector<1x16x128xbf16>
    %81 = vector.shape_cast %80 : vector<1x16x128xbf16> to vector<16x128xbf16>
    %cst_31 = arith.constant dense<0.000000e+00> : vector<16x128xf32>
    %82 = tpu.matmul %79, %81, %cst_31 {dimension_numbers = #tpu.dot_dimension_numbers<[1], [0], [0], [1], [0, 0, 1, 1], [], []>} : vector<16x16xbf16>, vector<16x128xbf16>, vector<16x128xf32> -> vector<16x128xf32>
    %83 = arith.addf %59, %82 : vector<16x128xf32>
    %84 = vector.extract_strided_slice %32 {offsets = [0, 32], sizes = [16, 16], strides = [1, 1]} : vector<16x128xf32> to vector<16x16xf32>
    %cst_32 = arith.constant 2.500000e-01 : f32
    %85 = vector.broadcast %cst_32 : f32 to vector<16x16xf32>
    %86 = arith.mulf %84, %85 : vector<16x16xf32>
    %87 = vector.extract_strided_slice %33 {offsets = [0, 32], sizes = [16, 16], strides = [1, 1]} : vector<16x128xf32> to vector<16x16xf32>
    %88 = vector.extract_strided_slice %34 {offsets = [0, 32], sizes = [16, 16], strides = [1, 1]} : vector<16x128xf32> to vector<16x16xf32>
    %89 = tpu.transpose %87, [1, 0] : vector<16x16xf32> -> vector<16x16xf32>
    %cst_33 = arith.constant dense<0.000000e+00> : vector<16x16xf32>
    %90 = tpu.matmul %86, %89, %cst_33 {dimension_numbers = #tpu.dot_dimension_numbers<[1], [0], [0], [1], [0, 0, 1, 1], [], []>} : vector<16x16xf32>, vector<16x16xf32>, vector<16x16xf32> -> vector<16x16xf32>
    %91 = arith.addf %90, %1 : vector<16x16xf32>
    %cst_34 = arith.constant dense<0xFF800000> : vector<16xf32>
    %92 = vector.multi_reduction <maximumf>, %91, %cst_34 [1] : vector<16x16xf32> to vector<16xf32>
    %93 = vector.shape_cast %92 : vector<16xf32> to vector<16x1xf32>
    %94 = vector.broadcast %93 : vector<16x1xf32> to vector<16x16xf32>
    %95 = arith.subf %91, %94 : vector<16x16xf32>
    %96 = math.exp %95 : vector<16x16xf32>
    %cst_35 = arith.constant dense<0.000000e+00> : vector<16xf32>
    %97 = vector.multi_reduction <add>, %96, %cst_35 [1] : vector<16x16xf32> to vector<16xf32>
    %98 = vector.shape_cast %97 : vector<16xf32> to vector<16x1xf32>
    %99 = tpu.reciprocal %98 {approx = true} : vector<16x1xf32> -> vector<16x1xf32>
    %100 = vector.broadcast %99 : vector<16x1xf32> to vector<16x16xf32>
    %101 = arith.mulf %96, %100 : vector<16x16xf32>
    %cst_36 = arith.constant dense<0.000000e+00> : vector<16x16xf32>
    %102 = tpu.matmul %101, %88, %cst_36 {dimension_numbers = #tpu.dot_dimension_numbers<[1], [0], [0], [1], [0, 0, 1, 1], [], []>} : vector<16x16xf32>, vector<16x16xf32>, vector<16x16xf32> -> vector<16x16xf32>
    %103 = arith.truncf %102 : vector<16x16xf32> to vector<16x16xbf16>
    %c2 = arith.constant 2 : index
    %c0_37 = arith.constant 0 : index
    %c0_38 = arith.constant 0 : index
    %104 = vector.load %arg5[%c2, %c0_37, %c0_38] : memref<8x16x128xbf16, #tpu.memory_space<vmem>>, vector<1x16x128xbf16>
    %105 = vector.shape_cast %104 : vector<1x16x128xbf16> to vector<16x128xbf16>
    %cst_39 = arith.constant dense<0.000000e+00> : vector<16x128xf32>
    %106 = tpu.matmul %103, %105, %cst_39 {dimension_numbers = #tpu.dot_dimension_numbers<[1], [0], [0], [1], [0, 0, 1, 1], [], []>} : vector<16x16xbf16>, vector<16x128xbf16>, vector<16x128xf32> -> vector<16x128xf32>
    %107 = arith.addf %83, %106 : vector<16x128xf32>
    %108 = vector.extract_strided_slice %32 {offsets = [0, 48], sizes = [16, 16], strides = [1, 1]} : vector<16x128xf32> to vector<16x16xf32>
    %cst_40 = arith.constant 2.500000e-01 : f32
    %109 = vector.broadcast %cst_40 : f32 to vector<16x16xf32>
    %110 = arith.mulf %108, %109 : vector<16x16xf32>
    %111 = vector.extract_strided_slice %33 {offsets = [0, 48], sizes = [16, 16], strides = [1, 1]} : vector<16x128xf32> to vector<16x16xf32>
    %112 = vector.extract_strided_slice %34 {offsets = [0, 48], sizes = [16, 16], strides = [1, 1]} : vector<16x128xf32> to vector<16x16xf32>
    %113 = tpu.transpose %111, [1, 0] : vector<16x16xf32> -> vector<16x16xf32>
    %cst_41 = arith.constant dense<0.000000e+00> : vector<16x16xf32>
    %114 = tpu.matmul %110, %113, %cst_41 {dimension_numbers = #tpu.dot_dimension_numbers<[1], [0], [0], [1], [0, 0, 1, 1], [], []>} : vector<16x16xf32>, vector<16x16xf32>, vector<16x16xf32> -> vector<16x16xf32>
    %115 = arith.addf %114, %1 : vector<16x16xf32>
    %cst_42 = arith.constant dense<0xFF800000> : vector<16xf32>
    %116 = vector.multi_reduction <maximumf>, %115, %cst_42 [1] : vector<16x16xf32> to vector<16xf32>
    %117 = vector.shape_cast %116 : vector<16xf32> to vector<16x1xf32>
    %118 = vector.broadcast %117 : vector<16x1xf32> to vector<16x16xf32>
    %119 = arith.subf %115, %118 : vector<16x16xf32>
    %120 = math.exp %119 : vector<16x16xf32>
    %cst_43 = arith.constant dense<0.000000e+00> : vector<16xf32>
    %121 = vector.multi_reduction <add>, %120, %cst_43 [1] : vector<16x16xf32> to vector<16xf32>
    %122 = vector.shape_cast %121 : vector<16xf32> to vector<16x1xf32>
    %123 = tpu.reciprocal %122 {approx = true} : vector<16x1xf32> -> vector<16x1xf32>
    %124 = vector.broadcast %123 : vector<16x1xf32> to vector<16x16xf32>
    %125 = arith.mulf %120, %124 : vector<16x16xf32>
    %cst_44 = arith.constant dense<0.000000e+00> : vector<16x16xf32>
    %126 = tpu.matmul %125, %112, %cst_44 {dimension_numbers = #tpu.dot_dimension_numbers<[1], [0], [0], [1], [0, 0, 1, 1], [], []>} : vector<16x16xf32>, vector<16x16xf32>, vector<16x16xf32> -> vector<16x16xf32>
    %127 = arith.truncf %126 : vector<16x16xf32> to vector<16x16xbf16>
    %c3 = arith.constant 3 : index
    %c0_45 = arith.constant 0 : index
    %c0_46 = arith.constant 0 : index
    %128 = vector.load %arg5[%c3, %c0_45, %c0_46] : memref<8x16x128xbf16, #tpu.memory_space<vmem>>, vector<1x16x128xbf16>
    %129 = vector.shape_cast %128 : vector<1x16x128xbf16> to vector<16x128xbf16>
    %cst_47 = arith.constant dense<0.000000e+00> : vector<16x128xf32>
    %130 = tpu.matmul %127, %129, %cst_47 {dimension_numbers = #tpu.dot_dimension_numbers<[1], [0], [0], [1], [0, 0, 1, 1], [], []>} : vector<16x16xbf16>, vector<16x128xbf16>, vector<16x128xf32> -> vector<16x128xf32>
    %131 = arith.addf %107, %130 : vector<16x128xf32>
    %132 = vector.extract_strided_slice %32 {offsets = [0, 64], sizes = [16, 16], strides = [1, 1]} : vector<16x128xf32> to vector<16x16xf32>
    %cst_48 = arith.constant 2.500000e-01 : f32
    %133 = vector.broadcast %cst_48 : f32 to vector<16x16xf32>
    %134 = arith.mulf %132, %133 : vector<16x16xf32>
    %135 = vector.extract_strided_slice %33 {offsets = [0, 64], sizes = [16, 16], strides = [1, 1]} : vector<16x128xf32> to vector<16x16xf32>
    %136 = vector.extract_strided_slice %34 {offsets = [0, 64], sizes = [16, 16], strides = [1, 1]} : vector<16x128xf32> to vector<16x16xf32>
    %137 = tpu.transpose %135, [1, 0] : vector<16x16xf32> -> vector<16x16xf32>
    %cst_49 = arith.constant dense<0.000000e+00> : vector<16x16xf32>
    %138 = tpu.matmul %134, %137, %cst_49 {dimension_numbers = #tpu.dot_dimension_numbers<[1], [0], [0], [1], [0, 0, 1, 1], [], []>} : vector<16x16xf32>, vector<16x16xf32>, vector<16x16xf32> -> vector<16x16xf32>
    %139 = arith.addf %138, %1 : vector<16x16xf32>
    %cst_50 = arith.constant dense<0xFF800000> : vector<16xf32>
    %140 = vector.multi_reduction <maximumf>, %139, %cst_50 [1] : vector<16x16xf32> to vector<16xf32>
    %141 = vector.shape_cast %140 : vector<16xf32> to vector<16x1xf32>
    %142 = vector.broadcast %141 : vector<16x1xf32> to vector<16x16xf32>
    %143 = arith.subf %139, %142 : vector<16x16xf32>
    %144 = math.exp %143 : vector<16x16xf32>
    %cst_51 = arith.constant dense<0.000000e+00> : vector<16xf32>
    %145 = vector.multi_reduction <add>, %144, %cst_51 [1] : vector<16x16xf32> to vector<16xf32>
    %146 = vector.shape_cast %145 : vector<16xf32> to vector<16x1xf32>
    %147 = tpu.reciprocal %146 {approx = true} : vector<16x1xf32> -> vector<16x1xf32>
    %148 = vector.broadcast %147 : vector<16x1xf32> to vector<16x16xf32>
    %149 = arith.mulf %144, %148 : vector<16x16xf32>
    %cst_52 = arith.constant dense<0.000000e+00> : vector<16x16xf32>
    %150 = tpu.matmul %149, %136, %cst_52 {dimension_numbers = #tpu.dot_dimension_numbers<[1], [0], [0], [1], [0, 0, 1, 1], [], []>} : vector<16x16xf32>, vector<16x16xf32>, vector<16x16xf32> -> vector<16x16xf32>
    %151 = arith.truncf %150 : vector<16x16xf32> to vector<16x16xbf16>
    %c4 = arith.constant 4 : index
    %c0_53 = arith.constant 0 : index
    %c0_54 = arith.constant 0 : index
    %152 = vector.load %arg5[%c4, %c0_53, %c0_54] : memref<8x16x128xbf16, #tpu.memory_space<vmem>>, vector<1x16x128xbf16>
    %153 = vector.shape_cast %152 : vector<1x16x128xbf16> to vector<16x128xbf16>
    %cst_55 = arith.constant dense<0.000000e+00> : vector<16x128xf32>
    %154 = tpu.matmul %151, %153, %cst_55 {dimension_numbers = #tpu.dot_dimension_numbers<[1], [0], [0], [1], [0, 0, 1, 1], [], []>} : vector<16x16xbf16>, vector<16x128xbf16>, vector<16x128xf32> -> vector<16x128xf32>
    %155 = arith.addf %131, %154 : vector<16x128xf32>
    %156 = vector.extract_strided_slice %32 {offsets = [0, 80], sizes = [16, 16], strides = [1, 1]} : vector<16x128xf32> to vector<16x16xf32>
    %cst_56 = arith.constant 2.500000e-01 : f32
    %157 = vector.broadcast %cst_56 : f32 to vector<16x16xf32>
    %158 = arith.mulf %156, %157 : vector<16x16xf32>
    %159 = vector.extract_strided_slice %33 {offsets = [0, 80], sizes = [16, 16], strides = [1, 1]} : vector<16x128xf32> to vector<16x16xf32>
    %160 = vector.extract_strided_slice %34 {offsets = [0, 80], sizes = [16, 16], strides = [1, 1]} : vector<16x128xf32> to vector<16x16xf32>
    %161 = tpu.transpose %159, [1, 0] : vector<16x16xf32> -> vector<16x16xf32>
    %cst_57 = arith.constant dense<0.000000e+00> : vector<16x16xf32>
    %162 = tpu.matmul %158, %161, %cst_57 {dimension_numbers = #tpu.dot_dimension_numbers<[1], [0], [0], [1], [0, 0, 1, 1], [], []>} : vector<16x16xf32>, vector<16x16xf32>, vector<16x16xf32> -> vector<16x16xf32>
    %163 = arith.addf %162, %1 : vector<16x16xf32>
    %cst_58 = arith.constant dense<0xFF800000> : vector<16xf32>
    %164 = vector.multi_reduction <maximumf>, %163, %cst_58 [1] : vector<16x16xf32> to vector<16xf32>
    %165 = vector.shape_cast %164 : vector<16xf32> to vector<16x1xf32>
    %166 = vector.broadcast %165 : vector<16x1xf32> to vector<16x16xf32>
    %167 = arith.subf %163, %166 : vector<16x16xf32>
    %168 = math.exp %167 : vector<16x16xf32>
    %cst_59 = arith.constant dense<0.000000e+00> : vector<16xf32>
    %169 = vector.multi_reduction <add>, %168, %cst_59 [1] : vector<16x16xf32> to vector<16xf32>
    %170 = vector.shape_cast %169 : vector<16xf32> to vector<16x1xf32>
    %171 = tpu.reciprocal %170 {approx = true} : vector<16x1xf32> -> vector<16x1xf32>
    %172 = vector.broadcast %171 : vector<16x1xf32> to vector<16x16xf32>
    %173 = arith.mulf %168, %172 : vector<16x16xf32>
    %cst_60 = arith.constant dense<0.000000e+00> : vector<16x16xf32>
    %174 = tpu.matmul %173, %160, %cst_60 {dimension_numbers = #tpu.dot_dimension_numbers<[1], [0], [0], [1], [0, 0, 1, 1], [], []>} : vector<16x16xf32>, vector<16x16xf32>, vector<16x16xf32> -> vector<16x16xf32>
    %175 = arith.truncf %174 : vector<16x16xf32> to vector<16x16xbf16>
    %c5 = arith.constant 5 : index
    %c0_61 = arith.constant 0 : index
    %c0_62 = arith.constant 0 : index
    %176 = vector.load %arg5[%c5, %c0_61, %c0_62] : memref<8x16x128xbf16, #tpu.memory_space<vmem>>, vector<1x16x128xbf16>
    %177 = vector.shape_cast %176 : vector<1x16x128xbf16> to vector<16x128xbf16>
    %cst_63 = arith.constant dense<0.000000e+00> : vector<16x128xf32>
    %178 = tpu.matmul %175, %177, %cst_63 {dimension_numbers = #tpu.dot_dimension_numbers<[1], [0], [0], [1], [0, 0, 1, 1], [], []>} : vector<16x16xbf16>, vector<16x128xbf16>, vector<16x128xf32> -> vector<16x128xf32>
    %179 = arith.addf %155, %178 : vector<16x128xf32>
    %180 = vector.extract_strided_slice %32 {offsets = [0, 96], sizes = [16, 16], strides = [1, 1]} : vector<16x128xf32> to vector<16x16xf32>
    %cst_64 = arith.constant 2.500000e-01 : f32
    %181 = vector.broadcast %cst_64 : f32 to vector<16x16xf32>
    %182 = arith.mulf %180, %181 : vector<16x16xf32>
    %183 = vector.extract_strided_slice %33 {offsets = [0, 96], sizes = [16, 16], strides = [1, 1]} : vector<16x128xf32> to vector<16x16xf32>
    %184 = vector.extract_strided_slice %34 {offsets = [0, 96], sizes = [16, 16], strides = [1, 1]} : vector<16x128xf32> to vector<16x16xf32>
    %185 = tpu.transpose %183, [1, 0] : vector<16x16xf32> -> vector<16x16xf32>
    %cst_65 = arith.constant dense<0.000000e+00> : vector<16x16xf32>
    %186 = tpu.matmul %182, %185, %cst_65 {dimension_numbers = #tpu.dot_dimension_numbers<[1], [0], [0], [1], [0, 0, 1, 1], [], []>} : vector<16x16xf32>, vector<16x16xf32>, vector<16x16xf32> -> vector<16x16xf32>
    %187 = arith.addf %186, %1 : vector<16x16xf32>
    %cst_66 = arith.constant dense<0xFF800000> : vector<16xf32>
    %188 = vector.multi_reduction <maximumf>, %187, %cst_66 [1] : vector<16x16xf32> to vector<16xf32>
    %189 = vector.shape_cast %188 : vector<16xf32> to vector<16x1xf32>
    %190 = vector.broadcast %189 : vector<16x1xf32> to vector<16x16xf32>
    %191 = arith.subf %187, %190 : vector<16x16xf32>
    %192 = math.exp %191 : vector<16x16xf32>
    %cst_67 = arith.constant dense<0.000000e+00> : vector<16xf32>
    %193 = vector.multi_reduction <add>, %192, %cst_67 [1] : vector<16x16xf32> to vector<16xf32>
    %194 = vector.shape_cast %193 : vector<16xf32> to vector<16x1xf32>
    %195 = tpu.reciprocal %194 {approx = true} : vector<16x1xf32> -> vector<16x1xf32>
    %196 = vector.broadcast %195 : vector<16x1xf32> to vector<16x16xf32>
    %197 = arith.mulf %192, %196 : vector<16x16xf32>
    %cst_68 = arith.constant dense<0.000000e+00> : vector<16x16xf32>
    %198 = tpu.matmul %197, %184, %cst_68 {dimension_numbers = #tpu.dot_dimension_numbers<[1], [0], [0], [1], [0, 0, 1, 1], [], []>} : vector<16x16xf32>, vector<16x16xf32>, vector<16x16xf32> -> vector<16x16xf32>
    %199 = arith.truncf %198 : vector<16x16xf32> to vector<16x16xbf16>
    %c6 = arith.constant 6 : index
    %c0_69 = arith.constant 0 : index
    %c0_70 = arith.constant 0 : index
    %200 = vector.load %arg5[%c6, %c0_69, %c0_70] : memref<8x16x128xbf16, #tpu.memory_space<vmem>>, vector<1x16x128xbf16>
    %201 = vector.shape_cast %200 : vector<1x16x128xbf16> to vector<16x128xbf16>
    %cst_71 = arith.constant dense<0.000000e+00> : vector<16x128xf32>
    %202 = tpu.matmul %199, %201, %cst_71 {dimension_numbers = #tpu.dot_dimension_numbers<[1], [0], [0], [1], [0, 0, 1, 1], [], []>} : vector<16x16xbf16>, vector<16x128xbf16>, vector<16x128xf32> -> vector<16x128xf32>
    %203 = arith.addf %179, %202 : vector<16x128xf32>
    %204 = vector.extract_strided_slice %32 {offsets = [0, 112], sizes = [16, 16], strides = [1, 1]} : vector<16x128xf32> to vector<16x16xf32>
    %cst_72 = arith.constant 2.500000e-01 : f32
    %205 = vector.broadcast %cst_72 : f32 to vector<16x16xf32>
    %206 = arith.mulf %204, %205 : vector<16x16xf32>
    %207 = vector.extract_strided_slice %33 {offsets = [0, 112], sizes = [16, 16], strides = [1, 1]} : vector<16x128xf32> to vector<16x16xf32>
    %208 = vector.extract_strided_slice %34 {offsets = [0, 112], sizes = [16, 16], strides = [1, 1]} : vector<16x128xf32> to vector<16x16xf32>
    %209 = tpu.transpose %207, [1, 0] : vector<16x16xf32> -> vector<16x16xf32>
    %cst_73 = arith.constant dense<0.000000e+00> : vector<16x16xf32>
    %210 = tpu.matmul %206, %209, %cst_73 {dimension_numbers = #tpu.dot_dimension_numbers<[1], [0], [0], [1], [0, 0, 1, 1], [], []>} : vector<16x16xf32>, vector<16x16xf32>, vector<16x16xf32> -> vector<16x16xf32>
    %211 = arith.addf %210, %1 : vector<16x16xf32>
    %cst_74 = arith.constant dense<0xFF800000> : vector<16xf32>
    %212 = vector.multi_reduction <maximumf>, %211, %cst_74 [1] : vector<16x16xf32> to vector<16xf32>
    %213 = vector.shape_cast %212 : vector<16xf32> to vector<16x1xf32>
    %214 = vector.broadcast %213 : vector<16x1xf32> to vector<16x16xf32>
    %215 = arith.subf %211, %214 : vector<16x16xf32>
    %216 = math.exp %215 : vector<16x16xf32>
    %cst_75 = arith.constant dense<0.000000e+00> : vector<16xf32>
    %217 = vector.multi_reduction <add>, %216, %cst_75 [1] : vector<16x16xf32> to vector<16xf32>
    %218 = vector.shape_cast %217 : vector<16xf32> to vector<16x1xf32>
    %219 = tpu.reciprocal %218 {approx = true} : vector<16x1xf32> -> vector<16x1xf32>
    %220 = vector.broadcast %219 : vector<16x1xf32> to vector<16x16xf32>
    %221 = arith.mulf %216, %220 : vector<16x16xf32>
    %cst_76 = arith.constant dense<0.000000e+00> : vector<16x16xf32>
    %222 = tpu.matmul %221, %208, %cst_76 {dimension_numbers = #tpu.dot_dimension_numbers<[1], [0], [0], [1], [0, 0, 1, 1], [], []>} : vector<16x16xf32>, vector<16x16xf32>, vector<16x16xf32> -> vector<16x16xf32>
    %223 = arith.truncf %222 : vector<16x16xf32> to vector<16x16xbf16>
    %c7 = arith.constant 7 : index
    %c0_77 = arith.constant 0 : index
    %c0_78 = arith.constant 0 : index
    %224 = vector.load %arg5[%c7, %c0_77, %c0_78] : memref<8x16x128xbf16, #tpu.memory_space<vmem>>, vector<1x16x128xbf16>
    %225 = vector.shape_cast %224 : vector<1x16x128xbf16> to vector<16x128xbf16>
    %cst_79 = arith.constant dense<0.000000e+00> : vector<16x128xf32>
    %226 = tpu.matmul %223, %225, %cst_79 {dimension_numbers = #tpu.dot_dimension_numbers<[1], [0], [0], [1], [0, 0, 1, 1], [], []>} : vector<16x16xbf16>, vector<16x128xbf16>, vector<16x128xf32> -> vector<16x128xf32>
    %227 = arith.addf %203, %226 : vector<16x128xf32>
    %228 = arith.addf %0, %227 : vector<16x128xf32>
    %c0_80 = arith.constant 0 : index
    %c768 = arith.constant 768 : index
    %229 = vector.load %arg2[%c0_80, %c768] : memref<1x4288xf32, #tpu.memory_space<vmem>>, vector<1x128xf32>
    %230 = vector.broadcast %229 : vector<1x128xf32> to vector<16x128xf32>
    %231 = arith.addf %228, %230 : vector<16x128xf32>
    %c0_81 = arith.constant 0 : index
    %c256 = arith.constant 256 : index
    %232 = vector.load %arg2[%c0_81, %c256] : memref<1x4288xf32, #tpu.memory_space<vmem>>, vector<1x128xf32>
    %c0_82 = arith.constant 0 : index
    %c384 = arith.constant 384 : index
    %233 = vector.load %arg2[%c0_82, %c384] : memref<1x4288xf32, #tpu.memory_space<vmem>>, vector<1x128xf32>
    %cst_83 = arith.constant dense<0.000000e+00> : vector<16xf32>
    %234 = vector.multi_reduction <add>, %231, %cst_83 [1] : vector<16x128xf32> to vector<16xf32>
    %235 = vector.shape_cast %234 : vector<16xf32> to vector<16x1xf32>
    %cst_84 = arith.constant 1.280000e+02 : f32
    %236 = vector.broadcast %cst_84 : f32 to vector<16x1xf32>
    %237 = arith.divf %235, %236 : vector<16x1xf32>
    %238 = vector.broadcast %237 : vector<16x1xf32> to vector<16x128xf32>
    %239 = arith.subf %231, %238 : vector<16x128xf32>
    %240 = arith.mulf %239, %239 : vector<16x128xf32>
    %cst_85 = arith.constant dense<0.000000e+00> : vector<16xf32>
    %241 = vector.multi_reduction <add>, %240, %cst_85 [1] : vector<16x128xf32> to vector<16xf32>
    %242 = vector.shape_cast %241 : vector<16xf32> to vector<16x1xf32>
    %cst_86 = arith.constant 1.280000e+02 : f32
    %243 = vector.broadcast %cst_86 : f32 to vector<16x1xf32>
    %244 = arith.divf %242, %243 : vector<16x1xf32>
    %245 = vector.broadcast %237 : vector<16x1xf32> to vector<16x128xf32>
    %246 = arith.subf %231, %245 : vector<16x128xf32>
    %cst_87 = arith.constant 9.99999974E-6 : f32
    %247 = vector.broadcast %cst_87 : f32 to vector<16x1xf32>
    %248 = arith.addf %244, %247 : vector<16x1xf32>
    %249 = math.rsqrt %248 : vector<16x1xf32>
    %250 = vector.broadcast %249 : vector<16x1xf32> to vector<16x128xf32>
    %251 = arith.mulf %246, %250 : vector<16x128xf32>
    %252 = vector.broadcast %232 : vector<1x128xf32> to vector<16x128xf32>
    %253 = arith.mulf %251, %252 : vector<16x128xf32>
    %254 = vector.broadcast %233 : vector<1x128xf32> to vector<16x128xf32>
    %255 = arith.addf %253, %254 : vector<16x128xf32>
    %256 = arith.truncf %255 : vector<16x128xf32> to vector<16x128xbf16>
    %c0_88 = arith.constant 0 : index
    %c0_89 = arith.constant 0 : index
    %257 = vector.load %arg6[%c0_88, %c0_89] : memref<128x2048xbf16, #tpu.memory_space<vmem>>, vector<128x2048xbf16>
    %cst_90 = arith.constant dense<0.000000e+00> : vector<16x2048xf32>
    %258 = tpu.matmul %256, %257, %cst_90 {dimension_numbers = #tpu.dot_dimension_numbers<[1], [0], [0], [1], [0, 0, 1, 1], [], []>} : vector<16x128xbf16>, vector<128x2048xbf16>, vector<16x2048xf32> -> vector<16x2048xf32>
    %c0_91 = arith.constant 0 : index
    %c2176 = arith.constant 2176 : index
    %259 = vector.load %arg2[%c0_91, %c2176] : memref<1x4288xf32, #tpu.memory_space<vmem>>, vector<1x2048xf32>
    %260 = vector.broadcast %259 : vector<1x2048xf32> to vector<16x2048xf32>
    %261 = arith.addf %258, %260 : vector<16x2048xf32>
    %cst_92 = arith.constant 0.000000e+00 : f32
    %262 = vector.broadcast %cst_92 : f32 to vector<16x2048xf32>
    %263 = arith.maximumf %261, %262 : vector<16x2048xf32>
    %264 = arith.truncf %263 : vector<16x2048xf32> to vector<16x2048xbf16>
    %c0_93 = arith.constant 0 : index
    %c0_94 = arith.constant 0 : index
    %265 = vector.load %arg7[%c0_93, %c0_94] : memref<2048x128xbf16, #tpu.memory_space<vmem>>, vector<2048x128xbf16>
    %cst_95 = arith.constant dense<0.000000e+00> : vector<16x128xf32>
    %266 = tpu.matmul %264, %265, %cst_95 {dimension_numbers = #tpu.dot_dimension_numbers<[1], [0], [0], [1], [0, 0, 1, 1], [], []>} : vector<16x2048xbf16>, vector<2048x128xbf16>, vector<16x128xf32> -> vector<16x128xf32>
    %c0_96 = arith.constant 0 : index
    %c896 = arith.constant 896 : index
    %267 = vector.load %arg2[%c0_96, %c896] : memref<1x4288xf32, #tpu.memory_space<vmem>>, vector<1x128xf32>
    %268 = vector.broadcast %267 : vector<1x128xf32> to vector<16x128xf32>
    %269 = arith.addf %266, %268 : vector<16x128xf32>
    %270 = arith.addf %231, %269 : vector<16x128xf32>
    %c0_97 = arith.constant 0 : index
    %c512 = arith.constant 512 : index
    %271 = vector.load %arg2[%c0_97, %c512] : memref<1x4288xf32, #tpu.memory_space<vmem>>, vector<1x128xf32>
    %c0_98 = arith.constant 0 : index
    %c640 = arith.constant 640 : index
    %272 = vector.load %arg2[%c0_98, %c640] : memref<1x4288xf32, #tpu.memory_space<vmem>>, vector<1x128xf32>
    %cst_99 = arith.constant dense<0.000000e+00> : vector<16xf32>
    %273 = vector.multi_reduction <add>, %270, %cst_99 [1] : vector<16x128xf32> to vector<16xf32>
    %274 = vector.shape_cast %273 : vector<16xf32> to vector<16x1xf32>
    %cst_100 = arith.constant 1.280000e+02 : f32
    %275 = vector.broadcast %cst_100 : f32 to vector<16x1xf32>
    %276 = arith.divf %274, %275 : vector<16x1xf32>
    %277 = vector.broadcast %276 : vector<16x1xf32> to vector<16x128xf32>
    %278 = arith.subf %270, %277 : vector<16x128xf32>
    %279 = arith.mulf %278, %278 : vector<16x128xf32>
    %cst_101 = arith.constant dense<0.000000e+00> : vector<16xf32>
    %280 = vector.multi_reduction <add>, %279, %cst_101 [1] : vector<16x128xf32> to vector<16xf32>
    %281 = vector.shape_cast %280 : vector<16xf32> to vector<16x1xf32>
    %cst_102 = arith.constant 1.280000e+02 : f32
    %282 = vector.broadcast %cst_102 : f32 to vector<16x1xf32>
    %283 = arith.divf %281, %282 : vector<16x1xf32>
    %284 = vector.broadcast %276 : vector<16x1xf32> to vector<16x128xf32>
    %285 = arith.subf %270, %284 : vector<16x128xf32>
    %cst_103 = arith.constant 9.99999974E-6 : f32
    %286 = vector.broadcast %cst_103 : f32 to vector<16x1xf32>
    %287 = arith.addf %283, %286 : vector<16x1xf32>
    %288 = math.rsqrt %287 : vector<16x1xf32>
    %289 = vector.broadcast %288 : vector<16x1xf32> to vector<16x128xf32>
    %290 = arith.mulf %285, %289 : vector<16x128xf32>
    %291 = vector.broadcast %271 : vector<1x128xf32> to vector<16x128xf32>
    %292 = arith.mulf %290, %291 : vector<16x128xf32>
    %293 = vector.broadcast %272 : vector<1x128xf32> to vector<16x128xf32>
    %294 = arith.addf %292, %293 : vector<16x128xf32>
    %295 = arith.truncf %294 : vector<16x128xf32> to vector<16x128xbf16>
    %c0_104 = arith.constant 0 : index
    %c0_105 = arith.constant 0 : index
    %296 = vector.load %arg8[%c0_104, %c0_105] : memref<128x256xbf16, #tpu.memory_space<vmem>>, vector<128x256xbf16>
    %cst_106 = arith.constant dense<0.000000e+00> : vector<16x256xf32>
    %297 = tpu.matmul %295, %296, %cst_106 {dimension_numbers = #tpu.dot_dimension_numbers<[1], [0], [0], [1], [0, 0, 1, 1], [], []>} : vector<16x128xbf16>, vector<128x256xbf16>, vector<16x256xf32> -> vector<16x256xf32>
    %c0_107 = arith.constant 0 : index
    %c1664 = arith.constant 1664 : index
    %298 = vector.load %arg2[%c0_107, %c1664] : memref<1x4288xf32, #tpu.memory_space<vmem>>, vector<1x256xf32>
    %299 = vector.broadcast %298 : vector<1x256xf32> to vector<16x256xf32>
    %300 = arith.addf %297, %299 : vector<16x256xf32>
    %cst_108 = arith.constant 0.000000e+00 : f32
    %301 = vector.broadcast %cst_108 : f32 to vector<16x256xf32>
    %302 = arith.maximumf %300, %301 : vector<16x256xf32>
    %303 = arith.truncf %302 : vector<16x256xf32> to vector<16x256xbf16>
    %c0_109 = arith.constant 0 : index
    %c0_110 = arith.constant 0 : index
    %304 = vector.load %arg9[%c0_109, %c0_110] : memref<256x64xbf16, #tpu.memory_space<vmem>>, vector<256x64xbf16>
    %cst_111 = arith.constant dense<0.000000e+00> : vector<16x64xf32>
    %305 = tpu.matmul %303, %304, %cst_111 {dimension_numbers = #tpu.dot_dimension_numbers<[1], [0], [0], [1], [0, 0, 1, 1], [], []>} : vector<16x256xbf16>, vector<256x64xbf16>, vector<16x64xf32> -> vector<16x64xf32>
    %c0_112 = arith.constant 0 : index
    %c4224 = arith.constant 4224 : index
    %306 = vector.load %arg2[%c0_112, %c4224] : memref<1x4288xf32, #tpu.memory_space<vmem>>, vector<1x64xf32>
    %307 = vector.broadcast %306 : vector<1x64xf32> to vector<16x64xf32>
    %308 = arith.addf %305, %307 : vector<16x64xf32>
    %cst_113 = arith.constant 0.000000e+00 : f32
    %309 = vector.broadcast %cst_113 : f32 to vector<16x64xf32>
    %310 = arith.maximumf %308, %309 : vector<16x64xf32>
    %311 = arith.truncf %310 : vector<16x64xf32> to vector<16x64xbf16>
    %c0_114 = arith.constant 0 : index
    %c0_115 = arith.constant 0 : index
    %312 = vector.load %arg10[%c0_114, %c0_115] : memref<64x256xbf16, #tpu.memory_space<vmem>>, vector<64x256xbf16>
    %cst_116 = arith.constant dense<0.000000e+00> : vector<16x256xf32>
    %313 = tpu.matmul %311, %312, %cst_116 {dimension_numbers = #tpu.dot_dimension_numbers<[1], [0], [0], [1], [0, 0, 1, 1], [], []>} : vector<16x64xbf16>, vector<64x256xbf16>, vector<16x256xf32> -> vector<16x256xf32>
    %c0_117 = arith.constant 0 : index
    %c1920 = arith.constant 1920 : index
    %314 = vector.load %arg2[%c0_117, %c1920] : memref<1x4288xf32, #tpu.memory_space<vmem>>, vector<1x256xf32>
    %315 = vector.broadcast %314 : vector<1x256xf32> to vector<16x256xf32>
    %316 = arith.addf %313, %315 : vector<16x256xf32>
    %cst_118 = arith.constant 0.000000e+00 : f32
    %317 = vector.broadcast %cst_118 : f32 to vector<16x256xf32>
    %318 = arith.maximumf %316, %317 : vector<16x256xf32>
    %319 = arith.truncf %318 : vector<16x256xf32> to vector<16x256xbf16>
    %c0_119 = arith.constant 0 : index
    %c0_120 = arith.constant 0 : index
    %320 = vector.load %arg11[%c0_119, %c0_120] : memref<256x128xbf16, #tpu.memory_space<vmem>>, vector<256x128xbf16>
    %cst_121 = arith.constant dense<0.000000e+00> : vector<16x128xf32>
    %321 = tpu.matmul %319, %320, %cst_121 {dimension_numbers = #tpu.dot_dimension_numbers<[1], [0], [0], [1], [0, 0, 1, 1], [], []>} : vector<16x256xbf16>, vector<256x128xbf16>, vector<16x128xf32> -> vector<16x128xf32>
    %c0_122 = arith.constant 0 : index
    %c1024 = arith.constant 1024 : index
    %322 = vector.load %arg2[%c0_122, %c1024] : memref<1x4288xf32, #tpu.memory_space<vmem>>, vector<1x128xf32>
    %323 = vector.broadcast %322 : vector<1x128xf32> to vector<16x128xf32>
    %324 = arith.addf %321, %323 : vector<16x128xf32>
    %cst_123 = arith.constant 0.000000e+00 : f32
    %325 = vector.broadcast %cst_123 : f32 to vector<16x128xf32>
    %326 = arith.maximumf %324, %325 : vector<16x128xf32>
    %327 = arith.truncf %326 : vector<16x128xf32> to vector<16x128xbf16>
    %c0_124 = arith.constant 0 : index
    %c0_125 = arith.constant 0 : index
    %328 = vector.load %arg12[%c0_124, %c0_125] : memref<128x128xbf16, #tpu.memory_space<vmem>>, vector<128x128xbf16>
    %cst_126 = arith.constant dense<0.000000e+00> : vector<16x128xf32>
    %329 = tpu.matmul %327, %328, %cst_126 {dimension_numbers = #tpu.dot_dimension_numbers<[1], [0], [0], [1], [0, 0, 1, 1], [], []>} : vector<16x128xbf16>, vector<128x128xbf16>, vector<16x128xf32> -> vector<16x128xf32>
    %c0_127 = arith.constant 0 : index
    %c1152 = arith.constant 1152 : index
    %330 = vector.load %arg2[%c0_127, %c1152] : memref<1x4288xf32, #tpu.memory_space<vmem>>, vector<1x128xf32>
    %331 = vector.broadcast %330 : vector<1x128xf32> to vector<16x128xf32>
    %332 = arith.addf %329, %331 : vector<16x128xf32>
    %c0_128 = arith.constant 0 : index
    %c0_129 = arith.constant 0 : index
    %333 = vector.load %arg13[%c0_128, %c0_129] : memref<16x128xf32, #tpu.memory_space<vmem>>, vector<16x128xf32>
    tpu.vector_store %arg13[%c0_128, %c0_129], %332 {strides = array<i32>} : memref<16x128xf32, #tpu.memory_space<vmem>>, vector<16x128xf32>,
    return
  }
  func.func @transform_0(%arg0: i32) -> (i32, i32) {
    %c0_i32 = arith.constant 0 : i32
    %c0_i32_0 = arith.constant 0 : i32
    %c0_i32_1 = arith.constant 0 : i32
    return %c0_i32, %c0_i32_0 : i32, i32
  }
  func.func @transform_1(%arg0: i32) -> (i32, i32) {
    %c0_i32 = arith.constant 0 : i32
    %c0_i32_0 = arith.constant 0 : i32
    %c0_i32_1 = arith.constant 0 : i32
    return %c0_i32, %c0_i32_0 : i32, i32
  }
  func.func @transform_2(%arg0: i32) -> (i32, i32) {
    %c0_i32 = arith.constant 0 : i32
    %c0_i32_0 = arith.constant 0 : i32
    %c0_i32_1 = arith.constant 0 : i32
    return %c0_i32, %c0_i32_0 : i32, i32
  }
  func.func @transform_3(%arg0: i32) -> (i32, i32) {
    %c0_i32 = arith.constant 0 : i32
    %c0_i32_0 = arith.constant 0 : i32
    %c0_i32_1 = arith.constant 0 : i32
    return %c0_i32, %c0_i32_0 : i32, i32
  }
  func.func @transform_4(%arg0: i32) -> (i32, i32, i32) {
    %c0_i32 = arith.constant 0 : i32
    %c0_i32_0 = arith.constant 0 : i32
    %c0_i32_1 = arith.constant 0 : i32
    %c0_i32_2 = arith.constant 0 : i32
    return %c0_i32, %c0_i32_0, %c0_i32_1 : i32, i32, i32
  }
  func.func @transform_5(%arg0: i32) -> (i32, i32) {
    %c0_i32 = arith.constant 0 : i32
    %c0_i32_0 = arith.constant 0 : i32
    %c0_i32_1 = arith.constant 0 : i32
    return %c0_i32, %c0_i32_0 : i32, i32
  }
  func.func @transform_6(%arg0: i32) -> (i32, i32) {
    %c0_i32 = arith.constant 0 : i32
    %c0_i32_0 = arith.constant 0 : i32
    %c0_i32_1 = arith.constant 0 : i32
    return %c0_i32, %c0_i32_0 : i32, i32
  }
  func.func @transform_7(%arg0: i32) -> (i32, i32) {
    %c0_i32 = arith.constant 0 : i32
    %c0_i32_0 = arith.constant 0 : i32
    %c0_i32_1 = arith.constant 0 : i32
    return %c0_i32, %c0_i32_0 : i32, i32
  }
  func.func @transform_8(%arg0: i32) -> (i32, i32) {
    %c0_i32 = arith.constant 0 : i32
    %c0_i32_0 = arith.constant 0 : i32
    %c0_i32_1 = arith.constant 0 : i32
    return %c0_i32, %c0_i32_0 : i32, i32
  }
  func.func @transform_9(%arg0: i32) -> (i32, i32) {
    %c0_i32 = arith.constant 0 : i32
    %c0_i32_0 = arith.constant 0 : i32
    %c0_i32_1 = arith.constant 0 : i32
    return %c0_i32, %c0_i32_0 : i32, i32
  }
  func.func @transform_10(%arg0: i32) -> (i32, i32) {
    %c0_i32 = arith.constant 0 : i32
    %c0_i32_0 = arith.constant 0 : i32
    %c0_i32_1 = arith.constant 0 : i32
    return %c0_i32, %c0_i32_0 : i32, i32
  }
  func.func @transform_11(%arg0: i32) -> (i32, i32) {
    %c0_i32 = arith.constant 0 : i32
    %c0_i32_0 = arith.constant 0 : i32
    %c0_i32_1 = arith.constant 0 : i32
    return %c0_i32, %c0_i32_0 : i32, i32
  }
  func.func @transform_12(%arg0: i32) -> (i32, i32) {
    %c0_i32 = arith.constant 0 : i32
    %c0_i32_0 = arith.constant 0 : i32
    %c0_i32_1 = arith.constant 0 : i32
    return %c0_i32, %c0_i32_0 : i32, i32
  }
}

</mosaic_0001>

<llo_original>
// kernel: tpu_custom_call.1
$region0: #{tpu_custom_call.1}
  #allocation0 [shape = 'u32[]', space=smem, size = 0x4, offset = 0x4, fixed_abs, tag = 'smem constant byte address 0x4 - core index']
  #allocation1 [shape = 'u32[144,128]{1,0:T(1,128)}', space=vmem, size = 0x12000, scoped, tag = 'internal scratch']
  %s0 = inlined_call_operand.hbm [shape: f32[16,128], index: 0, kind: input, shape index: {}]
  %s1 = inlined_call_operand.hbm [shape: f32[1,4288], index: 1, kind: input, shape index: {}]
  %s2 = inlined_call_operand.hbm [shape: f32[16,16], index: 2, kind: input, shape index: {}]
  %s3 = inlined_call_operand.vmem [shape: bf16[128,384], index: 3, kind: input, shape index: {}]
  %s4 = inlined_call_operand.hbm [shape: bf16[8,16,128], index: 4, kind: input, shape index: {}]
  %s5 = inlined_call_operand.hbm [shape: bf16[128,2048], index: 5, kind: input, shape index: {}]
  %s6 = inlined_call_operand.hbm [shape: bf16[2048,128], index: 6, kind: input, shape index: {}]
  %s7 = inlined_call_operand.hbm [shape: bf16[128,256], index: 7, kind: input, shape index: {}]
  %s8 = inlined_call_operand.vmem [shape: bf16[256,64], index: 8, kind: input, shape index: {}]
  %s9 = inlined_call_operand.hbm [shape: bf16[64,256], index: 9, kind: input, shape index: {}]
  %s10 = inlined_call_operand.hbm [shape: bf16[256,128], index: 10, kind: input, shape index: {}]
  %s11 = inlined_call_operand.hbm [shape: bf16[128,128], index: 11, kind: input, shape index: {}]
  %s12 = inlined_call_operand.hbm [shape: f32[16,128], index: 12, kind: output, shape index: {}]
  %s13 = sld [smem:[#allocation0]]
  $region98: #{tpu_custom_call.1} parent=0
    _
  %s15 = ssub.s32 1, %s13
  %s16 = scalar_select 0, %s15, %s13
  $region1: #{tpu_custom_call.1} parent=0
    #allocation2 [shape = 'u8[8192]{0}', space=vmem, size = 0x2000, scoped, tag = 'input window, operand 0, single buffered']
    #allocation3 [shape = 's32[1]{0}', space=sflag, size = 0x4, scoped, tag = 'scoped memory for tpu_custom_call.1']
    #allocation4 [shape = 's32[1]{0}', space=sflag, size = 0x4, scoped, tag = 'scoped memory for tpu_custom_call.1']
    #allocation5 [shape = 'u8[17408]{0}', space=vmem, size = 0x4400, scoped, tag = 'input window, operand 1, single buffered']
    #allocation6 [shape = 's32[1]{0}', space=sflag, size = 0x4, scoped, tag = 'scoped memory for tpu_custom_call.1']
    #allocation7 [shape = 'u8[8192]{0}', space=vmem, size = 0x2000, scoped, tag = 'input window, operand 2, single buffered']
    #allocation8 [shape = 'u8[32768]{0}', space=vmem, size = 0x8000, scoped, tag = 'input window, operand 4, single buffered']
    #allocation9 [shape = 's32[1]{0}', space=sflag, size = 0x4, scoped, tag = 'scoped memory for tpu_custom_call.1']
    #allocation10 [shape = 'u8[524288]{0}', space=vmem, size = 0x80000, scoped, tag = 'input window, operand 5, single buffered']
    #allocation11 [shape = 'u8[524288]{0}', space=vmem, size = 0x80000, scoped, tag = 'input window, operand 6, single buffered']
    #allocation12 [shape = 's32[1]{0}', space=sflag, size = 0x4, scoped, tag = 'scoped memory for tpu_custom_call.1']
    #allocation13 [shape = 'u8[65536]{0}', space=vmem, size = 0x10000, scoped, tag = 'input window, operand 7, single buffered']
    #allocation14 [shape = 'u8[32768]{0}', space=vmem, size = 0x8000, scoped, tag = 'input window, operand 9, single buffered']
    #allocation15 [shape = 's32[1]{0}', space=sflag, size = 0x4, scoped, tag = 'scoped memory for tpu_custom_call.1']
    #allocation16 [shape = 'u8[65536]{0}', space=vmem, size = 0x10000, scoped, tag = 'input window, operand 10, single buffered']
    #allocation17 [shape = 'u8[32768]{0}', space=vmem, size = 0x8000, scoped, tag = 'input window, operand 11, single buffered']
    #allocation18 [shape = 's32[1]{0}', space=sflag, size = 0x4, scoped, tag = 'scoped memory for tpu_custom_call.1']
    #allocation19 [shape = 'u8[8192]{0}', space=vmem, size = 0x2000, scoped, tag = 'output window, operand 0, single buffered']
    %17 = vsyncpa [#allocation3], 0
    %18 = vsyncpa [#allocation6], 0
    %19 = vsyncpa [#allocation9], 0
    %20 = vsyncpa [#allocation12], 0
    %21 = vsyncpa [#allocation15], 0
    %22 = vsyncpa [#allocation18], 0
    %23 = vsyncpa [#allocation4], 0
    // Predicated region
    $region2: #{tpu_custom_call.1} parent=1 // pred_check
      _
    $region3: #{tpu_custom_call.1} parent=1 // pred_check_branch
      %25 = sbr.rel (0) target = $region5
    $region4: #{tpu_custom_call.1} parent=1 // pred_region
      %s27 = ssub.s32 256, 256
      %28 = vsyncadd [#allocation3], %s27
      %s29 = sshll.u32 [#allocation2], 4
      %s30 = int_to_ptr.vmem [resolvable:$true] %s29
      %35 = dma.hbm_to_vmem [thread:$0]  %s0, 256, %s30, [#allocation3], 128, 128, 8
    $region5: #{tpu_custom_call.1} parent=1 // pred_fallthru
      _
    // Predicated region
    $region6: #{tpu_custom_call.1} parent=1 // pred_check
      _
    $region7: #{tpu_custom_call.1} parent=1 // pred_check_branch
      %37 = sbr.rel (0) target = $region9
    $region8: #{tpu_custom_call.1} parent=1 // pred_region
      %s39 = ssub.s32 544, 544
      %40 = vsyncadd [#allocation6], %s39
      %s42 = sshll.u32 [#allocation5], 4
      %s43 = int_to_ptr.vmem [resolvable:$true] %s42
      %45 = dma.hbm_to_vmem [thread:$0]  %s1, 544, %s43, [#allocation6]
    $region9: #{tpu_custom_call.1} parent=1 // pred_fallthru
      _
    // Predicated region
    $region10: #{tpu_custom_call.1} parent=1 // pred_check
      _
    $region11: #{tpu_custom_call.1} parent=1 // pred_check_branch
      %47 = sbr.rel (0) target = $region13
    $region12: #{tpu_custom_call.1} parent=1 // pred_region
      %s49 = ssub.s32 256, 256
      %50 = vsyncadd [#allocation6], %s49
      %s51 = sshll.u32 [#allocation7], 4
      %s52 = int_to_ptr.vmem [resolvable:$true] %s51
      %57 = dma.hbm_to_vmem [thread:$0]  %s2, 256, %s52, [#allocation6], 128, 128, 8
    $region13: #{tpu_custom_call.1} parent=1 // pred_fallthru
      _
    // Predicated region
    $region14: #{tpu_custom_call.1} parent=1 // pred_check
      _
    $region15: #{tpu_custom_call.1} parent=1 // pred_check_branch
      %59 = sbr.rel (0) target = $region17
    $region16: #{tpu_custom_call.1} parent=1 // pred_region
      _
    $region17: #{tpu_custom_call.1} parent=1 // pred_fallthru
      _
    // Predicated region
    $region18: #{tpu_custom_call.1} parent=1 // pred_check
      _
    $region19: #{tpu_custom_call.1} parent=1 // pred_check_branch
      %61 = sbr.rel (0) target = $region21
    $region20: #{tpu_custom_call.1} parent=1 // pred_region
      %s63 = ssub.s32 1024, 1024
      %64 = vsyncadd [#allocation9], %s63
      %s65 = sshll.u32 [#allocation8], 4
      %s66 = int_to_ptr.vmem [resolvable:$true] %s65
      %71 = dma.hbm_to_vmem [thread:$0]  %s4, 1024, %s66, [#allocation9], 64, 64, 4
    $region21: #{tpu_custom_call.1} parent=1 // pred_fallthru
      _
    // Predicated region
    $region22: #{tpu_custom_call.1} parent=1 // pred_check
      _
    $region23: #{tpu_custom_call.1} parent=1 // pred_check_branch
      %73 = sbr.rel (0) target = $region25
    $region24: #{tpu_custom_call.1} parent=1 // pred_region
      %s75 = ssub.s32 16384, 16384
      %76 = vsyncadd [#allocation9], %s75
      %s77 = sshll.u32 [#allocation10], 4
      %s78 = int_to_ptr.vmem [resolvable:$true] %s77
      %83 = dma.hbm_to_vmem [thread:$0]  %s5, 16384, %s78, [#allocation9], 1024, 1024, 64
    $region25: #{tpu_custom_call.1} parent=1 // pred_fallthru
      _
    // Predicated region
    $region26: #{tpu_custom_call.1} parent=1 // pred_check
      _
    $region27: #{tpu_custom_call.1} parent=1 // pred_check_branch
      %85 = sbr.rel (0) target = $region29
    $region28: #{tpu_custom_call.1} parent=1 // pred_region
      %s87 = ssub.s32 16384, 16384
      %88 = vsyncadd [#allocation12], %s87
      %s89 = sshll.u32 [#allocation11], 4
      %s90 = int_to_ptr.vmem [resolvable:$true] %s89
      %95 = dma.hbm_to_vmem [thread:$0]  %s6, 16384, %s90, [#allocation12], 64, 64, 4
    $region29: #{tpu_custom_call.1} parent=1 // pred_fallthru
      _
    // Predicated region
    $region30: #{tpu_custom_call.1} parent=1 // pred_check
      _
    $region31: #{tpu_custom_call.1} parent=1 // pred_check_branch
      %97 = sbr.rel (0) target = $region33
    $region32: #{tpu_custom_call.1} parent=1 // pred_region
      %s99 = ssub.s32 2048, 2048
      %100 = vsyncadd [#allocation12], %s99
      %s101 = sshll.u32 [#allocation13], 4
      %s102 = int_to_ptr.vmem [resolvable:$true] %s101
      %107 = dma.hbm_to_vmem [thread:$0]  %s7, 2048, %s102, [#allocation12], 128, 128, 8
    $region33: #{tpu_custom_call.1} parent=1 // pred_fallthru
      _
    // Predicated region
    $region34: #{tpu_custom_call.1} parent=1 // pred_check
      _
    $region35: #{tpu_custom_call.1} parent=1 // pred_check_branch
      %109 = sbr.rel (0) target = $region37
    $region36: #{tpu_custom_call.1} parent=1 // pred_region
      _
    $region37: #{tpu_custom_call.1} parent=1 // pred_fallthru
      _
    // Predicated region
    $region38: #{tpu_custom_call.1} parent=1 // pred_check
      _
    $region39: #{tpu_custom_call.1} parent=1 // pred_check_branch
      %111 = sbr.rel (0) target = $region41
    $region40: #{tpu_custom_call.1} parent=1 // pred_region
      %s113 = ssub.s32 1024, 1024
      %114 = vsyncadd [#allocation15], %s113
      %s115 = sshll.u32 [#allocation14], 4
      %s116 = int_to_ptr.vmem [resolvable:$true] %s115
      %121 = dma.hbm_to_vmem [thread:$0]  %s9, 1024, %s116, [#allocation15], 128, 128, 8
    $region41: #{tpu_custom_call.1} parent=1 // pred_fallthru
      _
    // Predicated region
    $region42: #{tpu_custom_call.1} parent=1 // pred_check
      _
    $region43: #{tpu_custom_call.1} parent=1 // pred_check_branch
      %123 = sbr.rel (0) target = $region45
    $region44: #{tpu_custom_call.1} parent=1 // pred_region
      %s125 = ssub.s32 2048, 2048
      %126 = vsyncadd [#allocation15], %s125
      %s127 = sshll.u32 [#allocation16], 4
      %s128 = int_to_ptr.vmem [resolvable:$true] %s127
      %133 = dma.hbm_to_vmem [thread:$0]  %s10, 2048, %s128, [#allocation15], 64, 64, 4
    $region45: #{tpu_custom_call.1} parent=1 // pred_fallthru
      _
    // Predicated region
    $region46: #{tpu_custom_call.1} parent=1 // pred_check
      _
    $region47: #{tpu_custom_call.1} parent=1 // pred_check_branch
      %135 = sbr.rel (0) target = $region49
    $region48: #{tpu_custom_call.1} parent=1 // pred_region
      %s137 = ssub.s32 1024, 1024
      %138 = vsyncadd [#allocation18], %s137
      %s139 = sshll.u32 [#allocation17], 4
      %s140 = int_to_ptr.vmem [resolvable:$true] %s139
      %145 = dma.hbm_to_vmem [thread:$0]  %s11, 1024, %s140, [#allocation18], 64, 64, 4
    $region49: #{tpu_custom_call.1} parent=1 // pred_fallthru
      _
    // Predicated region
    $region50: #{tpu_custom_call.1} parent=1 // pred_check
      _
    $region51: #{tpu_custom_call.1} parent=1 // pred_check_branch
      %147 = sbr.rel (0) target = $region53
    $region52: #{tpu_custom_call.1} parent=1 // pred_region
      %148 = dma.done [#allocation3], 256
    $region53: #{tpu_custom_call.1} parent=1 // pred_fallthru
      _
    // Predicated region
    $region54: #{tpu_custom_call.1} parent=1 // pred_check
      _
    $region55: #{tpu_custom_call.1} parent=1 // pred_check_branch
      %150 = sbr.rel (0) target = $region57
    $region56: #{tpu_custom_call.1} parent=1 // pred_region
      %151 = dma.done [#allocation6], 544
    $region57: #{tpu_custom_call.1} parent=1 // pred_fallthru
      _
    // Predicated region
    $region58: #{tpu_custom_call.1} parent=1 // pred_check
      _
    $region59: #{tpu_custom_call.1} parent=1 // pred_check_branch
      %153 = sbr.rel (0) target = $region61
    $region60: #{tpu_custom_call.1} parent=1 // pred_region
      %154 = dma.done [#allocation6], 256
    $region61: #{tpu_custom_call.1} parent=1 // pred_fallthru
      _
    // Predicated region
    $region62: #{tpu_custom_call.1} parent=1 // pred_check
      _
    $region63: #{tpu_custom_call.1} parent=1 // pred_check_branch
      %156 = sbr.rel (0) target = $region65
    $region64: #{tpu_custom_call.1} parent=1 // pred_region
      %157 = dma.done [#allocation9], 1024
    $region65: #{tpu_custom_call.1} parent=1 // pred_fallthru
      _
    // Predicated region
    $region66: #{tpu_custom_call.1} parent=1 // pred_check
      _
    $region67: #{tpu_custom_call.1} parent=1 // pred_check_branch
      %159 = sbr.rel (0) target = $region69
    $region68: #{tpu_custom_call.1} parent=1 // pred_region
      %160 = dma.done [#allocation9], 16384
    $region69: #{tpu_custom_call.1} parent=1 // pred_fallthru
      _
    // Predicated region
    $region70: #{tpu_custom_call.1} parent=1 // pred_check
      _
    $region71: #{tpu_custom_call.1} parent=1 // pred_check_branch
      %162 = sbr.rel (0) target = $region73
    $region72: #{tpu_custom_call.1} parent=1 // pred_region
      %163 = dma.done [#allocation12], 16384
    $region73: #{tpu_custom_call.1} parent=1 // pred_fallthru
      _
    // Predicated region
    $region74: #{tpu_custom_call.1} parent=1 // pred_check
      _
    $region75: #{tpu_custom_call.1} parent=1 // pred_check_branch
      %165 = sbr.rel (0) target = $region77
    $region76: #{tpu_custom_call.1} parent=1 // pred_region
      %166 = dma.done [#allocation12], 2048
    $region77: #{tpu_custom_call.1} parent=1 // pred_fallthru
      _
    // Predicated region
    $region78: #{tpu_custom_call.1} parent=1 // pred_check
      _
    $region79: #{tpu_custom_call.1} parent=1 // pred_check_branch
      %168 = sbr.rel (0) target = $region81
    $region80: #{tpu_custom_call.1} parent=1 // pred_region
      %169 = dma.done [#allocation15], 1024
    $region81: #{tpu_custom_call.1} parent=1 // pred_fallthru
      _
    // Predicated region
    $region82: #{tpu_custom_call.1} parent=1 // pred_check
      _
    $region83: #{tpu_custom_call.1} parent=1 // pred_check_branch
      %171 = sbr.rel (0) target = $region85
    $region84: #{tpu_custom_call.1} parent=1 // pred_region
      %172 = dma.done [#allocation15], 2048
    $region85: #{tpu_custom_call.1} parent=1 // pred_fallthru
      _
    // Predicated region
    $region86: #{tpu_custom_call.1} parent=1 // pred_check
      _
    $region87: #{tpu_custom_call.1} parent=1 // pred_check_branch
      %174 = sbr.rel (0) target = $region89
    $region88: #{tpu_custom_call.1} parent=1 // pred_region
      %175 = dma.done [#allocation18], 1024
    $region89: #{tpu_custom_call.1} parent=1 // pred_fallthru
      _
    %v177 = vld [vmem:[#allocation2] sm:$0xff]
    %v178 = vld [vmem:[#allocation2 + $0x8] sm:$0xff]
    %v179 = vld [vmem:[#allocation7] sm:$0xff]
    %v180 = vld [vmem:[#allocation7 + $0x8] sm:$0xff]
    %v181 = vld [vmem:[#allocation5] sm:$0x1]
    %v182 = vld [vmem:[#allocation5 + $0x1] sm:$0x1]
    %183 = vadd.xlane.f32.xlu0 %v177
    %v184 = vpop.xlane.xlu0 %183
    %185 = vadd.xlane.f32.xlu0 %v178
    %v186 = vpop.xlane.xlu0 %185
    %v187 = vrcp.pop 128.0
    %v188 = vmul.f32 %v184, %v187
    %v189 = vmul.f32 %v186, %v187
    %v190 = vsub.f32 %v177, %v188
    %v191 = vsub.f32 %v178, %v189
    %v192 = vmul.f32 %v190, %v190
    %v193 = vmul.f32 %v191, %v191
    %194 = vadd.xlane.f32.xlu0 %v192
    %v195 = vpop.xlane.xlu0 %194
    %196 = vadd.xlane.f32.xlu0 %v193
    %v197 = vpop.xlane.xlu0 %196
    %v198 = vmul.f32 %v195, %v187
    %v199 = vmul.f32 %v197, %v187
    %v200 = vadd.f32 %v198, 1e-05
    %v201 = vadd.f32 %v199, 1e-05
    %v202 = vrsqrt.pop %v200
    %v203 = vrsqrt.pop %v201
    %v204 = vmul.f32 %v190, %v202
    %v205 = vmul.f32 %v191, %v203
    %v207 = vlaneseq
    %v208 = vshrl.u32 %v207, 7
    %v209 = vsub.s32 0, %v208
    %v210 = vrot.slane %v181, %v209
    %v212 = vmul.f32 %v204, %v210
    %v213 = vmul.f32 %v205, %v210
    %v215 = vlaneseq
    %v216 = vshrl.u32 %v215, 7
    %v217 = vsub.s32 0, %v216
    %v218 = vrot.slane %v182, %v217
    %v220 = vadd.f32 %v212, %v218
    %v221 = vadd.f32 %v213, %v218
    %v222 = vpack.c.bf16 %v221, %v220
    %v223 = vld [vmem:[%s3] sm:$0xff]
    %v224 = vld [vmem:[%s3 + $0x8] sm:$0xf]
    %v225 = vld [vmem:[%s3 + $0xc] sm:$0xff]
    %v226 = vld [vmem:[%s3 + $0x14] sm:$0xf]
    %v227 = vld [vmem:[%s3 + $0x18] sm:$0xff]
    %v228 = vld [vmem:[%s3 + $0x20] sm:$0xf]
    %v229 = vld [vmem:[%s3 + $0x24] sm:$0xff]
    %v230 = vld [vmem:[%s3 + $0x2c] sm:$0xf]
    %v231 = vld [vmem:[%s3 + $0x30] sm:$0xff]
    %v232 = vld [vmem:[%s3 + $0x38] sm:$0xf]
    %v233 = vld [vmem:[%s3 + $0x3c] sm:$0xff]
    %v234 = vld [vmem:[%s3 + $0x44] sm:$0xf]
    %v235 = vld [vmem:[%s3 + $0x48] sm:$0xff]
    %v236 = vld [vmem:[%s3 + $0x50] sm:$0xf]
    %v237 = vld [vmem:[%s3 + $0x54] sm:$0xff]
    %v238 = vld [vmem:[%s3 + $0x5c] sm:$0xf]
    %v239 = vld [vmem:[%s3 + $0x60] sm:$0xff]
    %v240 = vld [vmem:[%s3 + $0x68] sm:$0xf]
    %v241 = vld [vmem:[%s3 + $0x6c] sm:$0xff]
    %v242 = vld [vmem:[%s3 + $0x74] sm:$0xf]
    %v243 = vld [vmem:[%s3 + $0x78] sm:$0xff]
    %v244 = vld [vmem:[%s3 + $0x80] sm:$0xf]
    %v245 = vld [vmem:[%s3 + $0x84] sm:$0xff]
    %v246 = vld [vmem:[%s3 + $0x8c] sm:$0xf]
    %v247 = vld [vmem:[%s3 + $0x90] sm:$0xff]
    %v248 = vld [vmem:[%s3 + $0x98] sm:$0xf]
    %v249 = vld [vmem:[%s3 + $0x9c] sm:$0xff]
    %v250 = vld [vmem:[%s3 + $0xa4] sm:$0xf]
    %v251 = vld [vmem:[%s3 + $0xa8] sm:$0xff]
    %v252 = vld [vmem:[%s3 + $0xb0] sm:$0xf]
    %v253 = vld [vmem:[%s3 + $0xb4] sm:$0xff]
    %v254 = vld [vmem:[%s3 + $0xbc] sm:$0xf]
    %v255 = vld [vmem:[#allocation5 + $0xa] sm:$0x7]
    %v257 = vlaneseq
    %v258 = vshrl.u32 %v257, 7
    %v259 = vsub.s32 0, %v258
    %v260 = vrot.slane %v255, %v259
    %v261 = vlaneseq
    %v262 = vshrl.u32 %v261, 7
    %v263 = vsub.s32 1, %v262
    %v264 = vrot.slane %v255, %v263
    %v265 = vlaneseq
    %v266 = vshrl.u32 %v265, 7
    %v267 = vsub.s32 2, %v266
    %v268 = vrot.slane %v255, %v267
    %v304 = vunpack.c.l.b16 %v223
    %v305 = vunpack.c.h.b16 %v223
    %v306 = vunpack.c.l.b16 %v224
    %v307 = vunpack.c.l.b16 %v225
    %v308 = vunpack.c.h.b16 %v225
    %v309 = vunpack.c.l.b16 %v226
    %v310 = vunpack.c.l.b16 %v227
    %v311 = vunpack.c.h.b16 %v227
    %v312 = vunpack.c.l.b16 %v228
    %v313 = vunpack.c.l.b16 %v229
    %v314 = vunpack.c.h.b16 %v229
    %v315 = vunpack.c.l.b16 %v230
    %v316 = vunpack.c.l.b16 %v231
    %v317 = vunpack.c.h.b16 %v231
    %v318 = vunpack.c.l.b16 %v232
    %v319 = vunpack.c.l.b16 %v233
    %v320 = vunpack.c.h.b16 %v233
    %v321 = vunpack.c.l.b16 %v234
    %v322 = vunpack.c.l.b16 %v235
    %v323 = vunpack.c.h.b16 %v235
    %v324 = vunpack.c.l.b16 %v236
    %v325 = vunpack.c.l.b16 %v237
    %v326 = vunpack.c.h.b16 %v237
    %v327 = vunpack.c.l.b16 %v238
    %v328 = vunpack.c.l.b16 %v239
    %v329 = vunpack.c.h.b16 %v239
    %v330 = vunpack.c.l.b16 %v240
    %v331 = vunpack.c.l.b16 %v241
    %v332 = vunpack.c.h.b16 %v241
    %v333 = vunpack.c.l.b16 %v242
    %v334 = vunpack.c.l.b16 %v243
    %v335 = vunpack.c.h.b16 %v243
    %v336 = vunpack.c.l.b16 %v244
    %v337 = vunpack.c.l.b16 %v245
    %v338 = vunpack.c.h.b16 %v245
    %v339 = vunpack.c.l.b16 %v246
    %v340 = vunpack.c.l.b16 %v247
    %v341 = vunpack.c.h.b16 %v247
    %v342 = vunpack.c.l.b16 %v248
    %v343 = vunpack.c.l.b16 %v249
    %v344 = vunpack.c.h.b16 %v249
    %v345 = vunpack.c.l.b16 %v250
    %v346 = vunpack.c.l.b16 %v251
    %v347 = vunpack.c.h.b16 %v251
    %v348 = vunpack.c.l.b16 %v252
    %v349 = vunpack.c.l.b16 %v253
    %v350 = vunpack.c.h.b16 %v253
    %v351 = vunpack.c.l.b16 %v254
    %v352 = vpack.c.b16 %v307, %v304
    %v353 = vpack.c.b16 %v308, %v305
    %v354 = vpack.c.b16 %v309, %v306
    %v355 = vpack.c.b16 %v313, %v310
    %v356 = vpack.c.b16 %v314, %v311
    %v357 = vpack.c.b16 %v315, %v312
    %v358 = vpack.c.b16 %v319, %v316
    %v359 = vpack.c.b16 %v320, %v317
    %v360 = vpack.c.b16 %v321, %v318
    %v361 = vpack.c.b16 %v325, %v322
    %v362 = vpack.c.b16 %v326, %v323
    %v363 = vpack.c.b16 %v327, %v324
    %v364 = vpack.c.b16 %v331, %v328
    %v365 = vpack.c.b16 %v332, %v329
    %v366 = vpack.c.b16 %v333, %v330
    %v367 = vpack.c.b16 %v337, %v334
    %v368 = vpack.c.b16 %v338, %v335
    %v369 = vpack.c.b16 %v339, %v336
    %v370 = vpack.c.b16 %v343, %v340
    %v371 = vpack.c.b16 %v344, %v341
    %v372 = vpack.c.b16 %v345, %v342
    %v373 = vpack.c.b16 %v349, %v346
    %v374 = vpack.c.b16 %v350, %v347
    %v375 = vpack.c.b16 %v351, %v348
    %400 = vmatprep.subr.bf16.mxu0 %v353
    %401 = vmatpush1.bf16.msra.mxu0 %v352
    %402 = vmatprep.subr.bf16.mxu0 %v356
    %403 = vmatpush1.bf16.msra.mxu0 %v355
    %404 = vmatprep.subr.bf16.mxu0 %v359
    %405 = vmatpush1.bf16.msra.mxu0 %v358
    %406 = vmatprep.subr.bf16.mxu0 %v362
    %407 = vmatpush1.bf16.msra.mxu0 %v361
    %408 = vmatprep.subr.bf16.mxu0 %v365
    %409 = vmatpush1.bf16.msra.mxu0 %v364
    %410 = vmatprep.subr.bf16.mxu0 %v368
    %411 = vmatpush1.bf16.msra.mxu0 %v367
    %412 = vmatprep.subr.bf16.mxu0 %v371
    %413 = vmatpush1.bf16.msra.mxu0 %v370
    %414 = vmatprep.subr.bf16.mxu0 %v374
    %415 = vmatpush1.bf16.msra.mxu0 %v373
    %416 = vmatprep.subr.bf16.mxu0 0
    %417 = vmatpush1.bf16.msra.mxu0 0
    %418 = vmatprep.subr.bf16.mxu0 0
    %419 = vmatpush1.bf16.msra.mxu0 0
    %420 = vmatprep.subr.bf16.mxu0 0
    %421 = vmatpush1.bf16.msra.mxu0 0
    %422 = vmatprep.subr.bf16.mxu0 0
    %423 = vmatpush1.bf16.msra.mxu0 0
    %424 = vmatprep.subr.bf16.mxu0 0
    %425 = vmatpush1.bf16.msra.mxu0 0
    %426 = vmatprep.subr.bf16.mxu0 0
    %427 = vmatpush1.bf16.msra.mxu0 0
    %428 = vmatprep.subr.bf16.mxu0 0
    %429 = vmatpush1.bf16.msra.mxu0 0
    %430 = vmatprep.subr.bf16.mxu0 0
    %431 = vmatpush1.bf16.msra.mxu0 0
    %432 = vmatprep.mubr.bf16.mxu0 0
    %433 = vmatmul.mubr.bf16.gmra.mrb[0].mxu0 %v222
    %v434 = vpop.f32.mrb[0].mxu0
    %v435 = vadd.f32 %v260, %v434
    %v436 = vpop.f32.mrb[0].mxu0
    %v437 = vadd.f32 %v264, %v436
    %v438 = vpop.f32.mrb[0].mxu0
    %v439 = vadd.f32 %v260, %v438
    %v440 = vpop.f32.mrb[0].mxu0
    %v441 = vadd.f32 %v264, %v440
    %442 = vdwg.mxu0
    %443 = vmatprep.subr.bf16.mxu0 0
    %444 = vmatpush1.bf16.msra.mxu0 %v354
    %445 = vmatprep.subr.bf16.mxu0 0
    %446 = vmatpush1.bf16.msra.mxu0 %v357
    %447 = vmatprep.subr.bf16.mxu0 0
    %448 = vmatpush1.bf16.msra.mxu0 %v360
    %449 = vmatprep.subr.bf16.mxu0 0
    %450 = vmatpush1.bf16.msra.mxu0 %v363
    %451 = vmatprep.subr.bf16.mxu0 0
    %452 = vmatpush1.bf16.msra.mxu0 %v366
    %453 = vmatprep.subr.bf16.mxu0 0
    %454 = vmatpush1.bf16.msra.mxu0 %v369
    %455 = vmatprep.subr.bf16.mxu0 0
    %456 = vmatpush1.bf16.msra.mxu0 %v372
    %457 = vmatprep.subr.bf16.mxu0 0
    %458 = vmatpush1.bf16.msra.mxu0 %v375
    %459 = vmatprep.subr.bf16.mxu0 0
    %460 = vmatpush1.bf16.msra.mxu0 0
    %461 = vmatprep.subr.bf16.mxu0 0
    %462 = vmatpush1.bf16.msra.mxu0 0
    %463 = vmatprep.subr.bf16.mxu0 0
    %464 = vmatpush1.bf16.msra.mxu0 0
    %465 = vmatprep.subr.bf16.mxu0 0
    %466 = vmatpush1.bf16.msra.mxu0 0
    %467 = vmatprep.subr.bf16.mxu0 0
    %468 = vmatpush1.bf16.msra.mxu0 0
    %469 = vmatprep.subr.bf16.mxu0 0
    %470 = vmatpush1.bf16.msra.mxu0 0
    %471 = vmatprep.subr.bf16.mxu0 0
    %472 = vmatpush1.bf16.msra.mxu0 0
    %473 = vmatprep.subr.bf16.mxu0 0
    %474 = vmatpush1.bf16.msra.mxu0 0
    %475 = vmatprep.mubr.bf16.mxu0 0
    %476 = vmatmul.mubr.bf16.gmra.mrb[0].mxu0 %v222
    %v477 = vpop.f32.mrb[0].mxu0
    %v478 = vadd.f32 %v268, %v477
    %v479 = vpop.f32.mrb[0].mxu0
    %v480 = vpop.f32.mrb[0].mxu0
    %v481 = vadd.f32 %v268, %v480
    %v482 = vpop.f32.mrb[0].mxu0
    %483 = vdwg.mxu0
    %v484 = vmul.f32 %v435, 0.25
    %v485 = vmul.f32 %v439, 0.25
    %vm486 = vcmask 130048
    %v488 = vsel %vm486, %v484, 0
    %v491 = vsel %vm486, %v485, 0
    %v494 = vsel %vm486, %v437, 0
    %v497 = vsel %vm486, %v441, 0
    %499 = vmatprep.subr.mxu0 0.0
    %500 = vmatpush1.xpose.msra.mxu0 %v494
    %501 = vmatprep.subr.mxu0 0.0
    %502 = vmatpush1.xpose.msra.mxu0 %v497
    %503 = vmatprep.subr.mxu0 0.0
    %504 = vmatpush1.xpose.msra.mxu0 0.0
    %505 = vmatprep.subr.mxu0 0.0
    %506 = vmatpush1.xpose.msra.mxu0 0.0
    %507 = vmatprep.subr.mxu0 0.0
    %508 = vmatpush1.xpose.msra.mxu0 0.0
    %509 = vmatprep.subr.mxu0 0.0
    %510 = vmatpush1.xpose.msra.mxu0 0.0
    %511 = vmatprep.subr.mxu0 0.0
    %512 = vmatpush1.xpose.msra.mxu0 0.0
    %513 = vmatprep.subr.mxu0 0.0
    %514 = vmatpush1.xpose.msra.mxu0 0.0
    %515 = vmatprep.subr.mxu0 0.0
    %516 = vmatpush1.xpose.msra.mxu0 0.0
    %517 = vmatprep.subr.mxu0 0.0
    %518 = vmatpush1.xpose.msra.mxu0 0.0
    %519 = vmatprep.subr.mxu0 0.0
    %520 = vmatpush1.xpose.msra.mxu0 0.0
    %521 = vmatprep.subr.mxu0 0.0
    %522 = vmatpush1.xpose.msra.mxu0 0.0
    %523 = vmatprep.subr.mxu0 0.0
    %524 = vmatpush1.xpose.msra.mxu0 0.0
    %525 = vmatprep.subr.mxu0 0.0
    %526 = vmatpush1.xpose.msra.mxu0 0.0
    %527 = vmatprep.subr.mxu0 0.0
    %528 = vmatpush1.xpose.msra.mxu0 0.0
    %529 = vmatprep.subr.mxu0 0.0
    %530 = vmatpush1.xpose.msra.mxu0 0.0
    %531 = vmatprep.subr.mxu0 0.0
    %532 = vmatpush1.xpose.msra.mxu0 0.0
    %533 = vmatprep.subr.mxu0 0.0
    %534 = vmatpush1.xpose.msra.mxu0 0.0
    %535 = vmatprep.subr.mxu0 0.0
    %536 = vmatpush1.xpose.msra.mxu0 0.0
    %537 = vmatprep.subr.mxu0 0.0
    %538 = vmatpush1.xpose.msra.mxu0 0.0
    %539 = vmatprep.subr.mxu0 0.0
    %540 = vmatpush1.xpose.msra.mxu0 0.0
    %541 = vmatprep.subr.mxu0 0.0
    %542 = vmatpush1.xpose.msra.mxu0 0.0
    %543 = vmatprep.subr.mxu0 0.0
    %544 = vmatpush1.xpose.msra.mxu0 0.0
    %545 = vmatprep.subr.mxu0 0.0
    %546 = vmatpush1.xpose.msra.mxu0 0.0
    %547 = vmatprep.subr.mxu0 0.0
    %548 = vmatpush1.xpose.msra.mxu0 0.0
    %549 = vmatprep.subr.mxu0 0.0
    %550 = vmatpush1.xpose.msra.mxu0 0.0
    %551 = vmatprep.subr.mxu0 0.0
    %552 = vmatpush1.xpose.msra.mxu0 0.0
    %553 = vmatprep.subr.mxu0 0.0
    %554 = vmatpush1.xpose.msra.mxu0 0.0
    %555 = vmatprep.subr.mxu0 0.0
    %556 = vmatpush1.xpose.msra.mxu0 0.0
    %557 = vmatprep.subr.mxu0 0.0
    %558 = vmatpush1.xpose.msra.mxu0 0.0
    %559 = vmatprep.subr.mxu0 0.0
    %560 = vmatpush1.xpose.msra.mxu0 0.0
    %561 = vmatprep.subr.mxu0 0.0
    %562 = vmatpush1.xpose.msra.mxu0 0.0
    %563 = vmatprep.mubr.f32.mxu0 0.0
    %564 = vmatmul.mubr.f32.gmra.mrb[0].mxu0 %v488
    %v565 = vpop.f32.mrb[0].mxu0
    %v566 = vadd.f32 %v179, %v565
    %v567 = vpop.f32.mrb[0].mxu0
    %568 = vmatprep.mubr.f32.mxu0 0.0
    %569 = vmatmul.mubr.f32.gmra.mrb[0].mxu0 %v491
    %v570 = vpop.f32.mrb[0].mxu0
    %v571 = vadd.f32 %v180, %v570
    %v572 = vpop.f32.mrb[0].mxu0
    %573 = vdwg.mxu0
    %v574 = vsel %vm486, %v566, -inf
    %575 = vmax.xlane.f32.xlu0 %v574
    %v576 = vpop.xlane.xlu0 %575
    %v577 = vsel %vm486, %v571, -inf
    %578 = vmax.xlane.f32.xlu0 %v577
    %v579 = vpop.xlane.xlu0 %578
    %v580 = vsub.f32 %v566, %v576
    %v581 = vsub.f32 %v571, %v579
    %v582 = vmul.f32 %v580, 1.442695
    %v583 = vpow.pop %v582
    %v584 = vmul.f32 %v581, 1.442695
    %v585 = vpow.pop %v584
    %v586 = vsel %vm486, %v583, 0.0
    %587 = vadd.xlane.f32.xlu0 %v586
    %v588 = vpop.xlane.xlu0 %587
    %v589 = vsel %vm486, %v585, 0.0
    %590 = vadd.xlane.f32.xlu0 %v589
    %v591 = vpop.xlane.xlu0 %590
    %v592 = vrcp.pop %v588
    %v593 = vrcp.pop %v591
    %v594 = vmul.f32 %v583, %v592
    %v595 = vmul.f32 %v585, %v593
    %v597 = vsel %vm486, %v594, 0
    %v600 = vsel %vm486, %v595, 0
    %602 = vmatprep.subr.mxu0 0.0
    %603 = vmatpush1.msra.mxu0 %v478
    %604 = vmatprep.subr.mxu0 0.0
    %605 = vmatpush1.msra.mxu0 %v481
    %606 = vmatprep.subr.mxu0 0.0
    %607 = vmatpush1.msra.mxu0 0.0
    %608 = vmatprep.subr.mxu0 0.0
    %609 = vmatpush1.msra.mxu0 0.0
    %610 = vmatprep.subr.mxu0 0.0
    %611 = vmatpush1.msra.mxu0 0.0
    %612 = vmatprep.subr.mxu0 0.0
    %613 = vmatpush1.msra.mxu0 0.0
    %614 = vmatprep.subr.mxu0 0.0
    %615 = vmatpush1.msra.mxu0 0.0
    %616 = vmatprep.subr.mxu0 0.0
    %617 = vmatpush1.msra.mxu0 0.0
    %618 = vmatprep.subr.mxu0 0.0
    %619 = vmatpush1.msra.mxu0 0.0
    %620 = vmatprep.subr.mxu0 0.0
    %621 = vmatpush1.msra.mxu0 0.0
    %622 = vmatprep.subr.mxu0 0.0
    %623 = vmatpush1.msra.mxu0 0.0
    %624 = vmatprep.subr.mxu0 0.0
    %625 = vmatpush1.msra.mxu0 0.0
    %626 = vmatprep.subr.mxu0 0.0
    %627 = vmatpush1.msra.mxu0 0.0
    %628 = vmatprep.subr.mxu0 0.0
    %629 = vmatpush1.msra.mxu0 0.0
    %630 = vmatprep.subr.mxu0 0.0
    %631 = vmatpush1.msra.mxu0 0.0
    %632 = vmatprep.subr.mxu0 0.0
    %633 = vmatpush1.msra.mxu0 0.0
    %634 = vmatprep.subr.mxu0 0.0
    %635 = vmatpush1.msra.mxu0 0.0
    %636 = vmatprep.subr.mxu0 0.0
    %637 = vmatpush1.msra.mxu0 0.0
    %638 = vmatprep.subr.mxu0 0.0
    %639 = vmatpush1.msra.mxu0 0.0
    %640 = vmatprep.subr.mxu0 0.0
    %641 = vmatpush1.msra.mxu0 0.0
    %642 = vmatprep.subr.mxu0 0.0
    %643 = vmatpush1.msra.mxu0 0.0
    %644 = vmatprep.subr.mxu0 0.0
    %645 = vmatpush1.msra.mxu0 0.0
    %646 = vmatprep.subr.mxu0 0.0
    %647 = vmatpush1.msra.mxu0 0.0
    %648 = vmatprep.subr.mxu0 0.0
    %649 = vmatpush1.msra.mxu0 0.0
    %650 = vmatprep.subr.mxu0 0.0
    %651 = vmatpush1.msra.mxu0 0.0
    %652 = vmatprep.subr.mxu0 0.0
    %653 = vmatpush1.msra.mxu0 0.0
    %654 = vmatprep.subr.mxu0 0.0
    %655 = vmatpush1.msra.mxu0 0.0
    %656 = vmatprep.subr.mxu0 0.0
    %657 = vmatpush1.msra.mxu0 0.0
    %658 = vmatprep.subr.mxu0 0.0
    %659 = vmatpush1.msra.mxu0 0.0
    %660 = vmatprep.subr.mxu0 0.0
    %661 = vmatpush1.msra.mxu0 0.0
    %662 = vmatprep.subr.mxu0 0.0
    %663 = vmatpush1.msra.mxu0 0.0
    %664 = vmatprep.subr.mxu0 0.0
    %665 = vmatpush1.msra.mxu0 0.0
    %666 = vmatprep.mubr.f32.mxu0 0.0
    %667 = vmatmul.mubr.f32.gmra.mrb[0].mxu0 %v597
    %v668 = vpop.f32.mrb[0].mxu0
    %v669 = vadd.f32 0.0, %v668
    %v670 = vpop.f32.mrb[0].mxu0
    %671 = vmatprep.mubr.f32.mxu0 0.0
    %672 = vmatmul.mubr.f32.gmra.mrb[0].mxu0 %v600
    %v673 = vpop.f32.mrb[0].mxu0
    %v674 = vadd.f32 0.0, %v673
    %v675 = vpop.f32.mrb[0].mxu0
    %676 = vdwg.mxu0
    %v677 = vpack.c.bf16 %v674, %v669
    %v678 = vld [vmem:[#allocation8] sm:$0xf]
    %v679 = vld [vmem:[#allocation8 + $0x4] sm:$0xf]
    %680 = vrot.lane.b32.xlu0 %v484, 112
    %v681 = vpop.permute.xlu0 %680
    %682 = vrot.lane.b32.xlu0 %v485, 112
    %v683 = vpop.permute.xlu0 %682
    %684 = vrot.lane.b32.xlu0 %v437, 112
    %v685 = vpop.permute.xlu0 %684
    %686 = vrot.lane.b32.xlu0 %v441, 112
    %v687 = vpop.permute.xlu0 %686
    %v688 = vsel %vm486, %v681, 0
    %v690 = vsel %vm486, %v683, 0
    %v692 = vsel %vm486, %v685, 0
    %v694 = vsel %vm486, %v687, 0
    %696 = vmatprep.subr.mxu0 0.0
    %697 = vmatpush1.xpose.msra.mxu0 %v692
    %698 = vmatprep.subr.mxu0 0.0
    %699 = vmatpush1.xpose.msra.mxu0 %v694
    %700 = vmatprep.subr.mxu0 0.0
    %701 = vmatpush1.xpose.msra.mxu0 0.0
    %702 = vmatprep.subr.mxu0 0.0
    %703 = vmatpush1.xpose.msra.mxu0 0.0
    %704 = vmatprep.subr.mxu0 0.0
    %705 = vmatpush1.xpose.msra.mxu0 0.0
    %706 = vmatprep.subr.mxu0 0.0
    %707 = vmatpush1.xpose.msra.mxu0 0.0
    %708 = vmatprep.subr.mxu0 0.0
    %709 = vmatpush1.xpose.msra.mxu0 0.0
    %710 = vmatprep.subr.mxu0 0.0
    %711 = vmatpush1.xpose.msra.mxu0 0.0
    %712 = vmatprep.subr.mxu0 0.0
    %713 = vmatpush1.xpose.msra.mxu0 0.0
    %714 = vmatprep.subr.mxu0 0.0
    %715 = vmatpush1.xpose.msra.mxu0 0.0
    %716 = vmatprep.subr.mxu0 0.0
    %717 = vmatpush1.xpose.msra.mxu0 0.0
    %718 = vmatprep.subr.mxu0 0.0
    %719 = vmatpush1.xpose.msra.mxu0 0.0
    %720 = vmatprep.subr.mxu0 0.0
    %721 = vmatpush1.xpose.msra.mxu0 0.0
    %722 = vmatprep.subr.mxu0 0.0
    %723 = vmatpush1.xpose.msra.mxu0 0.0
    %724 = vmatprep.subr.mxu0 0.0
    %725 = vmatpush1.xpose.msra.mxu0 0.0
    %726 = vmatprep.subr.mxu0 0.0
    %727 = vmatpush1.xpose.msra.mxu0 0.0
    %728 = vmatprep.subr.mxu0 0.0
    %729 = vmatpush1.xpose.msra.mxu0 0.0
    %730 = vmatprep.subr.mxu0 0.0
    %731 = vmatpush1.xpose.msra.mxu0 0.0
    %732 = vmatprep.subr.mxu0 0.0
    %733 = vmatpush1.xpose.msra.mxu0 0.0
    %734 = vmatprep.subr.mxu0 0.0
    %735 = vmatpush1.xpose.msra.mxu0 0.0
    %736 = vmatprep.subr.mxu0 0.0
    %737 = vmatpush1.xpose.msra.mxu0 0.0
    %738 = vmatprep.subr.mxu0 0.0
    %739 = vmatpush1.xpose.msra.mxu0 0.0
    %740 = vmatprep.subr.mxu0 0.0
    %741 = vmatpush1.xpose.msra.mxu0 0.0
    %742 = vmatprep.subr.mxu0 0.0
    %743 = vmatpush1.xpose.msra.mxu0 0.0
    %744 = vmatprep.subr.mxu0 0.0
    %745 = vmatpush1.xpose.msra.mxu0 0.0
    %746 = vmatprep.subr.mxu0 0.0
    %747 = vmatpush1.xpose.msra.mxu0 0.0
    %748 = vmatprep.subr.mxu0 0.0
    %749 = vmatpush1.xpose.msra.mxu0 0.0
    %750 = vmatprep.subr.mxu0 0.0
    %751 = vmatpush1.xpose.msra.mxu0 0.0
    %752 = vmatprep.subr.mxu0 0.0
    %753 = vmatpush1.xpose.msra.mxu0 0.0
    %754 = vmatprep.subr.mxu0 0.0
    %755 = vmatpush1.xpose.msra.mxu0 0.0
    %756 = vmatprep.subr.mxu0 0.0
    %757 = vmatpush1.xpose.msra.mxu0 0.0
    %758 = vmatprep.subr.mxu0 0.0
    %759 = vmatpush1.xpose.msra.mxu0 0.0
    %760 = vmatprep.mubr.f32.mxu0 0.0
    %761 = vmatmul.mubr.f32.gmra.mrb[0].mxu0 %v688
    %v762 = vpop.f32.mrb[0].mxu0
    %v763 = vadd.f32 %v179, %v762
    %v764 = vpop.f32.mrb[0].mxu0
    %765 = vmatprep.mubr.f32.mxu0 0.0
    %766 = vmatmul.mubr.f32.gmra.mrb[0].mxu0 %v690
    %v767 = vpop.f32.mrb[0].mxu0
    %v768 = vadd.f32 %v180, %v767
    %v769 = vpop.f32.mrb[0].mxu0
    %770 = vdwg.mxu0
    %v771 = vsel %vm486, %v763, -inf
    %772 = vmax.xlane.f32.xlu0 %v771
    %v773 = vpop.xlane.xlu0 %772
    %v774 = vsel %vm486, %v768, -inf
    %775 = vmax.xlane.f32.xlu0 %v774
    %v776 = vpop.xlane.xlu0 %775
    %v777 = vsub.f32 %v763, %v773
    %v778 = vsub.f32 %v768, %v776
    %v779 = vmul.f32 %v777, 1.442695
    %v780 = vpow.pop %v779
    %v781 = vmul.f32 %v778, 1.442695
    %v782 = vpow.pop %v781
    %v783 = vsel %vm486, %v780, 0.0
    %784 = vadd.xlane.f32.xlu0 %v783
    %v785 = vpop.xlane.xlu0 %784
    %v786 = vsel %vm486, %v782, 0.0
    %787 = vadd.xlane.f32.xlu0 %v786
    %v788 = vpop.xlane.xlu0 %787
    %v789 = vrcp.pop %v785
    %v790 = vrcp.pop %v788
    %v791 = vmul.f32 %v780, %v789
    %v792 = vmul.f32 %v782, %v790
    %795 = vrot.lane.b32.xlu0 %v478, 112
    %v796 = vpop.permute.xlu0 %795
    %797 = vrot.lane.b32.xlu0 %v481, 112
    %v798 = vpop.permute.xlu0 %797
    %v802 = vsel %vm486, %v791, 0
    %v805 = vsel %vm486, %v792, 0
    %807 = vmatprep.subr.mxu0 0.0
    %808 = vmatpush1.msra.mxu0 %v796
    %809 = vmatprep.subr.mxu0 0.0
    %810 = vmatpush1.msra.mxu0 %v798
    %811 = vmatprep.subr.mxu0 0.0
    %812 = vmatpush1.msra.mxu0 0.0
    %813 = vmatprep.subr.mxu0 0.0
    %814 = vmatpush1.msra.mxu0 0.0
    %815 = vmatprep.subr.mxu0 0.0
    %816 = vmatpush1.msra.mxu0 0.0
    %817 = vmatprep.subr.mxu0 0.0
    %818 = vmatpush1.msra.mxu0 0.0
    %819 = vmatprep.subr.mxu0 0.0
    %820 = vmatpush1.msra.mxu0 0.0
    %821 = vmatprep.subr.mxu0 0.0
    %822 = vmatpush1.msra.mxu0 0.0
    %823 = vmatprep.subr.mxu0 0.0
    %824 = vmatpush1.msra.mxu0 0.0
    %825 = vmatprep.subr.mxu0 0.0
    %826 = vmatpush1.msra.mxu0 0.0
    %827 = vmatprep.subr.mxu0 0.0
    %828 = vmatpush1.msra.mxu0 0.0
    %829 = vmatprep.subr.mxu0 0.0
    %830 = vmatpush1.msra.mxu0 0.0
    %831 = vmatprep.subr.mxu0 0.0
    %832 = vmatpush1.msra.mxu0 0.0
    %833 = vmatprep.subr.mxu0 0.0
    %834 = vmatpush1.msra.mxu0 0.0
    %835 = vmatprep.subr.mxu0 0.0
    %836 = vmatpush1.msra.mxu0 0.0
    %837 = vmatprep.subr.mxu0 0.0
    %838 = vmatpush1.msra.mxu0 0.0
    %839 = vmatprep.subr.mxu0 0.0
    %840 = vmatpush1.msra.mxu0 0.0
    %841 = vmatprep.subr.mxu0 0.0
    %842 = vmatpush1.msra.mxu0 0.0
    %843 = vmatprep.subr.mxu0 0.0
    %844 = vmatpush1.msra.mxu0 0.0
    %845 = vmatprep.subr.mxu0 0.0
    %846 = vmatpush1.msra.mxu0 0.0
    %847 = vmatprep.subr.mxu0 0.0
    %848 = vmatpush1.msra.mxu0 0.0
    %849 = vmatprep.subr.mxu0 0.0
    %850 = vmatpush1.msra.mxu0 0.0
    %851 = vmatprep.subr.mxu0 0.0
    %852 = vmatpush1.msra.mxu0 0.0
    %853 = vmatprep.subr.mxu0 0.0
    %854 = vmatpush1.msra.mxu0 0.0
    %855 = vmatprep.subr.mxu0 0.0
    %856 = vmatpush1.msra.mxu0 0.0
    %857 = vmatprep.subr.mxu0 0.0
    %858 = vmatpush1.msra.mxu0 0.0
    %859 = vmatprep.subr.mxu0 0.0
    %860 = vmatpush1.msra.mxu0 0.0
    %861 = vmatprep.subr.mxu0 0.0
    %862 = vmatpush1.msra.mxu0 0.0
    %863 = vmatprep.subr.mxu0 0.0
    %864 = vmatpush1.msra.mxu0 0.0
    %865 = vmatprep.subr.mxu0 0.0
    %866 = vmatpush1.msra.mxu0 0.0
    %867 = vmatprep.subr.mxu0 0.0
    %868 = vmatpush1.msra.mxu0 0.0
    %869 = vmatprep.subr.mxu0 0.0
    %870 = vmatpush1.msra.mxu0 0.0
    %871 = vmatprep.mubr.f32.mxu0 0.0
    %872 = vmatmul.mubr.f32.gmra.mrb[0].mxu0 %v802
    %v873 = vpop.f32.mrb[0].mxu0
    %v874 = vadd.f32 0.0, %v873
    %v875 = vpop.f32.mrb[0].mxu0
    %876 = vmatprep.mubr.f32.mxu0 0.0
    %877 = vmatmul.mubr.f32.gmra.mrb[0].mxu0 %v805
    %v878 = vpop.f32.mrb[0].mxu0
    %v879 = vadd.f32 0.0, %v878
    %v880 = vpop.f32.mrb[0].mxu0
    %881 = vdwg.mxu0
    %v882 = vpack.c.bf16 %v879, %v874
    %s883 = scalar_lea.vmem [#allocation8], 8
    %v884 = vld [vmem:[%s883] sm:$0xf]
    %v885 = vld [vmem:[%s883 + $0x4] sm:$0xf]
    %v888 = vunpack.c.l.b16 %v884
    %v889 = vunpack.c.l.b16 %v885
    %v890 = vpack.c.b16 %v889, %v888
    %v893 = vsel %vm486, %v882, 0
    %895 = vmatprep.subr.bf16.mxu0 0
    %896 = vmatpush1.bf16.msra.mxu0 %v890
    %897 = vmatprep.subr.bf16.mxu0 0
    %898 = vmatpush1.bf16.msra.mxu0 0
    %899 = vmatprep.subr.bf16.mxu0 0
    %900 = vmatpush1.bf16.msra.mxu0 0
    %901 = vmatprep.subr.bf16.mxu0 0
    %902 = vmatpush1.bf16.msra.mxu0 0
    %903 = vmatprep.subr.bf16.mxu0 0
    %904 = vmatpush1.bf16.msra.mxu0 0
    %905 = vmatprep.subr.bf16.mxu0 0
    %906 = vmatpush1.bf16.msra.mxu0 0
    %907 = vmatprep.subr.bf16.mxu0 0
    %908 = vmatpush1.bf16.msra.mxu0 0
    %909 = vmatprep.subr.bf16.mxu0 0
    %910 = vmatpush1.bf16.msra.mxu0 0
    %911 = vmatprep.subr.bf16.mxu0 0
    %912 = vmatpush1.bf16.msra.mxu0 0
    %913 = vmatprep.subr.bf16.mxu0 0
    %914 = vmatpush1.bf16.msra.mxu0 0
    %915 = vmatprep.subr.bf16.mxu0 0
    %916 = vmatpush1.bf16.msra.mxu0 0
    %917 = vmatprep.subr.bf16.mxu0 0
    %918 = vmatpush1.bf16.msra.mxu0 0
    %919 = vmatprep.subr.bf16.mxu0 0
    %920 = vmatpush1.bf16.msra.mxu0 0
    %921 = vmatprep.subr.bf16.mxu0 0
    %922 = vmatpush1.bf16.msra.mxu0 0
    %923 = vmatprep.subr.bf16.mxu0 0
    %924 = vmatpush1.bf16.msra.mxu0 0
    %925 = vmatprep.subr.bf16.mxu0 0
    %926 = vmatpush1.bf16.msra.mxu0 0
    %927 = vmatprep.mubr.bf16.mxu0 0
    %928 = vmatmul.mubr.bf16.gmra.mrb[0].mxu0 %v893
    %v929 = vpop.f32.mrb[0].mxu0
    %v930 = vadd.f32 0.0, %v929
    %v931 = vpop.f32.mrb[0].mxu0
    %v932 = vpop.f32.mrb[0].mxu0
    %v933 = vadd.f32 0.0, %v932
    %v934 = vpop.f32.mrb[0].mxu0
    %935 = vdwg.mxu0
    %v938 = vunpack.c.l.b16 %v678
    %v939 = vunpack.c.l.b16 %v679
    %v940 = vpack.c.b16 %v939, %v938
    %v943 = vsel %vm486, %v677, 0
    %945 = vmatprep.subr.bf16.mxu0 0
    %946 = vmatpush1.bf16.msra.mxu0 %v940
    %947 = vmatprep.subr.bf16.mxu0 0
    %948 = vmatpush1.bf16.msra.mxu0 0
    %949 = vmatprep.subr.bf16.mxu0 0
    %950 = vmatpush1.bf16.msra.mxu0 0
    %951 = vmatprep.subr.bf16.mxu0 0
    %952 = vmatpush1.bf16.msra.mxu0 0
    %953 = vmatprep.subr.bf16.mxu0 0
    %954 = vmatpush1.bf16.msra.mxu0 0
    %955 = vmatprep.subr.bf16.mxu0 0
    %956 = vmatpush1.bf16.msra.mxu0 0
    %957 = vmatprep.subr.bf16.mxu0 0
    %958 = vmatpush1.bf16.msra.mxu0 0
    %959 = vmatprep.subr.bf16.mxu0 0
    %960 = vmatpush1.bf16.msra.mxu0 0
    %961 = vmatprep.subr.bf16.mxu0 0
    %962 = vmatpush1.bf16.msra.mxu0 0
    %963 = vmatprep.subr.bf16.mxu0 0
    %964 = vmatpush1.bf16.msra.mxu0 0
    %965 = vmatprep.subr.bf16.mxu0 0
    %966 = vmatpush1.bf16.msra.mxu0 0
    %967 = vmatprep.subr.bf16.mxu0 0
    %968 = vmatpush1.bf16.msra.mxu0 0
    %969 = vmatprep.subr.bf16.mxu0 0
    %970 = vmatpush1.bf16.msra.mxu0 0
    %971 = vmatprep.subr.bf16.mxu0 0
    %972 = vmatpush1.bf16.msra.mxu0 0
    %973 = vmatprep.subr.bf16.mxu0 0
    %974 = vmatpush1.bf16.msra.mxu0 0
    %975 = vmatprep.subr.bf16.mxu0 0
    %976 = vmatpush1.bf16.msra.mxu0 0
    %977 = vmatprep.mubr.bf16.mxu0 0
    %978 = vmatmul.mubr.bf16.gmra.mrb[0].mxu0 %v943
    %v979 = vpop.f32.mrb[0].mxu0
    %v980 = vadd.f32 %v930, %v979
    %v981 = vpop.f32.mrb[0].mxu0
    %v982 = vpop.f32.mrb[0].mxu0
    %v983 = vadd.f32 %v933, %v982
    %v984 = vpop.f32.mrb[0].mxu0
    %985 = vdwg.mxu0
    %986 = vrot.lane.b32.xlu0 %v484, 96
    %v987 = vpop.permute.xlu0 %986
    %988 = vrot.lane.b32.xlu0 %v485, 96
    %v989 = vpop.permute.xlu0 %988
    %990 = vrot.lane.b32.xlu0 %v437, 96
    %v991 = vpop.permute.xlu0 %990
    %992 = vrot.lane.b32.xlu0 %v441, 96
    %v993 = vpop.permute.xlu0 %992
    %v994 = vsel %vm486, %v987, 0
    %v996 = vsel %vm486, %v989, 0
    %v998 = vsel %vm486, %v991, 0
    %v1000 = vsel %vm486, %v993, 0
    %1002 = vmatprep.subr.mxu0 0.0
    %1003 = vmatpush1.xpose.msra.mxu0 %v998
    %1004 = vmatprep.subr.mxu0 0.0
    %1005 = vmatpush1.xpose.msra.mxu0 %v1000
    %1006 = vmatprep.subr.mxu0 0.0
    %1007 = vmatpush1.xpose.msra.mxu0 0.0
    %1008 = vmatprep.subr.mxu0 0.0
    %1009 = vmatpush1.xpose.msra.mxu0 0.0
    %1010 = vmatprep.subr.mxu0 0.0
    %1011 = vmatpush1.xpose.msra.mxu0 0.0
    %1012 = vmatprep.subr.mxu0 0.0
    %1013 = vmatpush1.xpose.msra.mxu0 0.0
    %1014 = vmatprep.subr.mxu0 0.0
    %1015 = vmatpush1.xpose.msra.mxu0 0.0
    %1016 = vmatprep.subr.mxu0 0.0
    %1017 = vmatpush1.xpose.msra.mxu0 0.0
    %1018 = vmatprep.subr.mxu0 0.0
    %1019 = vmatpush1.xpose.msra.mxu0 0.0
    %1020 = vmatprep.subr.mxu0 0.0
    %1021 = vmatpush1.xpose.msra.mxu0 0.0
    %1022 = vmatprep.subr.mxu0 0.0
    %1023 = vmatpush1.xpose.msra.mxu0 0.0
    %1024 = vmatprep.subr.mxu0 0.0
    %1025 = vmatpush1.xpose.msra.mxu0 0.0
    %1026 = vmatprep.subr.mxu0 0.0
    %1027 = vmatpush1.xpose.msra.mxu0 0.0
    %1028 = vmatprep.subr.mxu0 0.0
    %1029 = vmatpush1.xpose.msra.mxu0 0.0
    %1030 = vmatprep.subr.mxu0 0.0
    %1031 = vmatpush1.xpose.msra.mxu0 0.0
    %1032 = vmatprep.subr.mxu0 0.0
    %1033 = vmatpush1.xpose.msra.mxu0 0.0
    %1034 = vmatprep.subr.mxu0 0.0
    %1035 = vmatpush1.xpose.msra.mxu0 0.0
    %1036 = vmatprep.subr.mxu0 0.0
    %1037 = vmatpush1.xpose.msra.mxu0 0.0
    %1038 = vmatprep.subr.mxu0 0.0
    %1039 = vmatpush1.xpose.msra.mxu0 0.0
    %1040 = vmatprep.subr.mxu0 0.0
    %1041 = vmatpush1.xpose.msra.mxu0 0.0
    %1042 = vmatprep.subr.mxu0 0.0
    %1043 = vmatpush1.xpose.msra.mxu0 0.0
    %1044 = vmatprep.subr.mxu0 0.0
    %1045 = vmatpush1.xpose.msra.mxu0 0.0
    %1046 = vmatprep.subr.mxu0 0.0
    %1047 = vmatpush1.xpose.msra.mxu0 0.0
    %1048 = vmatprep.subr.mxu0 0.0
    %1049 = vmatpush1.xpose.msra.mxu0 0.0
    %1050 = vmatprep.subr.mxu0 0.0
    %1051 = vmatpush1.xpose.msra.mxu0 0.0
    %1052 = vmatprep.subr.mxu0 0.0
    %1053 = vmatpush1.xpose.msra.mxu0 0.0
    %1054 = vmatprep.subr.mxu0 0.0
    %1055 = vmatpush1.xpose.msra.mxu0 0.0
    %1056 = vmatprep.subr.mxu0 0.0
    %1057 = vmatpush1.xpose.msra.mxu0 0.0
    %1058 = vmatprep.subr.mxu0 0.0
    %1059 = vmatpush1.xpose.msra.mxu0 0.0
    %1060 = vmatprep.subr.mxu0 0.0
    %1061 = vmatpush1.xpose.msra.mxu0 0.0
    %1062 = vmatprep.subr.mxu0 0.0
    %1063 = vmatpush1.xpose.msra.mxu0 0.0
    %1064 = vmatprep.subr.mxu0 0.0
    %1065 = vmatpush1.xpose.msra.mxu0 0.0
    %1066 = vmatprep.mubr.f32.mxu0 0.0
    %1067 = vmatmul.mubr.f32.gmra.mrb[0].mxu0 %v994
    %v1068 = vpop.f32.mrb[0].mxu0
    %v1069 = vadd.f32 %v179, %v1068
    %v1070 = vpop.f32.mrb[0].mxu0
    %1071 = vmatprep.mubr.f32.mxu0 0.0
    %1072 = vmatmul.mubr.f32.gmra.mrb[0].mxu0 %v996
    %v1073 = vpop.f32.mrb[0].mxu0
    %v1074 = vadd.f32 %v180, %v1073
    %v1075 = vpop.f32.mrb[0].mxu0
    %1076 = vdwg.mxu0
    %v1077 = vsel %vm486, %v1069, -inf
    %1078 = vmax.xlane.f32.xlu0 %v1077
    %v1079 = vpop.xlane.xlu0 %1078
    %v1080 = vsel %vm486, %v1074, -inf
    %1081 = vmax.xlane.f32.xlu0 %v1080
    %v1082 = vpop.xlane.xlu0 %1081
    %v1083 = vsub.f32 %v1069, %v1079
    %v1084 = vsub.f32 %v1074, %v1082
    %v1085 = vmul.f32 %v1083, 1.442695
    %v1086 = vpow.pop %v1085
    %v1087 = vmul.f32 %v1084, 1.442695
    %v1088 = vpow.pop %v1087
    %v1089 = vsel %vm486, %v1086, 0.0
    %1090 = vadd.xlane.f32.xlu0 %v1089
    %v1091 = vpop.xlane.xlu0 %1090
    %v1092 = vsel %vm486, %v1088, 0.0
    %1093 = vadd.xlane.f32.xlu0 %v1092
    %v1094 = vpop.xlane.xlu0 %1093
    %v1095 = vrcp.pop %v1091
    %v1096 = vrcp.pop %v1094
    %v1097 = vmul.f32 %v1086, %v1095
    %v1098 = vmul.f32 %v1088, %v1096
    %1099 = vrot.lane.b32.xlu0 %v478, 96
    %v1100 = vpop.permute.xlu0 %1099
    %1101 = vrot.lane.b32.xlu0 %v481, 96
    %v1102 = vpop.permute.xlu0 %1101
    %v1106 = vsel %vm486, %v1097, 0
    %v1109 = vsel %vm486, %v1098, 0
    %1111 = vmatprep.subr.mxu0 0.0
    %1112 = vmatpush1.msra.mxu0 %v1100
    %1113 = vmatprep.subr.mxu0 0.0
    %1114 = vmatpush1.msra.mxu0 %v1102
    %1115 = vmatprep.subr.mxu0 0.0
    %1116 = vmatpush1.msra.mxu0 0.0
    %1117 = vmatprep.subr.mxu0 0.0
    %1118 = vmatpush1.msra.mxu0 0.0
    %1119 = vmatprep.subr.mxu0 0.0
    %1120 = vmatpush1.msra.mxu0 0.0
    %1121 = vmatprep.subr.mxu0 0.0
    %1122 = vmatpush1.msra.mxu0 0.0
    %1123 = vmatprep.subr.mxu0 0.0
    %1124 = vmatpush1.msra.mxu0 0.0
    %1125 = vmatprep.subr.mxu0 0.0
    %1126 = vmatpush1.msra.mxu0 0.0
    %1127 = vmatprep.subr.mxu0 0.0
    %1128 = vmatpush1.msra.mxu0 0.0
    %1129 = vmatprep.subr.mxu0 0.0
    %1130 = vmatpush1.msra.mxu0 0.0
    %1131 = vmatprep.subr.mxu0 0.0
    %1132 = vmatpush1.msra.mxu0 0.0
    %1133 = vmatprep.subr.mxu0 0.0
    %1134 = vmatpush1.msra.mxu0 0.0
    %1135 = vmatprep.subr.mxu0 0.0
    %1136 = vmatpush1.msra.mxu0 0.0
    %1137 = vmatprep.subr.mxu0 0.0
    %1138 = vmatpush1.msra.mxu0 0.0
    %1139 = vmatprep.subr.mxu0 0.0
    %1140 = vmatpush1.msra.mxu0 0.0
    %1141 = vmatprep.subr.mxu0 0.0
    %1142 = vmatpush1.msra.mxu0 0.0
    %1143 = vmatprep.subr.mxu0 0.0
    %1144 = vmatpush1.msra.mxu0 0.0
    %1145 = vmatprep.subr.mxu0 0.0
    %1146 = vmatpush1.msra.mxu0 0.0
    %1147 = vmatprep.subr.mxu0 0.0
    %1148 = vmatpush1.msra.mxu0 0.0
    %1149 = vmatprep.subr.mxu0 0.0
    %1150 = vmatpush1.msra.mxu0 0.0
    %1151 = vmatprep.subr.mxu0 0.0
    %1152 = vmatpush1.msra.mxu0 0.0
    %1153 = vmatprep.subr.mxu0 0.0
    %1154 = vmatpush1.msra.mxu0 0.0
    %1155 = vmatprep.subr.mxu0 0.0
    %1156 = vmatpush1.msra.mxu0 0.0
    %1157 = vmatprep.subr.mxu0 0.0
    %1158 = vmatpush1.msra.mxu0 0.0
    %1159 = vmatprep.subr.mxu0 0.0
    %1160 = vmatpush1.msra.mxu0 0.0
    %1161 = vmatprep.subr.mxu0 0.0
    %1162 = vmatpush1.msra.mxu0 0.0
    %1163 = vmatprep.subr.mxu0 0.0
    %1164 = vmatpush1.msra.mxu0 0.0
    %1165 = vmatprep.subr.mxu0 0.0
    %1166 = vmatpush1.msra.mxu0 0.0
    %1167 = vmatprep.subr.mxu0 0.0
    %1168 = vmatpush1.msra.mxu0 0.0
    %1169 = vmatprep.subr.mxu0 0.0
    %1170 = vmatpush1.msra.mxu0 0.0
    %1171 = vmatprep.subr.mxu0 0.0
    %1172 = vmatpush1.msra.mxu0 0.0
    %1173 = vmatprep.subr.mxu0 0.0
    %1174 = vmatpush1.msra.mxu0 0.0
    %1175 = vmatprep.mubr.f32.mxu0 0.0
    %1176 = vmatmul.mubr.f32.gmra.mrb[0].mxu0 %v1106
    %v1177 = vpop.f32.mrb[0].mxu0
    %v1178 = vadd.f32 0.0, %v1177
    %v1179 = vpop.f32.mrb[0].mxu0
    %1180 = vmatprep.mubr.f32.mxu0 0.0
    %1181 = vmatmul.mubr.f32.gmra.mrb[0].mxu0 %v1109
    %v1182 = vpop.f32.mrb[0].mxu0
    %v1183 = vadd.f32 0.0, %v1182
    %v1184 = vpop.f32.mrb[0].mxu0
    %1185 = vdwg.mxu0
    %v1186 = vpack.c.bf16 %v1183, %v1178
    %s1187 = scalar_lea.vmem [#allocation8], 16
    %v1188 = vld [vmem:[%s1187] sm:$0xf]
    %v1189 = vld [vmem:[%s1187 + $0x4] sm:$0xf]
    %v1192 = vunpack.c.l.b16 %v1188
    %v1193 = vunpack.c.l.b16 %v1189
    %v1194 = vpack.c.b16 %v1193, %v1192
    %v1197 = vsel %vm486, %v1186, 0
    %1199 = vmatprep.subr.bf16.mxu0 0
    %1200 = vmatpush1.bf16.msra.mxu0 %v1194
    %1201 = vmatprep.subr.bf16.mxu0 0
    %1202 = vmatpush1.bf16.msra.mxu0 0
    %1203 = vmatprep.subr.bf16.mxu0 0
    %1204 = vmatpush1.bf16.msra.mxu0 0
    %1205 = vmatprep.subr.bf16.mxu0 0
    %1206 = vmatpush1.bf16.msra.mxu0 0
    %1207 = vmatprep.subr.bf16.mxu0 0
    %1208 = vmatpush1.bf16.msra.mxu0 0
    %1209 = vmatprep.subr.bf16.mxu0 0
    %1210 = vmatpush1.bf16.msra.mxu0 0
    %1211 = vmatprep.subr.bf16.mxu0 0
    %1212 = vmatpush1.bf16.msra.mxu0 0
    %1213 = vmatprep.subr.bf16.mxu0 0
    %1214 = vmatpush1.bf16.msra.mxu0 0
    %1215 = vmatprep.subr.bf16.mxu0 0
    %1216 = vmatpush1.bf16.msra.mxu0 0
    %1217 = vmatprep.subr.bf16.mxu0 0
    %1218 = vmatpush1.bf16.msra.mxu0 0
    %1219 = vmatprep.subr.bf16.mxu0 0
    %1220 = vmatpush1.bf16.msra.mxu0 0
    %1221 = vmatprep.subr.bf16.mxu0 0
    %1222 = vmatpush1.bf16.msra.mxu0 0
    %1223 = vmatprep.subr.bf16.mxu0 0
    %1224 = vmatpush1.bf16.msra.mxu0 0
    %1225 = vmatprep.subr.bf16.mxu0 0
    %1226 = vmatpush1.bf16.msra.mxu0 0
    %1227 = vmatprep.subr.bf16.mxu0 0
    %1228 = vmatpush1.bf16.msra.mxu0 0
    %1229 = vmatprep.subr.bf16.mxu0 0
    %1230 = vmatpush1.bf16.msra.mxu0 0
    %1231 = vmatprep.mubr.bf16.mxu0 0
    %1232 = vmatmul.mubr.bf16.gmra.mrb[0].mxu0 %v1197
    %v1233 = vpop.f32.mrb[0].mxu0
    %v1234 = vadd.f32 0.0, %v1233
    %v1235 = vpop.f32.mrb[0].mxu0
    %v1236 = vpop.f32.mrb[0].mxu0
    %v1237 = vadd.f32 0.0, %v1236
    %v1238 = vpop.f32.mrb[0].mxu0
    %1239 = vdwg.mxu0
    %v1240 = vadd.f32 %v980, %v1234
    %v1241 = vadd.f32 %v983, %v1237
    %1242 = vrot.lane.b32.xlu0 %v484, 80
    %v1243 = vpop.permute.xlu0 %1242
    %1244 = vrot.lane.b32.xlu0 %v485, 80
    %v1245 = vpop.permute.xlu0 %1244
    %1246 = vrot.lane.b32.xlu0 %v437, 80
    %v1247 = vpop.permute.xlu0 %1246
    %1248 = vrot.lane.b32.xlu0 %v441, 80
    %v1249 = vpop.permute.xlu0 %1248
    %v1250 = vsel %vm486, %v1243, 0
    %v1252 = vsel %vm486, %v1245, 0
    %v1254 = vsel %vm486, %v1247, 0
    %v1256 = vsel %vm486, %v1249, 0
    %1258 = vmatprep.subr.mxu0 0.0
    %1259 = vmatpush1.xpose.msra.mxu0 %v1254
    %1260 = vmatprep.subr.mxu0 0.0
    %1261 = vmatpush1.xpose.msra.mxu0 %v1256
    %1262 = vmatprep.subr.mxu0 0.0
    %1263 = vmatpush1.xpose.msra.mxu0 0.0
    %1264 = vmatprep.subr.mxu0 0.0
    %1265 = vmatpush1.xpose.msra.mxu0 0.0
    %1266 = vmatprep.subr.mxu0 0.0
    %1267 = vmatpush1.xpose.msra.mxu0 0.0
    %1268 = vmatprep.subr.mxu0 0.0
    %1269 = vmatpush1.xpose.msra.mxu0 0.0
    %1270 = vmatprep.subr.mxu0 0.0
    %1271 = vmatpush1.xpose.msra.mxu0 0.0
    %1272 = vmatprep.subr.mxu0 0.0
    %1273 = vmatpush1.xpose.msra.mxu0 0.0
    %1274 = vmatprep.subr.mxu0 0.0
    %1275 = vmatpush1.xpose.msra.mxu0 0.0
    %1276 = vmatprep.subr.mxu0 0.0
    %1277 = vmatpush1.xpose.msra.mxu0 0.0
    %1278 = vmatprep.subr.mxu0 0.0
    %1279 = vmatpush1.xpose.msra.mxu0 0.0
    %1280 = vmatprep.subr.mxu0 0.0
    %1281 = vmatpush1.xpose.msra.mxu0 0.0
    %1282 = vmatprep.subr.mxu0 0.0
    %1283 = vmatpush1.xpose.msra.mxu0 0.0
    %1284 = vmatprep.subr.mxu0 0.0
    %1285 = vmatpush1.xpose.msra.mxu0 0.0
    %1286 = vmatprep.subr.mxu0 0.0
    %1287 = vmatpush1.xpose.msra.mxu0 0.0
    %1288 = vmatprep.subr.mxu0 0.0
    %1289 = vmatpush1.xpose.msra.mxu0 0.0
    %1290 = vmatprep.subr.mxu0 0.0
    %1291 = vmatpush1.xpose.msra.mxu0 0.0
    %1292 = vmatprep.subr.mxu0 0.0
    %1293 = vmatpush1.xpose.msra.mxu0 0.0
    %1294 = vmatprep.subr.mxu0 0.0
    %1295 = vmatpush1.xpose.msra.mxu0 0.0
    %1296 = vmatprep.subr.mxu0 0.0
    %1297 = vmatpush1.xpose.msra.mxu0 0.0
    %1298 = vmatprep.subr.mxu0 0.0
    %1299 = vmatpush1.xpose.msra.mxu0 0.0
    %1300 = vmatprep.subr.mxu0 0.0
    %1301 = vmatpush1.xpose.msra.mxu0 0.0
    %1302 = vmatprep.subr.mxu0 0.0
    %1303 = vmatpush1.xpose.msra.mxu0 0.0
    %1304 = vmatprep.subr.mxu0 0.0
    %1305 = vmatpush1.xpose.msra.mxu0 0.0
    %1306 = vmatprep.subr.mxu0 0.0
    %1307 = vmatpush1.xpose.msra.mxu0 0.0
    %1308 = vmatprep.subr.mxu0 0.0
    %1309 = vmatpush1.xpose.msra.mxu0 0.0
    %1310 = vmatprep.subr.mxu0 0.0
    %1311 = vmatpush1.xpose.msra.mxu0 0.0
    %1312 = vmatprep.subr.mxu0 0.0
    %1313 = vmatpush1.xpose.msra.mxu0 0.0
    %1314 = vmatprep.subr.mxu0 0.0
    %1315 = vmatpush1.xpose.msra.mxu0 0.0
    %1316 = vmatprep.subr.mxu0 0.0
    %1317 = vmatpush1.xpose.msra.mxu0 0.0
    %1318 = vmatprep.subr.mxu0 0.0
    %1319 = vmatpush1.xpose.msra.mxu0 0.0
    %1320 = vmatprep.subr.mxu0 0.0
    %1321 = vmatpush1.xpose.msra.mxu0 0.0
    %1322 = vmatprep.mubr.f32.mxu0 0.0
    %1323 = vmatmul.mubr.f32.gmra.mrb[0].mxu0 %v1250
    %v1324 = vpop.f32.mrb[0].mxu0
    %v1325 = vadd.f32 %v179, %v1324
    %v1326 = vpop.f32.mrb[0].mxu0
    %1327 = vmatprep.mubr.f32.mxu0 0.0
    %1328 = vmatmul.mubr.f32.gmra.mrb[0].mxu0 %v1252
    %v1329 = vpop.f32.mrb[0].mxu0
    %v1330 = vadd.f32 %v180, %v1329
    %v1331 = vpop.f32.mrb[0].mxu0
    %1332 = vdwg.mxu0
    %v1333 = vsel %vm486, %v1325, -inf
    %1334 = vmax.xlane.f32.xlu0 %v1333
    %v1335 = vpop.xlane.xlu0 %1334
    %v1336 = vsel %vm486, %v1330, -inf
    %1337 = vmax.xlane.f32.xlu0 %v1336
    %v1338 = vpop.xlane.xlu0 %1337
    %v1339 = vsub.f32 %v1325, %v1335
    %v1340 = vsub.f32 %v1330, %v1338
    %v1341 = vmul.f32 %v1339, 1.442695
    %v1342 = vpow.pop %v1341
    %v1343 = vmul.f32 %v1340, 1.442695
    %v1344 = vpow.pop %v1343
    %v1345 = vsel %vm486, %v1342, 0.0
    %1346 = vadd.xlane.f32.xlu0 %v1345
    %v1347 = vpop.xlane.xlu0 %1346
    %v1348 = vsel %vm486, %v1344, 0.0
    %1349 = vadd.xlane.f32.xlu0 %v1348
    %v1350 = vpop.xlane.xlu0 %1349
    %v1351 = vrcp.pop %v1347
    %v1352 = vrcp.pop %v1350
    %v1353 = vmul.f32 %v1342, %v1351
    %v1354 = vmul.f32 %v1344, %v1352
    %1355 = vrot.lane.b32.xlu0 %v478, 80
    %v1356 = vpop.permute.xlu0 %1355
    %1357 = vrot.lane.b32.xlu0 %v481, 80
    %v1358 = vpop.permute.xlu0 %1357
    %v1362 = vsel %vm486, %v1353, 0
    %v1365 = vsel %vm486, %v1354, 0
    %1367 = vmatprep.subr.mxu0 0.0
    %1368 = vmatpush1.msra.mxu0 %v1356
    %1369 = vmatprep.subr.mxu0 0.0
    %1370 = vmatpush1.msra.mxu0 %v1358
    %1371 = vmatprep.subr.mxu0 0.0
    %1372 = vmatpush1.msra.mxu0 0.0
    %1373 = vmatprep.subr.mxu0 0.0
    %1374 = vmatpush1.msra.mxu0 0.0
    %1375 = vmatprep.subr.mxu0 0.0
    %1376 = vmatpush1.msra.mxu0 0.0
    %1377 = vmatprep.subr.mxu0 0.0
    %1378 = vmatpush1.msra.mxu0 0.0
    %1379 = vmatprep.subr.mxu0 0.0
    %1380 = vmatpush1.msra.mxu0 0.0
    %1381 = vmatprep.subr.mxu0 0.0
    %1382 = vmatpush1.msra.mxu0 0.0
    %1383 = vmatprep.subr.mxu0 0.0
    %1384 = vmatpush1.msra.mxu0 0.0
    %1385 = vmatprep.subr.mxu0 0.0
    %1386 = vmatpush1.msra.mxu0 0.0
    %1387 = vmatprep.subr.mxu0 0.0
    %1388 = vmatpush1.msra.mxu0 0.0
    %1389 = vmatprep.subr.mxu0 0.0
    %1390 = vmatpush1.msra.mxu0 0.0
    %1391 = vmatprep.subr.mxu0 0.0
    %1392 = vmatpush1.msra.mxu0 0.0
    %1393 = vmatprep.subr.mxu0 0.0
    %1394 = vmatpush1.msra.mxu0 0.0
    %1395 = vmatprep.subr.mxu0 0.0
    %1396 = vmatpush1.msra.mxu0 0.0
    %1397 = vmatprep.subr.mxu0 0.0
    %1398 = vmatpush1.msra.mxu0 0.0
    %1399 = vmatprep.subr.mxu0 0.0
    %1400 = vmatpush1.msra.mxu0 0.0
    %1401 = vmatprep.subr.mxu0 0.0
    %1402 = vmatpush1.msra.mxu0 0.0
    %1403 = vmatprep.subr.mxu0 0.0
    %1404 = vmatpush1.msra.mxu0 0.0
    %1405 = vmatprep.subr.mxu0 0.0
    %1406 = vmatpush1.msra.mxu0 0.0
    %1407 = vmatprep.subr.mxu0 0.0
    %1408 = vmatpush1.msra.mxu0 0.0
    %1409 = vmatprep.subr.mxu0 0.0
    %1410 = vmatpush1.msra.mxu0 0.0
    %1411 = vmatprep.subr.mxu0 0.0
    %1412 = vmatpush1.msra.mxu0 0.0
    %1413 = vmatprep.subr.mxu0 0.0
    %1414 = vmatpush1.msra.mxu0 0.0
    %1415 = vmatprep.subr.mxu0 0.0
    %1416 = vmatpush1.msra.mxu0 0.0
    %1417 = vmatprep.subr.mxu0 0.0
    %1418 = vmatpush1.msra.mxu0 0.0
    %1419 = vmatprep.subr.mxu0 0.0
    %1420 = vmatpush1.msra.mxu0 0.0
    %1421 = vmatprep.subr.mxu0 0.0
    %1422 = vmatpush1.msra.mxu0 0.0
    %1423 = vmatprep.subr.mxu0 0.0
    %1424 = vmatpush1.msra.mxu0 0.0
    %1425 = vmatprep.subr.mxu0 0.0
    %1426 = vmatpush1.msra.mxu0 0.0
    %1427 = vmatprep.subr.mxu0 0.0
    %1428 = vmatpush1.msra.mxu0 0.0
    %1429 = vmatprep.subr.mxu0 0.0
    %1430 = vmatpush1.msra.mxu0 0.0
    %1431 = vmatprep.mubr.f32.mxu0 0.0
    %1432 = vmatmul.mubr.f32.gmra.mrb[0].mxu0 %v1362
    %v1433 = vpop.f32.mrb[0].mxu0
    %v1434 = vadd.f32 0.0, %v1433
    %v1435 = vpop.f32.mrb[0].mxu0
    %1436 = vmatprep.mubr.f32.mxu0 0.0
    %1437 = vmatmul.mubr.f32.gmra.mrb[0].mxu0 %v1365
    %v1438 = vpop.f32.mrb[0].mxu0
    %v1439 = vadd.f32 0.0, %v1438
    %v1440 = vpop.f32.mrb[0].mxu0
    %1441 = vdwg.mxu0
    %v1442 = vpack.c.bf16 %v1439, %v1434
    %s1443 = scalar_lea.vmem [#allocation8], 24
    %v1444 = vld [vmem:[%s1443] sm:$0xf]
    %v1445 = vld [vmem:[%s1443 + $0x4] sm:$0xf]
    %v1448 = vunpack.c.l.b16 %v1444
    %v1449 = vunpack.c.l.b16 %v1445
    %v1450 = vpack.c.b16 %v1449, %v1448
    %v1453 = vsel %vm486, %v1442, 0
    %1455 = vmatprep.subr.bf16.mxu0 0
    %1456 = vmatpush1.bf16.msra.mxu0 %v1450
    %1457 = vmatprep.subr.bf16.mxu0 0
    %1458 = vmatpush1.bf16.msra.mxu0 0
    %1459 = vmatprep.subr.bf16.mxu0 0
    %1460 = vmatpush1.bf16.msra.mxu0 0
    %1461 = vmatprep.subr.bf16.mxu0 0
    %1462 = vmatpush1.bf16.msra.mxu0 0
    %1463 = vmatprep.subr.bf16.mxu0 0
    %1464 = vmatpush1.bf16.msra.mxu0 0
    %1465 = vmatprep.subr.bf16.mxu0 0
    %1466 = vmatpush1.bf16.msra.mxu0 0
    %1467 = vmatprep.subr.bf16.mxu0 0
    %1468 = vmatpush1.bf16.msra.mxu0 0
    %1469 = vmatprep.subr.bf16.mxu0 0
    %1470 = vmatpush1.bf16.msra.mxu0 0
    %1471 = vmatprep.subr.bf16.mxu0 0
    %1472 = vmatpush1.bf16.msra.mxu0 0
    %1473 = vmatprep.subr.bf16.mxu0 0
    %1474 = vmatpush1.bf16.msra.mxu0 0
    %1475 = vmatprep.subr.bf16.mxu0 0
    %1476 = vmatpush1.bf16.msra.mxu0 0
    %1477 = vmatprep.subr.bf16.mxu0 0
    %1478 = vmatpush1.bf16.msra.mxu0 0
    %1479 = vmatprep.subr.bf16.mxu0 0
    %1480 = vmatpush1.bf16.msra.mxu0 0
    %1481 = vmatprep.subr.bf16.mxu0 0
    %1482 = vmatpush1.bf16.msra.mxu0 0
    %1483 = vmatprep.subr.bf16.mxu0 0
    %1484 = vmatpush1.bf16.msra.mxu0 0
    %1485 = vmatprep.subr.bf16.mxu0 0
    %1486 = vmatpush1.bf16.msra.mxu0 0
    %1487 = vmatprep.mubr.bf16.mxu0 0
    %1488 = vmatmul.mubr.bf16.gmra.mrb[0].mxu0 %v1453
    %v1489 = vpop.f32.mrb[0].mxu0
    %v1490 = vadd.f32 0.0, %v1489
    %v1491 = vpop.f32.mrb[0].mxu0
    %v1492 = vpop.f32.mrb[0].mxu0
    %v1493 = vadd.f32 0.0, %v1492
    %v1494 = vpop.f32.mrb[0].mxu0
    %1495 = vdwg.mxu0
    %v1496 = vadd.f32 %v1240, %v1490
    %v1497 = vadd.f32 %v1241, %v1493
    %1498 = vrot.lane.b32.xlu0 %v484, 64
    %v1499 = vpop.permute.xlu0 %1498
    %1500 = vrot.lane.b32.xlu0 %v485, 64
    %v1501 = vpop.permute.xlu0 %1500
    %1502 = vrot.lane.b32.xlu0 %v437, 64
    %v1503 = vpop.permute.xlu0 %1502
    %1504 = vrot.lane.b32.xlu0 %v441, 64
    %v1505 = vpop.permute.xlu0 %1504
    %v1506 = vsel %vm486, %v1499, 0
    %v1508 = vsel %vm486, %v1501, 0
    %v1510 = vsel %vm486, %v1503, 0
    %v1512 = vsel %vm486, %v1505, 0
    %1514 = vmatprep.subr.mxu0 0.0
    %1515 = vmatpush1.xpose.msra.mxu0 %v1510
    %1516 = vmatprep.subr.mxu0 0.0
    %1517 = vmatpush1.xpose.msra.mxu0 %v1512
    %1518 = vmatprep.subr.mxu0 0.0
    %1519 = vmatpush1.xpose.msra.mxu0 0.0
    %1520 = vmatprep.subr.mxu0 0.0
    %1521 = vmatpush1.xpose.msra.mxu0 0.0
    %1522 = vmatprep.subr.mxu0 0.0
    %1523 = vmatpush1.xpose.msra.mxu0 0.0
    %1524 = vmatprep.subr.mxu0 0.0
    %1525 = vmatpush1.xpose.msra.mxu0 0.0
    %1526 = vmatprep.subr.mxu0 0.0
    %1527 = vmatpush1.xpose.msra.mxu0 0.0
    %1528 = vmatprep.subr.mxu0 0.0
    %1529 = vmatpush1.xpose.msra.mxu0 0.0
    %1530 = vmatprep.subr.mxu0 0.0
    %1531 = vmatpush1.xpose.msra.mxu0 0.0
    %1532 = vmatprep.subr.mxu0 0.0
    %1533 = vmatpush1.xpose.msra.mxu0 0.0
    %1534 = vmatprep.subr.mxu0 0.0
    %1535 = vmatpush1.xpose.msra.mxu0 0.0
    %1536 = vmatprep.subr.mxu0 0.0
    %1537 = vmatpush1.xpose.msra.mxu0 0.0
    %1538 = vmatprep.subr.mxu0 0.0
    %1539 = vmatpush1.xpose.msra.mxu0 0.0
    %1540 = vmatprep.subr.mxu0 0.0
    %1541 = vmatpush1.xpose.msra.mxu0 0.0
    %1542 = vmatprep.subr.mxu0 0.0
    %1543 = vmatpush1.xpose.msra.mxu0 0.0
    %1544 = vmatprep.subr.mxu0 0.0
    %1545 = vmatpush1.xpose.msra.mxu0 0.0
    %1546 = vmatprep.subr.mxu0 0.0
    %1547 = vmatpush1.xpose.msra.mxu0 0.0
    %1548 = vmatprep.subr.mxu0 0.0
    %1549 = vmatpush1.xpose.msra.mxu0 0.0
    %1550 = vmatprep.subr.mxu0 0.0
    %1551 = vmatpush1.xpose.msra.mxu0 0.0
    %1552 = vmatprep.subr.mxu0 0.0
    %1553 = vmatpush1.xpose.msra.mxu0 0.0
    %1554 = vmatprep.subr.mxu0 0.0
    %1555 = vmatpush1.xpose.msra.mxu0 0.0
    %1556 = vmatprep.subr.mxu0 0.0
    %1557 = vmatpush1.xpose.msra.mxu0 0.0
    %1558 = vmatprep.subr.mxu0 0.0
    %1559 = vmatpush1.xpose.msra.mxu0 0.0
    %1560 = vmatprep.subr.mxu0 0.0
    %1561 = vmatpush1.xpose.msra.mxu0 0.0
    %1562 = vmatprep.subr.mxu0 0.0
    %1563 = vmatpush1.xpose.msra.mxu0 0.0
    %1564 = vmatprep.subr.mxu0 0.0
    %1565 = vmatpush1.xpose.msra.mxu0 0.0
    %1566 = vmatprep.subr.mxu0 0.0
    %1567 = vmatpush1.xpose.msra.mxu0 0.0
    %1568 = vmatprep.subr.mxu0 0.0
    %1569 = vmatpush1.xpose.msra.mxu0 0.0
    %1570 = vmatprep.subr.mxu0 0.0
    %1571 = vmatpush1.xpose.msra.mxu0 0.0
    %1572 = vmatprep.subr.mxu0 0.0
    %1573 = vmatpush1.xpose.msra.mxu0 0.0
    %1574 = vmatprep.subr.mxu0 0.0
    %1575 = vmatpush1.xpose.msra.mxu0 0.0
    %1576 = vmatprep.subr.mxu0 0.0
    %1577 = vmatpush1.xpose.msra.mxu0 0.0
    %1578 = vmatprep.mubr.f32.mxu0 0.0
    %1579 = vmatmul.mubr.f32.gmra.mrb[0].mxu0 %v1506
    %v1580 = vpop.f32.mrb[0].mxu0
    %v1581 = vadd.f32 %v179, %v1580
    %v1582 = vpop.f32.mrb[0].mxu0
    %1583 = vmatprep.mubr.f32.mxu0 0.0
    %1584 = vmatmul.mubr.f32.gmra.mrb[0].mxu0 %v1508
    %v1585 = vpop.f32.mrb[0].mxu0
    %v1586 = vadd.f32 %v180, %v1585
    %v1587 = vpop.f32.mrb[0].mxu0
    %1588 = vdwg.mxu0
    %v1589 = vsel %vm486, %v1581, -inf
    %1590 = vmax.xlane.f32.xlu0 %v1589
    %v1591 = vpop.xlane.xlu0 %1590
    %v1592 = vsel %vm486, %v1586, -inf
    %1593 = vmax.xlane.f32.xlu0 %v1592
    %v1594 = vpop.xlane.xlu0 %1593
    %v1595 = vsub.f32 %v1581, %v1591
    %v1596 = vsub.f32 %v1586, %v1594
    %v1597 = vmul.f32 %v1595, 1.442695
    %v1598 = vpow.pop %v1597
    %v1599 = vmul.f32 %v1596, 1.442695
    %v1600 = vpow.pop %v1599
    %v1601 = vsel %vm486, %v1598, 0.0
    %1602 = vadd.xlane.f32.xlu0 %v1601
    %v1603 = vpop.xlane.xlu0 %1602
    %v1604 = vsel %vm486, %v1600, 0.0
    %1605 = vadd.xlane.f32.xlu0 %v1604
    %v1606 = vpop.xlane.xlu0 %1605
    %v1607 = vrcp.pop %v1603
    %v1608 = vrcp.pop %v1606
    %v1609 = vmul.f32 %v1598, %v1607
    %v1610 = vmul.f32 %v1600, %v1608
    %1611 = vrot.lane.b32.xlu0 %v478, 64
    %v1612 = vpop.permute.xlu0 %1611
    %1613 = vrot.lane.b32.xlu0 %v481, 64
    %v1614 = vpop.permute.xlu0 %1613
    %v1618 = vsel %vm486, %v1609, 0
    %v1621 = vsel %vm486, %v1610, 0
    %1623 = vmatprep.subr.mxu0 0.0
    %1624 = vmatpush1.msra.mxu0 %v1612
    %1625 = vmatprep.subr.mxu0 0.0
    %1626 = vmatpush1.msra.mxu0 %v1614
    %1627 = vmatprep.subr.mxu0 0.0
    %1628 = vmatpush1.msra.mxu0 0.0
    %1629 = vmatprep.subr.mxu0 0.0
    %1630 = vmatpush1.msra.mxu0 0.0
    %1631 = vmatprep.subr.mxu0 0.0
    %1632 = vmatpush1.msra.mxu0 0.0
    %1633 = vmatprep.subr.mxu0 0.0
    %1634 = vmatpush1.msra.mxu0 0.0
    %1635 = vmatprep.subr.mxu0 0.0
    %1636 = vmatpush1.msra.mxu0 0.0
    %1637 = vmatprep.subr.mxu0 0.0
    %1638 = vmatpush1.msra.mxu0 0.0
    %1639 = vmatprep.subr.mxu0 0.0
    %1640 = vmatpush1.msra.mxu0 0.0
    %1641 = vmatprep.subr.mxu0 0.0
    %1642 = vmatpush1.msra.mxu0 0.0
    %1643 = vmatprep.subr.mxu0 0.0
    %1644 = vmatpush1.msra.mxu0 0.0
    %1645 = vmatprep.subr.mxu0 0.0
    %1646 = vmatpush1.msra.mxu0 0.0
    %1647 = vmatprep.subr.mxu0 0.0
    %1648 = vmatpush1.msra.mxu0 0.0
    %1649 = vmatprep.subr.mxu0 0.0
    %1650 = vmatpush1.msra.mxu0 0.0
    %1651 = vmatprep.subr.mxu0 0.0
    %1652 = vmatpush1.msra.mxu0 0.0
    %1653 = vmatprep.subr.mxu0 0.0
    %1654 = vmatpush1.msra.mxu0 0.0
    %1655 = vmatprep.subr.mxu0 0.0
    %1656 = vmatpush1.msra.mxu0 0.0
    %1657 = vmatprep.subr.mxu0 0.0
    %1658 = vmatpush1.msra.mxu0 0.0
    %1659 = vmatprep.subr.mxu0 0.0
    %1660 = vmatpush1.msra.mxu0 0.0
    %1661 = vmatprep.subr.mxu0 0.0
    %1662 = vmatpush1.msra.mxu0 0.0
    %1663 = vmatprep.subr.mxu0 0.0
    %1664 = vmatpush1.msra.mxu0 0.0
    %1665 = vmatprep.subr.mxu0 0.0
    %1666 = vmatpush1.msra.mxu0 0.0
    %1667 = vmatprep.subr.mxu0 0.0
    %1668 = vmatpush1.msra.mxu0 0.0
    %1669 = vmatprep.subr.mxu0 0.0
    %1670 = vmatpush1.msra.mxu0 0.0
    %1671 = vmatprep.subr.mxu0 0.0
    %1672 = vmatpush1.msra.mxu0 0.0
    %1673 = vmatprep.subr.mxu0 0.0
    %1674 = vmatpush1.msra.mxu0 0.0
    %1675 = vmatprep.subr.mxu0 0.0
    %1676 = vmatpush1.msra.mxu0 0.0
    %1677 = vmatprep.subr.mxu0 0.0
    %1678 = vmatpush1.msra.mxu0 0.0
    %1679 = vmatprep.subr.mxu0 0.0
    %1680 = vmatpush1.msra.mxu0 0.0
    %1681 = vmatprep.subr.mxu0 0.0
    %1682 = vmatpush1.msra.mxu0 0.0
    %1683 = vmatprep.subr.mxu0 0.0
    %1684 = vmatpush1.msra.mxu0 0.0
    %1685 = vmatprep.subr.mxu0 0.0
    %1686 = vmatpush1.msra.mxu0 0.0
    %1687 = vmatprep.mubr.f32.mxu0 0.0
    %1688 = vmatmul.mubr.f32.gmra.mrb[0].mxu0 %v1618
    %v1689 = vpop.f32.mrb[0].mxu0
    %v1690 = vadd.f32 0.0, %v1689
    %v1691 = vpop.f32.mrb[0].mxu0
    %1692 = vmatprep.mubr.f32.mxu0 0.0
    %1693 = vmatmul.mubr.f32.gmra.mrb[0].mxu0 %v1621
    %v1694 = vpop.f32.mrb[0].mxu0
    %v1695 = vadd.f32 0.0, %v1694
    %v1696 = vpop.f32.mrb[0].mxu0
    %1697 = vdwg.mxu0
    %v1698 = vpack.c.bf16 %v1695, %v1690
    %s1699 = scalar_lea.vmem [#allocation8], 32
    %v1700 = vld [vmem:[%s1699] sm:$0xf]
    %v1701 = vld [vmem:[%s1699 + $0x4] sm:$0xf]
    %v1704 = vunpack.c.l.b16 %v1700
    %v1705 = vunpack.c.l.b16 %v1701
    %v1706 = vpack.c.b16 %v1705, %v1704
    %v1709 = vsel %vm486, %v1698, 0
    %1711 = vmatprep.subr.bf16.mxu0 0
    %1712 = vmatpush1.bf16.msra.mxu0 %v1706
    %1713 = vmatprep.subr.bf16.mxu0 0
    %1714 = vmatpush1.bf16.msra.mxu0 0
    %1715 = vmatprep.subr.bf16.mxu0 0
    %1716 = vmatpush1.bf16.msra.mxu0 0
    %1717 = vmatprep.subr.bf16.mxu0 0
    %1718 = vmatpush1.bf16.msra.mxu0 0
    %1719 = vmatprep.subr.bf16.mxu0 0
    %1720 = vmatpush1.bf16.msra.mxu0 0
    %1721 = vmatprep.subr.bf16.mxu0 0
    %1722 = vmatpush1.bf16.msra.mxu0 0
    %1723 = vmatprep.subr.bf16.mxu0 0
    %1724 = vmatpush1.bf16.msra.mxu0 0
    %1725 = vmatprep.subr.bf16.mxu0 0
    %1726 = vmatpush1.bf16.msra.mxu0 0
    %1727 = vmatprep.subr.bf16.mxu0 0
    %1728 = vmatpush1.bf16.msra.mxu0 0
    %1729 = vmatprep.subr.bf16.mxu0 0
    %1730 = vmatpush1.bf16.msra.mxu0 0
    %1731 = vmatprep.subr.bf16.mxu0 0
    %1732 = vmatpush1.bf16.msra.mxu0 0
    %1733 = vmatprep.subr.bf16.mxu0 0
    %1734 = vmatpush1.bf16.msra.mxu0 0
    %1735 = vmatprep.subr.bf16.mxu0 0
    %1736 = vmatpush1.bf16.msra.mxu0 0
    %1737 = vmatprep.subr.bf16.mxu0 0
    %1738 = vmatpush1.bf16.msra.mxu0 0
    %1739 = vmatprep.subr.bf16.mxu0 0
    %1740 = vmatpush1.bf16.msra.mxu0 0
    %1741 = vmatprep.subr.bf16.mxu0 0
    %1742 = vmatpush1.bf16.msra.mxu0 0
    %1743 = vmatprep.mubr.bf16.mxu0 0
    %1744 = vmatmul.mubr.bf16.gmra.mrb[0].mxu0 %v1709
    %v1745 = vpop.f32.mrb[0].mxu0
    %v1746 = vadd.f32 0.0, %v1745
    %v1747 = vpop.f32.mrb[0].mxu0
    %v1748 = vpop.f32.mrb[0].mxu0
    %v1749 = vadd.f32 0.0, %v1748
    %v1750 = vpop.f32.mrb[0].mxu0
    %1751 = vdwg.mxu0
    %v1752 = vadd.f32 %v1496, %v1746
    %v1753 = vadd.f32 %v1497, %v1749
    %1754 = vrot.lane.b32.xlu0 %v484, 48
    %v1755 = vpop.permute.xlu0 %1754
    %1756 = vrot.lane.b32.xlu0 %v485, 48
    %v1757 = vpop.permute.xlu0 %1756
    %1758 = vrot.lane.b32.xlu0 %v437, 48
    %v1759 = vpop.permute.xlu0 %1758
    %1760 = vrot.lane.b32.xlu0 %v441, 48
    %v1761 = vpop.permute.xlu0 %1760
    %v1762 = vsel %vm486, %v1755, 0
    %v1764 = vsel %vm486, %v1757, 0
    %v1766 = vsel %vm486, %v1759, 0
    %v1768 = vsel %vm486, %v1761, 0
    %1770 = vmatprep.subr.mxu0 0.0
    %1771 = vmatpush1.xpose.msra.mxu0 %v1766
    %1772 = vmatprep.subr.mxu0 0.0
    %1773 = vmatpush1.xpose.msra.mxu0 %v1768
    %1774 = vmatprep.subr.mxu0 0.0
    %1775 = vmatpush1.xpose.msra.mxu0 0.0
    %1776 = vmatprep.subr.mxu0 0.0
    %1777 = vmatpush1.xpose.msra.mxu0 0.0
    %1778 = vmatprep.subr.mxu0 0.0
    %1779 = vmatpush1.xpose.msra.mxu0 0.0
    %1780 = vmatprep.subr.mxu0 0.0
    %1781 = vmatpush1.xpose.msra.mxu0 0.0
    %1782 = vmatprep.subr.mxu0 0.0
    %1783 = vmatpush1.xpose.msra.mxu0 0.0
    %1784 = vmatprep.subr.mxu0 0.0
    %1785 = vmatpush1.xpose.msra.mxu0 0.0
    %1786 = vmatprep.subr.mxu0 0.0
    %1787 = vmatpush1.xpose.msra.mxu0 0.0
    %1788 = vmatprep.subr.mxu0 0.0
    %1789 = vmatpush1.xpose.msra.mxu0 0.0
    %1790 = vmatprep.subr.mxu0 0.0
    %1791 = vmatpush1.xpose.msra.mxu0 0.0
    %1792 = vmatprep.subr.mxu0 0.0
    %1793 = vmatpush1.xpose.msra.mxu0 0.0
    %1794 = vmatprep.subr.mxu0 0.0
    %1795 = vmatpush1.xpose.msra.mxu0 0.0
    %1796 = vmatprep.subr.mxu0 0.0
    %1797 = vmatpush1.xpose.msra.mxu0 0.0
    %1798 = vmatprep.subr.mxu0 0.0
    %1799 = vmatpush1.xpose.msra.mxu0 0.0
    %1800 = vmatprep.subr.mxu0 0.0
    %1801 = vmatpush1.xpose.msra.mxu0 0.0
    %1802 = vmatprep.subr.mxu0 0.0
    %1803 = vmatpush1.xpose.msra.mxu0 0.0
    %1804 = vmatprep.subr.mxu0 0.0
    %1805 = vmatpush1.xpose.msra.mxu0 0.0
    %1806 = vmatprep.subr.mxu0 0.0
    %1807 = vmatpush1.xpose.msra.mxu0 0.0
    %1808 = vmatprep.subr.mxu0 0.0
    %1809 = vmatpush1.xpose.msra.mxu0 0.0
    %1810 = vmatprep.subr.mxu0 0.0
    %1811 = vmatpush1.xpose.msra.mxu0 0.0
    %1812 = vmatprep.subr.mxu0 0.0
    %1813 = vmatpush1.xpose.msra.mxu0 0.0
    %1814 = vmatprep.subr.mxu0 0.0
    %1815 = vmatpush1.xpose.msra.mxu0 0.0
    %1816 = vmatprep.subr.mxu0 0.0
    %1817 = vmatpush1.xpose.msra.mxu0 0.0
    %1818 = vmatprep.subr.mxu0 0.0
    %1819 = vmatpush1.xpose.msra.mxu0 0.0
    %1820 = vmatprep.subr.mxu0 0.0
    %1821 = vmatpush1.xpose.msra.mxu0 0.0
    %1822 = vmatprep.subr.mxu0 0.0
    %1823 = vmatpush1.xpose.msra.mxu0 0.0
    %1824 = vmatprep.subr.mxu0 0.0
    %1825 = vmatpush1.xpose.msra.mxu0 0.0
    %1826 = vmatprep.subr.mxu0 0.0
    %1827 = vmatpush1.xpose.msra.mxu0 0.0
    %1828 = vmatprep.subr.mxu0 0.0
    %1829 = vmatpush1.xpose.msra.mxu0 0.0
    %1830 = vmatprep.subr.mxu0 0.0
    %1831 = vmatpush1.xpose.msra.mxu0 0.0
    %1832 = vmatprep.subr.mxu0 0.0
    %1833 = vmatpush1.xpose.msra.mxu0 0.0
    %1834 = vmatprep.mubr.f32.mxu0 0.0
    %1835 = vmatmul.mubr.f32.gmra.mrb[0].mxu0 %v1762
    %v1836 = vpop.f32.mrb[0].mxu0
    %v1837 = vadd.f32 %v179, %v1836
    %v1838 = vpop.f32.mrb[0].mxu0
    %1839 = vmatprep.mubr.f32.mxu0 0.0
    %1840 = vmatmul.mubr.f32.gmra.mrb[0].mxu0 %v1764
    %v1841 = vpop.f32.mrb[0].mxu0
    %v1842 = vadd.f32 %v180, %v1841
    %v1843 = vpop.f32.mrb[0].mxu0
    %1844 = vdwg.mxu0
    %v1845 = vsel %vm486, %v1837, -inf
    %1846 = vmax.xlane.f32.xlu0 %v1845
    %v1847 = vpop.xlane.xlu0 %1846
    %v1848 = vsel %vm486, %v1842, -inf
    %1849 = vmax.xlane.f32.xlu0 %v1848
    %v1850 = vpop.xlane.xlu0 %1849
    %v1851 = vsub.f32 %v1837, %v1847
    %v1852 = vsub.f32 %v1842, %v1850
    %v1853 = vmul.f32 %v1851, 1.442695
    %v1854 = vpow.pop %v1853
    %v1855 = vmul.f32 %v1852, 1.442695
    %v1856 = vpow.pop %v1855
    %v1857 = vsel %vm486, %v1854, 0.0
    %1858 = vadd.xlane.f32.xlu0 %v1857
    %v1859 = vpop.xlane.xlu0 %1858
    %v1860 = vsel %vm486, %v1856, 0.0
    %1861 = vadd.xlane.f32.xlu0 %v1860
    %v1862 = vpop.xlane.xlu0 %1861
    %v1863 = vrcp.pop %v1859
    %v1864 = vrcp.pop %v1862
    %v1865 = vmul.f32 %v1854, %v1863
    %v1866 = vmul.f32 %v1856, %v1864
    %1867 = vrot.lane.b32.xlu0 %v478, 48
    %v1868 = vpop.permute.xlu0 %1867
    %1869 = vrot.lane.b32.xlu0 %v481, 48
    %v1870 = vpop.permute.xlu0 %1869
    %v1874 = vsel %vm486, %v1865, 0
    %v1877 = vsel %vm486, %v1866, 0
    %1879 = vmatprep.subr.mxu0 0.0
    %1880 = vmatpush1.msra.mxu0 %v1868
    %1881 = vmatprep.subr.mxu0 0.0
    %1882 = vmatpush1.msra.mxu0 %v1870
    %1883 = vmatprep.subr.mxu0 0.0
    %1884 = vmatpush1.msra.mxu0 0.0
    %1885 = vmatprep.subr.mxu0 0.0
    %1886 = vmatpush1.msra.mxu0 0.0
    %1887 = vmatprep.subr.mxu0 0.0
    %1888 = vmatpush1.msra.mxu0 0.0
    %1889 = vmatprep.subr.mxu0 0.0
    %1890 = vmatpush1.msra.mxu0 0.0
    %1891 = vmatprep.subr.mxu0 0.0
    %1892 = vmatpush1.msra.mxu0 0.0
    %1893 = vmatprep.subr.mxu0 0.0
    %1894 = vmatpush1.msra.mxu0 0.0
    %1895 = vmatprep.subr.mxu0 0.0
    %1896 = vmatpush1.msra.mxu0 0.0
    %1897 = vmatprep.subr.mxu0 0.0
    %1898 = vmatpush1.msra.mxu0 0.0
    %1899 = vmatprep.subr.mxu0 0.0
    %1900 = vmatpush1.msra.mxu0 0.0
    %1901 = vmatprep.subr.mxu0 0.0
    %1902 = vmatpush1.msra.mxu0 0.0
    %1903 = vmatprep.subr.mxu0 0.0
    %1904 = vmatpush1.msra.mxu0 0.0
    %1905 = vmatprep.subr.mxu0 0.0
    %1906 = vmatpush1.msra.mxu0 0.0
    %1907 = vmatprep.subr.mxu0 0.0
    %1908 = vmatpush1.msra.mxu0 0.0
    %1909 = vmatprep.subr.mxu0 0.0
    %1910 = vmatpush1.msra.mxu0 0.0
    %1911 = vmatprep.subr.mxu0 0.0
    %1912 = vmatpush1.msra.mxu0 0.0
    %1913 = vmatprep.subr.mxu0 0.0
    %1914 = vmatpush1.msra.mxu0 0.0
    %1915 = vmatprep.subr.mxu0 0.0
    %1916 = vmatpush1.msra.mxu0 0.0
    %1917 = vmatprep.subr.mxu0 0.0
    %1918 = vmatpush1.msra.mxu0 0.0
    %1919 = vmatprep.subr.mxu0 0.0
    %1920 = vmatpush1.msra.mxu0 0.0
    %1921 = vmatprep.subr.mxu0 0.0
    %1922 = vmatpush1.msra.mxu0 0.0
    %1923 = vmatprep.subr.mxu0 0.0
    %1924 = vmatpush1.msra.mxu0 0.0
    %1925 = vmatprep.subr.mxu0 0.0
    %1926 = vmatpush1.msra.mxu0 0.0
    %1927 = vmatprep.subr.mxu0 0.0
    %1928 = vmatpush1.msra.mxu0 0.0
    %1929 = vmatprep.subr.mxu0 0.0
    %1930 = vmatpush1.msra.mxu0 0.0
    %1931 = vmatprep.subr.mxu0 0.0
    %1932 = vmatpush1.msra.mxu0 0.0
    %1933 = vmatprep.subr.mxu0 0.0
    %1934 = vmatpush1.msra.mxu0 0.0
    %1935 = vmatprep.subr.mxu0 0.0
    %1936 = vmatpush1.msra.mxu0 0.0
    %1937 = vmatprep.subr.mxu0 0.0
    %1938 = vmatpush1.msra.mxu0 0.0
    %1939 = vmatprep.subr.mxu0 0.0
    %1940 = vmatpush1.msra.mxu0 0.0
    %1941 = vmatprep.subr.mxu0 0.0
    %1942 = vmatpush1.msra.mxu0 0.0
    %1943 = vmatprep.mubr.f32.mxu0 0.0
    %1944 = vmatmul.mubr.f32.gmra.mrb[0].mxu0 %v1874
    %v1945 = vpop.f32.mrb[0].mxu0
    %v1946 = vadd.f32 0.0, %v1945
    %v1947 = vpop.f32.mrb[0].mxu0
    %1948 = vmatprep.mubr.f32.mxu0 0.0
    %1949 = vmatmul.mubr.f32.gmra.mrb[0].mxu0 %v1877
    %v1950 = vpop.f32.mrb[0].mxu0
    %v1951 = vadd.f32 0.0, %v1950
    %v1952 = vpop.f32.mrb[0].mxu0
    %1953 = vdwg.mxu0
    %v1954 = vpack.c.bf16 %v1951, %v1946
    %s1955 = scalar_lea.vmem [#allocation8], 40
    %v1956 = vld [vmem:[%s1955] sm:$0xf]
    %v1957 = vld [vmem:[%s1955 + $0x4] sm:$0xf]
    %v1960 = vunpack.c.l.b16 %v1956
    %v1961 = vunpack.c.l.b16 %v1957
    %v1962 = vpack.c.b16 %v1961, %v1960
    %v1965 = vsel %vm486, %v1954, 0
    %1967 = vmatprep.subr.bf16.mxu0 0
    %1968 = vmatpush1.bf16.msra.mxu0 %v1962
    %1969 = vmatprep.subr.bf16.mxu0 0
    %1970 = vmatpush1.bf16.msra.mxu0 0
    %1971 = vmatprep.subr.bf16.mxu0 0
    %1972 = vmatpush1.bf16.msra.mxu0 0
    %1973 = vmatprep.subr.bf16.mxu0 0
    %1974 = vmatpush1.bf16.msra.mxu0 0
    %1975 = vmatprep.subr.bf16.mxu0 0
    %1976 = vmatpush1.bf16.msra.mxu0 0
    %1977 = vmatprep.subr.bf16.mxu0 0
    %1978 = vmatpush1.bf16.msra.mxu0 0
    %1979 = vmatprep.subr.bf16.mxu0 0
    %1980 = vmatpush1.bf16.msra.mxu0 0
    %1981 = vmatprep.subr.bf16.mxu0 0
    %1982 = vmatpush1.bf16.msra.mxu0 0
    %1983 = vmatprep.subr.bf16.mxu0 0
    %1984 = vmatpush1.bf16.msra.mxu0 0
    %1985 = vmatprep.subr.bf16.mxu0 0
    %1986 = vmatpush1.bf16.msra.mxu0 0
    %1987 = vmatprep.subr.bf16.mxu0 0
    %1988 = vmatpush1.bf16.msra.mxu0 0
    %1989 = vmatprep.subr.bf16.mxu0 0
    %1990 = vmatpush1.bf16.msra.mxu0 0
    %1991 = vmatprep.subr.bf16.mxu0 0
    %1992 = vmatpush1.bf16.msra.mxu0 0
    %1993 = vmatprep.subr.bf16.mxu0 0
    %1994 = vmatpush1.bf16.msra.mxu0 0
    %1995 = vmatprep.subr.bf16.mxu0 0
    %1996 = vmatpush1.bf16.msra.mxu0 0
    %1997 = vmatprep.subr.bf16.mxu0 0
    %1998 = vmatpush1.bf16.msra.mxu0 0
    %1999 = vmatprep.mubr.bf16.mxu0 0
    %2000 = vmatmul.mubr.bf16.gmra.mrb[0].mxu0 %v1965
    %v2001 = vpop.f32.mrb[0].mxu0
    %v2002 = vadd.f32 0.0, %v2001
    %v2003 = vpop.f32.mrb[0].mxu0
    %v2004 = vpop.f32.mrb[0].mxu0
    %v2005 = vadd.f32 0.0, %v2004
    %v2006 = vpop.f32.mrb[0].mxu0
    %2007 = vdwg.mxu0
    %v2008 = vadd.f32 %v1752, %v2002
    %v2009 = vadd.f32 %v1753, %v2005
    %2010 = vrot.lane.b32.xlu0 %v484, 32
    %v2011 = vpop.permute.xlu0 %2010
    %2012 = vrot.lane.b32.xlu0 %v485, 32
    %v2013 = vpop.permute.xlu0 %2012
    %2014 = vrot.lane.b32.xlu0 %v437, 32
    %v2015 = vpop.permute.xlu0 %2014
    %2016 = vrot.lane.b32.xlu0 %v441, 32
    %v2017 = vpop.permute.xlu0 %2016
    %v2018 = vsel %vm486, %v2011, 0
    %v2020 = vsel %vm486, %v2013, 0
    %v2022 = vsel %vm486, %v2015, 0
    %v2024 = vsel %vm486, %v2017, 0
    %2026 = vmatprep.subr.mxu0 0.0
    %2027 = vmatpush1.xpose.msra.mxu0 %v2022
    %2028 = vmatprep.subr.mxu0 0.0
    %2029 = vmatpush1.xpose.msra.mxu0 %v2024
    %2030 = vmatprep.subr.mxu0 0.0
    %2031 = vmatpush1.xpose.msra.mxu0 0.0
    %2032 = vmatprep.subr.mxu0 0.0
    %2033 = vmatpush1.xpose.msra.mxu0 0.0
    %2034 = vmatprep.subr.mxu0 0.0
    %2035 = vmatpush1.xpose.msra.mxu0 0.0
    %2036 = vmatprep.subr.mxu0 0.0
    %2037 = vmatpush1.xpose.msra.mxu0 0.0
    %2038 = vmatprep.subr.mxu0 0.0
    %2039 = vmatpush1.xpose.msra.mxu0 0.0
    %2040 = vmatprep.subr.mxu0 0.0
    %2041 = vmatpush1.xpose.msra.mxu0 0.0
    %2042 = vmatprep.subr.mxu0 0.0
    %2043 = vmatpush1.xpose.msra.mxu0 0.0
    %2044 = vmatprep.subr.mxu0 0.0
    %2045 = vmatpush1.xpose.msra.mxu0 0.0
    %2046 = vmatprep.subr.mxu0 0.0
    %2047 = vmatpush1.xpose.msra.mxu0 0.0
    %2048 = vmatprep.subr.mxu0 0.0
    %2049 = vmatpush1.xpose.msra.mxu0 0.0
    %2050 = vmatprep.subr.mxu0 0.0
    %2051 = vmatpush1.xpose.msra.mxu0 0.0
    %2052 = vmatprep.subr.mxu0 0.0
    %2053 = vmatpush1.xpose.msra.mxu0 0.0
    %2054 = vmatprep.subr.mxu0 0.0
    %2055 = vmatpush1.xpose.msra.mxu0 0.0
    %2056 = vmatprep.subr.mxu0 0.0
    %2057 = vmatpush1.xpose.msra.mxu0 0.0
    %2058 = vmatprep.subr.mxu0 0.0
    %2059 = vmatpush1.xpose.msra.mxu0 0.0
    %2060 = vmatprep.subr.mxu0 0.0
    %2061 = vmatpush1.xpose.msra.mxu0 0.0
    %2062 = vmatprep.subr.mxu0 0.0
    %2063 = vmatpush1.xpose.msra.mxu0 0.0
    %2064 = vmatprep.subr.mxu0 0.0
    %2065 = vmatpush1.xpose.msra.mxu0 0.0
    %2066 = vmatprep.subr.mxu0 0.0
    %2067 = vmatpush1.xpose.msra.mxu0 0.0
    %2068 = vmatprep.subr.mxu0 0.0
    %2069 = vmatpush1.xpose.msra.mxu0 0.0
    %2070 = vmatprep.subr.mxu0 0.0
    %2071 = vmatpush1.xpose.msra.mxu0 0.0
    %2072 = vmatprep.subr.mxu0 0.0
    %2073 = vmatpush1.xpose.msra.mxu0 0.0
    %2074 = vmatprep.subr.mxu0 0.0
    %2075 = vmatpush1.xpose.msra.mxu0 0.0
    %2076 = vmatprep.subr.mxu0 0.0
    %2077 = vmatpush1.xpose.msra.mxu0 0.0
    %2078 = vmatprep.subr.mxu0 0.0
    %2079 = vmatpush1.xpose.msra.mxu0 0.0
    %2080 = vmatprep.subr.mxu0 0.0
    %2081 = vmatpush1.xpose.msra.mxu0 0.0
    %2082 = vmatprep.subr.mxu0 0.0
    %2083 = vmatpush1.xpose.msra.mxu0 0.0
    %2084 = vmatprep.subr.mxu0 0.0
    %2085 = vmatpush1.xpose.msra.mxu0 0.0
    %2086 = vmatprep.subr.mxu0 0.0
    %2087 = vmatpush1.xpose.msra.mxu0 0.0
    %2088 = vmatprep.subr.mxu0 0.0
    %2089 = vmatpush1.xpose.msra.mxu0 0.0
    %2090 = vmatprep.mubr.f32.mxu0 0.0
    %2091 = vmatmul.mubr.f32.gmra.mrb[0].mxu0 %v2018
    %v2092 = vpop.f32.mrb[0].mxu0
    %v2093 = vadd.f32 %v179, %v2092
    %v2094 = vpop.f32.mrb[0].mxu0
    %2095 = vmatprep.mubr.f32.mxu0 0.0
    %2096 = vmatmul.mubr.f32.gmra.mrb[0].mxu0 %v2020
    %v2097 = vpop.f32.mrb[0].mxu0
    %v2098 = vadd.f32 %v180, %v2097
    %v2099 = vpop.f32.mrb[0].mxu0
    %2100 = vdwg.mxu0
    %v2101 = vsel %vm486, %v2093, -inf
    %2102 = vmax.xlane.f32.xlu0 %v2101
    %v2103 = vpop.xlane.xlu0 %2102
    %v2104 = vsel %vm486, %v2098, -inf
    %2105 = vmax.xlane.f32.xlu0 %v2104
    %v2106 = vpop.xlane.xlu0 %2105
    %v2107 = vsub.f32 %v2093, %v2103
    %v2108 = vsub.f32 %v2098, %v2106
    %v2109 = vmul.f32 %v2107, 1.442695
    %v2110 = vpow.pop %v2109
    %v2111 = vmul.f32 %v2108, 1.442695
    %v2112 = vpow.pop %v2111
    %v2113 = vsel %vm486, %v2110, 0.0
    %2114 = vadd.xlane.f32.xlu0 %v2113
    %v2115 = vpop.xlane.xlu0 %2114
    %v2116 = vsel %vm486, %v2112, 0.0
    %2117 = vadd.xlane.f32.xlu0 %v2116
    %v2118 = vpop.xlane.xlu0 %2117
    %v2119 = vrcp.pop %v2115
    %v2120 = vrcp.pop %v2118
    %v2121 = vmul.f32 %v2110, %v2119
    %v2122 = vmul.f32 %v2112, %v2120
    %2123 = vrot.lane.b32.xlu0 %v478, 32
    %v2124 = vpop.permute.xlu0 %2123
    %2125 = vrot.lane.b32.xlu0 %v481, 32
    %v2126 = vpop.permute.xlu0 %2125
    %v2130 = vsel %vm486, %v2121, 0
    %v2133 = vsel %vm486, %v2122, 0
    %2135 = vmatprep.subr.mxu0 0.0
    %2136 = vmatpush1.msra.mxu0 %v2124
    %2137 = vmatprep.subr.mxu0 0.0
    %2138 = vmatpush1.msra.mxu0 %v2126
    %2139 = vmatprep.subr.mxu0 0.0
    %2140 = vmatpush1.msra.mxu0 0.0
    %2141 = vmatprep.subr.mxu0 0.0
    %2142 = vmatpush1.msra.mxu0 0.0
    %2143 = vmatprep.subr.mxu0 0.0
    %2144 = vmatpush1.msra.mxu0 0.0
    %2145 = vmatprep.subr.mxu0 0.0
    %2146 = vmatpush1.msra.mxu0 0.0
    %2147 = vmatprep.subr.mxu0 0.0
    %2148 = vmatpush1.msra.mxu0 0.0
    %2149 = vmatprep.subr.mxu0 0.0
    %2150 = vmatpush1.msra.mxu0 0.0
    %2151 = vmatprep.subr.mxu0 0.0
    %2152 = vmatpush1.msra.mxu0 0.0
    %2153 = vmatprep.subr.mxu0 0.0
    %2154 = vmatpush1.msra.mxu0 0.0
    %2155 = vmatprep.subr.mxu0 0.0
    %2156 = vmatpush1.msra.mxu0 0.0
    %2157 = vmatprep.subr.mxu0 0.0
    %2158 = vmatpush1.msra.mxu0 0.0
    %2159 = vmatprep.subr.mxu0 0.0
    %2160 = vmatpush1.msra.mxu0 0.0
    %2161 = vmatprep.subr.mxu0 0.0
    %2162 = vmatpush1.msra.mxu0 0.0
    %2163 = vmatprep.subr.mxu0 0.0
    %2164 = vmatpush1.msra.mxu0 0.0
    %2165 = vmatprep.subr.mxu0 0.0
    %2166 = vmatpush1.msra.mxu0 0.0
    %2167 = vmatprep.subr.mxu0 0.0
    %2168 = vmatpush1.msra.mxu0 0.0
    %2169 = vmatprep.subr.mxu0 0.0
    %2170 = vmatpush1.msra.mxu0 0.0
    %2171 = vmatprep.subr.mxu0 0.0
    %2172 = vmatpush1.msra.mxu0 0.0
    %2173 = vmatprep.subr.mxu0 0.0
    %2174 = vmatpush1.msra.mxu0 0.0
    %2175 = vmatprep.subr.mxu0 0.0
    %2176 = vmatpush1.msra.mxu0 0.0
    %2177 = vmatprep.subr.mxu0 0.0
    %2178 = vmatpush1.msra.mxu0 0.0
    %2179 = vmatprep.subr.mxu0 0.0
    %2180 = vmatpush1.msra.mxu0 0.0
    %2181 = vmatprep.subr.mxu0 0.0
    %2182 = vmatpush1.msra.mxu0 0.0
    %2183 = vmatprep.subr.mxu0 0.0
    %2184 = vmatpush1.msra.mxu0 0.0
    %2185 = vmatprep.subr.mxu0 0.0
    %2186 = vmatpush1.msra.mxu0 0.0
    %2187 = vmatprep.subr.mxu0 0.0
    %2188 = vmatpush1.msra.mxu0 0.0
    %2189 = vmatprep.subr.mxu0 0.0
    %2190 = vmatpush1.msra.mxu0 0.0
    %2191 = vmatprep.subr.mxu0 0.0
    %2192 = vmatpush1.msra.mxu0 0.0
    %2193 = vmatprep.subr.mxu0 0.0
    %2194 = vmatpush1.msra.mxu0 0.0
    %2195 = vmatprep.subr.mxu0 0.0
    %2196 = vmatpush1.msra.mxu0 0.0
    %2197 = vmatprep.subr.mxu0 0.0
    %2198 = vmatpush1.msra.mxu0 0.0
    %2199 = vmatprep.mubr.f32.mxu0 0.0
    %2200 = vmatmul.mubr.f32.gmra.mrb[0].mxu0 %v2130
    %v2201 = vpop.f32.mrb[0].mxu0
    %v2202 = vadd.f32 0.0, %v2201
    %v2203 = vpop.f32.mrb[0].mxu0
    %2204 = vmatprep.mubr.f32.mxu0 0.0
    %2205 = vmatmul.mubr.f32.gmra.mrb[0].mxu0 %v2133
    %v2206 = vpop.f32.mrb[0].mxu0
    %v2207 = vadd.f32 0.0, %v2206
    %v2208 = vpop.f32.mrb[0].mxu0
    %2209 = vdwg.mxu0
    %v2210 = vpack.c.bf16 %v2207, %v2202
    %s2211 = scalar_lea.vmem [#allocation8], 48
    %v2212 = vld [vmem:[%s2211] sm:$0xf]
    %v2213 = vld [vmem:[%s2211 + $0x4] sm:$0xf]
    %v2216 = vunpack.c.l.b16 %v2212
    %v2217 = vunpack.c.l.b16 %v2213
    %v2218 = vpack.c.b16 %v2217, %v2216
    %v2221 = vsel %vm486, %v2210, 0
    %2223 = vmatprep.subr.bf16.mxu0 0
    %2224 = vmatpush1.bf16.msra.mxu0 %v2218
    %2225 = vmatprep.subr.bf16.mxu0 0
    %2226 = vmatpush1.bf16.msra.mxu0 0
    %2227 = vmatprep.subr.bf16.mxu0 0
    %2228 = vmatpush1.bf16.msra.mxu0 0
    %2229 = vmatprep.subr.bf16.mxu0 0
    %2230 = vmatpush1.bf16.msra.mxu0 0
    %2231 = vmatprep.subr.bf16.mxu0 0
    %2232 = vmatpush1.bf16.msra.mxu0 0
    %2233 = vmatprep.subr.bf16.mxu0 0
    %2234 = vmatpush1.bf16.msra.mxu0 0
    %2235 = vmatprep.subr.bf16.mxu0 0
    %2236 = vmatpush1.bf16.msra.mxu0 0
    %2237 = vmatprep.subr.bf16.mxu0 0
    %2238 = vmatpush1.bf16.msra.mxu0 0
    %2239 = vmatprep.subr.bf16.mxu0 0
    %2240 = vmatpush1.bf16.msra.mxu0 0
    %2241 = vmatprep.subr.bf16.mxu0 0
    %2242 = vmatpush1.bf16.msra.mxu0 0
    %2243 = vmatprep.subr.bf16.mxu0 0
    %2244 = vmatpush1.bf16.msra.mxu0 0
    %2245 = vmatprep.subr.bf16.mxu0 0
    %2246 = vmatpush1.bf16.msra.mxu0 0
    %2247 = vmatprep.subr.bf16.mxu0 0
    %2248 = vmatpush1.bf16.msra.mxu0 0
    %2249 = vmatprep.subr.bf16.mxu0 0
    %2250 = vmatpush1.bf16.msra.mxu0 0
    %2251 = vmatprep.subr.bf16.mxu0 0
    %2252 = vmatpush1.bf16.msra.mxu0 0
    %2253 = vmatprep.subr.bf16.mxu0 0
    %2254 = vmatpush1.bf16.msra.mxu0 0
    %2255 = vmatprep.mubr.bf16.mxu0 0
    %2256 = vmatmul.mubr.bf16.gmra.mrb[0].mxu0 %v2221
    %v2257 = vpop.f32.mrb[0].mxu0
    %v2258 = vadd.f32 0.0, %v2257
    %v2259 = vpop.f32.mrb[0].mxu0
    %v2260 = vpop.f32.mrb[0].mxu0
    %v2261 = vadd.f32 0.0, %v2260
    %v2262 = vpop.f32.mrb[0].mxu0
    %2263 = vdwg.mxu0
    %v2264 = vadd.f32 %v2008, %v2258
    %v2265 = vadd.f32 %v2009, %v2261
    %2266 = vrot.lane.b32.xlu0 %v484, 16
    %v2267 = vpop.permute.xlu0 %2266
    %2268 = vrot.lane.b32.xlu0 %v485, 16
    %v2269 = vpop.permute.xlu0 %2268
    %2270 = vrot.lane.b32.xlu0 %v437, 16
    %v2271 = vpop.permute.xlu0 %2270
    %2272 = vrot.lane.b32.xlu0 %v441, 16
    %v2273 = vpop.permute.xlu0 %2272
    %v2274 = vsel %vm486, %v2267, 0
    %v2276 = vsel %vm486, %v2269, 0
    %v2278 = vsel %vm486, %v2271, 0
    %v2280 = vsel %vm486, %v2273, 0
    %2282 = vmatprep.subr.mxu0 0.0
    %2283 = vmatpush1.xpose.msra.mxu0 %v2278
    %2284 = vmatprep.subr.mxu0 0.0
    %2285 = vmatpush1.xpose.msra.mxu0 %v2280
    %2286 = vmatprep.subr.mxu0 0.0
    %2287 = vmatpush1.xpose.msra.mxu0 0.0
    %2288 = vmatprep.subr.mxu0 0.0
    %2289 = vmatpush1.xpose.msra.mxu0 0.0
    %2290 = vmatprep.subr.mxu0 0.0
    %2291 = vmatpush1.xpose.msra.mxu0 0.0
    %2292 = vmatprep.subr.mxu0 0.0
    %2293 = vmatpush1.xpose.msra.mxu0 0.0
    %2294 = vmatprep.subr.mxu0 0.0
    %2295 = vmatpush1.xpose.msra.mxu0 0.0
    %2296 = vmatprep.subr.mxu0 0.0
    %2297 = vmatpush1.xpose.msra.mxu0 0.0
    %2298 = vmatprep.subr.mxu0 0.0
    %2299 = vmatpush1.xpose.msra.mxu0 0.0
    %2300 = vmatprep.subr.mxu0 0.0
    %2301 = vmatpush1.xpose.msra.mxu0 0.0
    %2302 = vmatprep.subr.mxu0 0.0
    %2303 = vmatpush1.xpose.msra.mxu0 0.0
    %2304 = vmatprep.subr.mxu0 0.0
    %2305 = vmatpush1.xpose.msra.mxu0 0.0
    %2306 = vmatprep.subr.mxu0 0.0
    %2307 = vmatpush1.xpose.msra.mxu0 0.0
    %2308 = vmatprep.subr.mxu0 0.0
    %2309 = vmatpush1.xpose.msra.mxu0 0.0
    %2310 = vmatprep.subr.mxu0 0.0
    %2311 = vmatpush1.xpose.msra.mxu0 0.0
    %2312 = vmatprep.subr.mxu0 0.0
    %2313 = vmatpush1.xpose.msra.mxu0 0.0
    %2314 = vmatprep.subr.mxu0 0.0
    %2315 = vmatpush1.xpose.msra.mxu0 0.0
    %2316 = vmatprep.subr.mxu0 0.0
    %2317 = vmatpush1.xpose.msra.mxu0 0.0
    %2318 = vmatprep.subr.mxu0 0.0
    %2319 = vmatpush1.xpose.msra.mxu0 0.0
    %2320 = vmatprep.subr.mxu0 0.0
    %2321 = vmatpush1.xpose.msra.mxu0 0.0
    %2322 = vmatprep.subr.mxu0 0.0
    %2323 = vmatpush1.xpose.msra.mxu0 0.0
    %2324 = vmatprep.subr.mxu0 0.0
    %2325 = vmatpush1.xpose.msra.mxu0 0.0
    %2326 = vmatprep.subr.mxu0 0.0
    %2327 = vmatpush1.xpose.msra.mxu0 0.0
    %2328 = vmatprep.subr.mxu0 0.0
    %2329 = vmatpush1.xpose.msra.mxu0 0.0
    %2330 = vmatprep.subr.mxu0 0.0
    %2331 = vmatpush1.xpose.msra.mxu0 0.0
    %2332 = vmatprep.subr.mxu0 0.0
    %2333 = vmatpush1.xpose.msra.mxu0 0.0
    %2334 = vmatprep.subr.mxu0 0.0
    %2335 = vmatpush1.xpose.msra.mxu0 0.0
    %2336 = vmatprep.subr.mxu0 0.0
    %2337 = vmatpush1.xpose.msra.mxu0 0.0
    %2338 = vmatprep.subr.mxu0 0.0
    %2339 = vmatpush1.xpose.msra.mxu0 0.0
    %2340 = vmatprep.subr.mxu0 0.0
    %2341 = vmatpush1.xpose.msra.mxu0 0.0
    %2342 = vmatprep.subr.mxu0 0.0
    %2343 = vmatpush1.xpose.msra.mxu0 0.0
    %2344 = vmatprep.subr.mxu0 0.0
    %2345 = vmatpush1.xpose.msra.mxu0 0.0
    %2346 = vmatprep.mubr.f32.mxu0 0.0
    %2347 = vmatmul.mubr.f32.gmra.mrb[0].mxu0 %v2274
    %v2348 = vpop.f32.mrb[0].mxu0
    %v2349 = vadd.f32 %v179, %v2348
    %v2350 = vpop.f32.mrb[0].mxu0
    %2351 = vmatprep.mubr.f32.mxu0 0.0
    %2352 = vmatmul.mubr.f32.gmra.mrb[0].mxu0 %v2276
    %v2353 = vpop.f32.mrb[0].mxu0
    %v2354 = vadd.f32 %v180, %v2353
    %v2355 = vpop.f32.mrb[0].mxu0
    %2356 = vdwg.mxu0
    %v2357 = vsel %vm486, %v2349, -inf
    %2358 = vmax.xlane.f32.xlu0 %v2357
    %v2359 = vpop.xlane.xlu0 %2358
    %v2360 = vsel %vm486, %v2354, -inf
    %2361 = vmax.xlane.f32.xlu0 %v2360
    %v2362 = vpop.xlane.xlu0 %2361
    %v2363 = vsub.f32 %v2349, %v2359
    %v2364 = vsub.f32 %v2354, %v2362
    %v2365 = vmul.f32 %v2363, 1.442695
    %v2366 = vpow.pop %v2365
    %v2367 = vmul.f32 %v2364, 1.442695
    %v2368 = vpow.pop %v2367
    %v2369 = vsel %vm486, %v2366, 0.0
    %2370 = vadd.xlane.f32.xlu0 %v2369
    %v2371 = vpop.xlane.xlu0 %2370
    %v2372 = vsel %vm486, %v2368, 0.0
    %2373 = vadd.xlane.f32.xlu0 %v2372
    %v2374 = vpop.xlane.xlu0 %2373
    %v2375 = vrcp.pop %v2371
    %v2376 = vrcp.pop %v2374
    %v2377 = vmul.f32 %v2366, %v2375
    %v2378 = vmul.f32 %v2368, %v2376
    %2379 = vrot.lane.b32.xlu0 %v478, 16
    %v2380 = vpop.permute.xlu0 %2379
    %2381 = vrot.lane.b32.xlu0 %v481, 16
    %v2382 = vpop.permute.xlu0 %2381
    %v2386 = vsel %vm486, %v2377, 0
    %v2389 = vsel %vm486, %v2378, 0
    %2391 = vmatprep.subr.mxu0 0.0
    %2392 = vmatpush1.msra.mxu0 %v2380
    %2393 = vmatprep.subr.mxu0 0.0
    %2394 = vmatpush1.msra.mxu0 %v2382
    %2395 = vmatprep.subr.mxu0 0.0
    %2396 = vmatpush1.msra.mxu0 0.0
    %2397 = vmatprep.subr.mxu0 0.0
    %2398 = vmatpush1.msra.mxu0 0.0
    %2399 = vmatprep.subr.mxu0 0.0
    %2400 = vmatpush1.msra.mxu0 0.0
    %2401 = vmatprep.subr.mxu0 0.0
    %2402 = vmatpush1.msra.mxu0 0.0
    %2403 = vmatprep.subr.mxu0 0.0
    %2404 = vmatpush1.msra.mxu0 0.0
    %2405 = vmatprep.subr.mxu0 0.0
    %2406 = vmatpush1.msra.mxu0 0.0
    %2407 = vmatprep.subr.mxu0 0.0
    %2408 = vmatpush1.msra.mxu0 0.0
    %2409 = vmatprep.subr.mxu0 0.0
    %2410 = vmatpush1.msra.mxu0 0.0
    %2411 = vmatprep.subr.mxu0 0.0
    %2412 = vmatpush1.msra.mxu0 0.0
    %2413 = vmatprep.subr.mxu0 0.0
    %2414 = vmatpush1.msra.mxu0 0.0
    %2415 = vmatprep.subr.mxu0 0.0
    %2416 = vmatpush1.msra.mxu0 0.0
    %2417 = vmatprep.subr.mxu0 0.0
    %2418 = vmatpush1.msra.mxu0 0.0
    %2419 = vmatprep.subr.mxu0 0.0
    %2420 = vmatpush1.msra.mxu0 0.0
    %2421 = vmatprep.subr.mxu0 0.0
    %2422 = vmatpush1.msra.mxu0 0.0
    %2423 = vmatprep.subr.mxu0 0.0
    %2424 = vmatpush1.msra.mxu0 0.0
    %2425 = vmatprep.subr.mxu0 0.0
    %2426 = vmatpush1.msra.mxu0 0.0
    %2427 = vmatprep.subr.mxu0 0.0
    %2428 = vmatpush1.msra.mxu0 0.0
    %2429 = vmatprep.subr.mxu0 0.0
    %2430 = vmatpush1.msra.mxu0 0.0
    %2431 = vmatprep.subr.mxu0 0.0
    %2432 = vmatpush1.msra.mxu0 0.0
    %2433 = vmatprep.subr.mxu0 0.0
    %2434 = vmatpush1.msra.mxu0 0.0
    %2435 = vmatprep.subr.mxu0 0.0
    %2436 = vmatpush1.msra.mxu0 0.0
    %2437 = vmatprep.subr.mxu0 0.0
    %2438 = vmatpush1.msra.mxu0 0.0
    %2439 = vmatprep.subr.mxu0 0.0
    %2440 = vmatpush1.msra.mxu0 0.0
    %2441 = vmatprep.subr.mxu0 0.0
    %2442 = vmatpush1.msra.mxu0 0.0
    %2443 = vmatprep.subr.mxu0 0.0
    %2444 = vmatpush1.msra.mxu0 0.0
    %2445 = vmatprep.subr.mxu0 0.0
    %2446 = vmatpush1.msra.mxu0 0.0
    %2447 = vmatprep.subr.mxu0 0.0
    %2448 = vmatpush1.msra.mxu0 0.0
    %2449 = vmatprep.subr.mxu0 0.0
    %2450 = vmatpush1.msra.mxu0 0.0
    %2451 = vmatprep.subr.mxu0 0.0
    %2452 = vmatpush1.msra.mxu0 0.0
    %2453 = vmatprep.subr.mxu0 0.0
    %2454 = vmatpush1.msra.mxu0 0.0
    %2455 = vmatprep.mubr.f32.mxu0 0.0
    %2456 = vmatmul.mubr.f32.gmra.mrb[0].mxu0 %v2386
    %v2457 = vpop.f32.mrb[0].mxu0
    %v2458 = vadd.f32 0.0, %v2457
    %v2459 = vpop.f32.mrb[0].mxu0
    %2460 = vmatprep.mubr.f32.mxu0 0.0
    %2461 = vmatmul.mubr.f32.gmra.mrb[0].mxu0 %v2389
    %v2462 = vpop.f32.mrb[0].mxu0
    %v2463 = vadd.f32 0.0, %v2462
    %v2464 = vpop.f32.mrb[0].mxu0
    %2465 = vdwg.mxu0
    %v2466 = vpack.c.bf16 %v2463, %v2458
    %s2467 = scalar_lea.vmem [#allocation8], 56
    %v2468 = vld [vmem:[%s2467] sm:$0xf]
    %v2469 = vld [vmem:[%s2467 + $0x4] sm:$0xf]
    %v2472 = vunpack.c.l.b16 %v2468
    %v2473 = vunpack.c.l.b16 %v2469
    %v2474 = vpack.c.b16 %v2473, %v2472
    %v2477 = vsel %vm486, %v2466, 0
    %2479 = vmatprep.subr.bf16.mxu0 0
    %2480 = vmatpush1.bf16.msra.mxu0 %v2474
    %2481 = vmatprep.subr.bf16.mxu0 0
    %2482 = vmatpush1.bf16.msra.mxu0 0
    %2483 = vmatprep.subr.bf16.mxu0 0
    %2484 = vmatpush1.bf16.msra.mxu0 0
    %2485 = vmatprep.subr.bf16.mxu0 0
    %2486 = vmatpush1.bf16.msra.mxu0 0
    %2487 = vmatprep.subr.bf16.mxu0 0
    %2488 = vmatpush1.bf16.msra.mxu0 0
    %2489 = vmatprep.subr.bf16.mxu0 0
    %2490 = vmatpush1.bf16.msra.mxu0 0
    %2491 = vmatprep.subr.bf16.mxu0 0
    %2492 = vmatpush1.bf16.msra.mxu0 0
    %2493 = vmatprep.subr.bf16.mxu0 0
    %2494 = vmatpush1.bf16.msra.mxu0 0
    %2495 = vmatprep.subr.bf16.mxu0 0
    %2496 = vmatpush1.bf16.msra.mxu0 0
    %2497 = vmatprep.subr.bf16.mxu0 0
    %2498 = vmatpush1.bf16.msra.mxu0 0
    %2499 = vmatprep.subr.bf16.mxu0 0
    %2500 = vmatpush1.bf16.msra.mxu0 0
    %2501 = vmatprep.subr.bf16.mxu0 0
    %2502 = vmatpush1.bf16.msra.mxu0 0
    %2503 = vmatprep.subr.bf16.mxu0 0
    %2504 = vmatpush1.bf16.msra.mxu0 0
    %2505 = vmatprep.subr.bf16.mxu0 0
    %2506 = vmatpush1.bf16.msra.mxu0 0
    %2507 = vmatprep.subr.bf16.mxu0 0
    %2508 = vmatpush1.bf16.msra.mxu0 0
    %2509 = vmatprep.subr.bf16.mxu0 0
    %2510 = vmatpush1.bf16.msra.mxu0 0
    %2511 = vmatprep.mubr.bf16.mxu0 0
    %2512 = vmatmul.mubr.bf16.gmra.mrb[0].mxu0 %v2477
    %v2513 = vpop.f32.mrb[0].mxu0
    %v2514 = vadd.f32 0.0, %v2513
    %v2515 = vpop.f32.mrb[0].mxu0
    %v2516 = vpop.f32.mrb[0].mxu0
    %v2517 = vadd.f32 0.0, %v2516
    %v2518 = vpop.f32.mrb[0].mxu0
    %2519 = vdwg.mxu0
    %v2520 = vadd.f32 %v2264, %v2514
    %v2521 = vadd.f32 %v2265, %v2517
    %v2522 = vadd.f32 %v177, %v2520
    %v2523 = vadd.f32 %v178, %v2521
    %v2524 = vld [vmem:[#allocation5 + $0x6] sm:$0x1]
    %v2526 = vlaneseq
    %v2527 = vshrl.u32 %v2526, 7
    %v2528 = vsub.s32 0, %v2527
    %v2529 = vrot.slane %v2524, %v2528
    %v2531 = vadd.f32 %v2522, %v2529
    %v2532 = vadd.f32 %v2523, %v2529
    %v2533 = vld [vmem:[#allocation5 + $0x2] sm:$0x1]
    %v2534 = vld [vmem:[#allocation5 + $0x3] sm:$0x1]
    %2535 = vadd.xlane.f32.xlu0 %v2531
    %v2536 = vpop.xlane.xlu0 %2535
    %2537 = vadd.xlane.f32.xlu0 %v2532
    %v2538 = vpop.xlane.xlu0 %2537
    %v2539 = vmul.f32 %v2536, %v187
    %v2540 = vmul.f32 %v2538, %v187
    %v2541 = vsub.f32 %v2531, %v2539
    %v2542 = vsub.f32 %v2532, %v2540
    %v2543 = vmul.f32 %v2541, %v2541
    %v2544 = vmul.f32 %v2542, %v2542
    %2545 = vadd.xlane.f32.xlu0 %v2543
    %v2546 = vpop.xlane.xlu0 %2545
    %2547 = vadd.xlane.f32.xlu0 %v2544
    %v2548 = vpop.xlane.xlu0 %2547
    %v2549 = vmul.f32 %v2546, %v187
    %v2550 = vmul.f32 %v2548, %v187
    %v2551 = vadd.f32 %v2549, 1e-05
    %v2552 = vadd.f32 %v2550, 1e-05
    %v2553 = vrsqrt.pop %v2551
    %v2554 = vrsqrt.pop %v2552
    %v2555 = vmul.f32 %v2541, %v2553
    %v2556 = vmul.f32 %v2542, %v2554
    %v2558 = vlaneseq
    %v2559 = vshrl.u32 %v2558, 7
    %v2560 = vsub.s32 0, %v2559
    %v2561 = vrot.slane %v2533, %v2560
    %v2563 = vmul.f32 %v2555, %v2561
    %v2564 = vmul.f32 %v2556, %v2561
    %v2566 = vlaneseq
    %v2567 = vshrl.u32 %v2566, 7
    %v2568 = vsub.s32 0, %v2567
    %v2569 = vrot.slane %v2534, %v2568
    %v2571 = vadd.f32 %v2563, %v2569
    %v2572 = vadd.f32 %v2564, %v2569
    %v2573 = vpack.c.bf16 %v2572, %v2571
    %v2574 = vld [vmem:[#allocation10] sm:$0xff]
    %v2575 = vld [vmem:[#allocation10 + $0x8] sm:$0xff]
    %v2576 = vld [vmem:[#allocation10 + $0x10] sm:$0xff]
    %v2577 = vld [vmem:[#allocation10 + $0x18] sm:$0xff]
    %v2578 = vld [vmem:[#allocation10 + $0x20] sm:$0xff]
    %v2579 = vld [vmem:[#allocation10 + $0x28] sm:$0xff]
    %v2580 = vld [vmem:[#allocation10 + $0x30] sm:$0xff]
    %v2581 = vld [vmem:[#allocation10 + $0x38] sm:$0xff]
    %v2582 = vld [vmem:[#allocation10 + $0x40] sm:$0xff]
    %v2583 = vld [vmem:[#allocation10 + $0x48] sm:$0xff]
    %v2584 = vld [vmem:[#allocation10 + $0x50] sm:$0xff]
    %v2585 = vld [vmem:[#allocation10 + $0x58] sm:$0xff]
    %v2586 = vld [vmem:[#allocation10 + $0x60] sm:$0xff]
    %v2587 = vld [vmem:[#allocation10 + $0x68] sm:$0xff]
    %v2588 = vld [vmem:[#allocation10 + $0x70] sm:$0xff]
    %v2589 = vld [vmem:[#allocation10 + $0x78] sm:$0xff]
    %v2590 = vld [vmem:[#allocation10 + $0x80] sm:$0xff]
    %v2591 = vld [vmem:[#allocation10 + $0x88] sm:$0xff]
    %v2592 = vld [vmem:[#allocation10 + $0x90] sm:$0xff]
    %v2593 = vld [vmem:[#allocation10 + $0x98] sm:$0xff]
    %v2594 = vld [vmem:[#allocation10 + $0xa0] sm:$0xff]
    %v2595 = vld [vmem:[#allocation10 + $0xa8] sm:$0xff]
    %v2596 = vld [vmem:[#allocation10 + $0xb0] sm:$0xff]
    %v2597 = vld [vmem:[#allocation10 + $0xb8] sm:$0xff]
    %v2598 = vld [vmem:[#allocation10 + $0xc0] sm:$0xff]
    %v2599 = vld [vmem:[#allocation10 + $0xc8] sm:$0xff]
    %v2600 = vld [vmem:[#allocation10 + $0xd0] sm:$0xff]
    %v2601 = vld [vmem:[#allocation10 + $0xd8] sm:$0xff]
    %v2602 = vld [vmem:[#allocation10 + $0xe0] sm:$0xff]
    %v2603 = vld [vmem:[#allocation10 + $0xe8] sm:$0xff]
    %v2604 = vld [vmem:[#allocation10 + $0xf0] sm:$0xff]
    %v2605 = vld [vmem:[#allocation10 + $0xf8] sm:$0xff]
    %v2606 = vld [vmem:[#allocation10 + $0x100] sm:$0xff]
    %v2607 = vld [vmem:[#allocation10 + $0x108] sm:$0xff]
    %v2608 = vld [vmem:[#allocation10 + $0x110] sm:$0xff]
    %v2609 = vld [vmem:[#allocation10 + $0x118] sm:$0xff]
    %v2610 = vld [vmem:[#allocation10 + $0x120] sm:$0xff]
    %v2611 = vld [vmem:[#allocation10 + $0x128] sm:$0xff]
    %v2612 = vld [vmem:[#allocation10 + $0x130] sm:$0xff]
    %v2613 = vld [vmem:[#allocation10 + $0x138] sm:$0xff]
    %v2614 = vld [vmem:[#allocation10 + $0x140] sm:$0xff]
    %v2615 = vld [vmem:[#allocation10 + $0x148] sm:$0xff]
    %v2616 = vld [vmem:[#allocation10 + $0x150] sm:$0xff]
    %v2617 = vld [vmem:[#allocation10 + $0x158] sm:$0xff]
    %v2618 = vld [vmem:[#allocation10 + $0x160] sm:$0xff]
    %v2619 = vld [vmem:[#allocation10 + $0x168] sm:$0xff]
    %v2620 = vld [vmem:[#allocation10 + $0x170] sm:$0xff]
    %v2621 = vld [vmem:[#allocation10 + $0x178] sm:$0xff]
    %v2622 = vld [vmem:[#allocation10 + $0x180] sm:$0xff]
    %v2623 = vld [vmem:[#allocation10 + $0x188] sm:$0xff]
    %v2624 = vld [vmem:[#allocation10 + $0x190] sm:$0xff]
    %v2625 = vld [vmem:[#allocation10 + $0x198] sm:$0xff]
    %v2626 = vld [vmem:[#allocation10 + $0x1a0] sm:$0xff]
    %v2627 = vld [vmem:[#allocation10 + $0x1a8] sm:$0xff]
    %v2628 = vld [vmem:[#allocation10 + $0x1b0] sm:$0xff]
    %v2629 = vld [vmem:[#allocation10 + $0x1b8] sm:$0xff]
    %v2630 = vld [vmem:[#allocation10 + $0x1c0] sm:$0xff]
    %v2631 = vld [vmem:[#allocation10 + $0x1c8] sm:$0xff]
    %v2632 = vld [vmem:[#allocation10 + $0x1d0] sm:$0xff]
    %v2633 = vld [vmem:[#allocation10 + $0x1d8] sm:$0xff]
    %v2634 = vld [vmem:[#allocation10 + $0x1e0] sm:$0xff]
    %v2635 = vld [vmem:[#allocation10 + $0x1e8] sm:$0xff]
    %v2636 = vld [vmem:[#allocation10 + $0x1f0] sm:$0xff]
    %v2637 = vld [vmem:[#allocation10 + $0x1f8] sm:$0xff]
    %v2638 = vld [vmem:[#allocation10 + $0x200] sm:$0xff]
    %v2639 = vld [vmem:[#allocation10 + $0x208] sm:$0xff]
    %v2640 = vld [vmem:[#allocation10 + $0x210] sm:$0xff]
    %v2641 = vld [vmem:[#allocation10 + $0x218] sm:$0xff]
    %v2642 = vld [vmem:[#allocation10 + $0x220] sm:$0xff]
    %v2643 = vld [vmem:[#allocation10 + $0x228] sm:$0xff]
    %v2644 = vld [vmem:[#allocation10 + $0x230] sm:$0xff]
    %v2645 = vld [vmem:[#allocation10 + $0x238] sm:$0xff]
    %v2646 = vld [vmem:[#allocation10 + $0x240] sm:$0xff]
    %v2647 = vld [vmem:[#allocation10 + $0x248] sm:$0xff]
    %v2648 = vld [vmem:[#allocation10 + $0x250] sm:$0xff]
    %v2649 = vld [vmem:[#allocation10 + $0x258] sm:$0xff]
    %v2650 = vld [vmem:[#allocation10 + $0x260] sm:$0xff]
    %v2651 = vld [vmem:[#allocation10 + $0x268] sm:$0xff]
    %v2652 = vld [vmem:[#allocation10 + $0x270] sm:$0xff]
    %v2653 = vld [vmem:[#allocation10 + $0x278] sm:$0xff]
    %v2654 = vld [vmem:[#allocation10 + $0x280] sm:$0xff]
    %v2655 = vld [vmem:[#allocation10 + $0x288] sm:$0xff]
    %v2656 = vld [vmem:[#allocation10 + $0x290] sm:$0xff]
    %v2657 = vld [vmem:[#allocation10 + $0x298] sm:$0xff]
    %v2658 = vld [vmem:[#allocation10 + $0x2a0] sm:$0xff]
    %v2659 = vld [vmem:[#allocation10 + $0x2a8] sm:$0xff]
    %v2660 = vld [vmem:[#allocation10 + $0x2b0] sm:$0xff]
    %v2661 = vld [vmem:[#allocation10 + $0x2b8] sm:$0xff]
    %v2662 = vld [vmem:[#allocation10 + $0x2c0] sm:$0xff]
    %v2663 = vld [vmem:[#allocation10 + $0x2c8] sm:$0xff]
    %v2664 = vld [vmem:[#allocation10 + $0x2d0] sm:$0xff]
    %v2665 = vld [vmem:[#allocation10 + $0x2d8] sm:$0xff]
    %v2666 = vld [vmem:[#allocation10 + $0x2e0] sm:$0xff]
    %v2667 = vld [vmem:[#allocation10 + $0x2e8] sm:$0xff]
    %v2668 = vld [vmem:[#allocation10 + $0x2f0] sm:$0xff]
    %v2669 = vld [vmem:[#allocation10 + $0x2f8] sm:$0xff]
    %v2670 = vld [vmem:[#allocation10 + $0x300] sm:$0xff]
    %v2671 = vld [vmem:[#allocation10 + $0x308] sm:$0xff]
    %v2672 = vld [vmem:[#allocation10 + $0x310] sm:$0xff]
    %v2673 = vld [vmem:[#allocation10 + $0x318] sm:$0xff]
    %v2674 = vld [vmem:[#allocation10 + $0x320] sm:$0xff]
    %v2675 = vld [vmem:[#allocation10 + $0x328] sm:$0xff]
    %v2676 = vld [vmem:[#allocation10 + $0x330] sm:$0xff]
    %v2677 = vld [vmem:[#allocation10 + $0x338] sm:$0xff]
    %v2678 = vld [vmem:[#allocation10 + $0x340] sm:$0xff]
    %v2679 = vld [vmem:[#allocation10 + $0x348] sm:$0xff]
    %v2680 = vld [vmem:[#allocation10 + $0x350] sm:$0xff]
    %v2681 = vld [vmem:[#allocation10 + $0x358] sm:$0xff]
    %v2682 = vld [vmem:[#allocation10 + $0x360] sm:$0xff]
    %v2683 = vld [vmem:[#allocation10 + $0x368] sm:$0xff]
    %v2684 = vld [vmem:[#allocation10 + $0x370] sm:$0xff]
    %v2685 = vld [vmem:[#allocation10 + $0x378] sm:$0xff]
    %v2686 = vld [vmem:[#allocation10 + $0x380] sm:$0xff]
    %v2687 = vld [vmem:[#allocation10 + $0x388] sm:$0xff]
    %v2688 = vld [vmem:[#allocation10 + $0x390] sm:$0xff]
    %v2689 = vld [vmem:[#allocation10 + $0x398] sm:$0xff]
    %v2690 = vld [vmem:[#allocation10 + $0x3a0] sm:$0xff]
    %v2691 = vld [vmem:[#allocation10 + $0x3a8] sm:$0xff]
    %v2692 = vld [vmem:[#allocation10 + $0x3b0] sm:$0xff]
    %v2693 = vld [vmem:[#allocation10 + $0x3b8] sm:$0xff]
    %v2694 = vld [vmem:[#allocation10 + $0x3c0] sm:$0xff]
    %v2695 = vld [vmem:[#allocation10 + $0x3c8] sm:$0xff]
    %v2696 = vld [vmem:[#allocation10 + $0x3d0] sm:$0xff]
    %v2697 = vld [vmem:[#allocation10 + $0x3d8] sm:$0xff]
    %v2698 = vld [vmem:[#allocation10 + $0x3e0] sm:$0xff]
    %v2699 = vld [vmem:[#allocation10 + $0x3e8] sm:$0xff]
    %v2700 = vld [vmem:[#allocation10 + $0x3f0] sm:$0xff]
    %v2701 = vld [vmem:[#allocation10 + $0x3f8] sm:$0xff]
    %v2702 = vld [vmem:[#allocation5 + $0x11] sm:$0xff]
    %v2703 = vld [vmem:[#allocation5 + $0x19] sm:$0xff]
    %v2706 = vlaneseq
    %v2707 = vshrl.u32 %v2706, 7
    %v2708 = vsub.s32 0, %v2707
    %v2709 = vrot.slane %v2702, %v2708
    %v2710 = vlaneseq
    %v2711 = vshrl.u32 %v2710, 7
    %v2712 = vsub.s32 1, %v2711
    %v2713 = vrot.slane %v2702, %v2712
    %v2714 = vlaneseq
    %v2715 = vshrl.u32 %v2714, 7
    %v2716 = vsub.s32 2, %v2715
    %v2717 = vrot.slane %v2702, %v2716
    %v2718 = vlaneseq
    %v2719 = vshrl.u32 %v2718, 7
    %v2720 = vsub.s32 3, %v2719
    %v2721 = vrot.slane %v2702, %v2720
    %v2722 = vlaneseq
    %v2723 = vshrl.u32 %v2722, 7
    %v2724 = vsub.s32 4, %v2723
    %v2725 = vrot.slane %v2702, %v2724
    %v2726 = vlaneseq
    %v2727 = vshrl.u32 %v2726, 7
    %v2728 = vsub.s32 5, %v2727
    %v2729 = vrot.slane %v2702, %v2728
    %v2730 = vlaneseq
    %v2731 = vshrl.u32 %v2730, 7
    %v2732 = vsub.s32 6, %v2731
    %v2733 = vrot.slane %v2702, %v2732
    %v2734 = vlaneseq
    %v2735 = vshrl.u32 %v2734, 7
    %v2736 = vsub.s32 7, %v2735
    %v2737 = vrot.slane %v2702, %v2736
    %v2738 = vlaneseq
    %v2739 = vshrl.u32 %v2738, 7
    %v2740 = vsub.s32 0, %v2739
    %v2741 = vrot.slane %v2703, %v2740
    %v2742 = vlaneseq
    %v2743 = vshrl.u32 %v2742, 7
    %v2744 = vsub.s32 1, %v2743
    %v2745 = vrot.slane %v2703, %v2744
    %v2746 = vlaneseq
    %v2747 = vshrl.u32 %v2746, 7
    %v2748 = vsub.s32 2, %v2747
    %v2749 = vrot.slane %v2703, %v2748
    %v2750 = vlaneseq
    %v2751 = vshrl.u32 %v2750, 7
    %v2752 = vsub.s32 3, %v2751
    %v2753 = vrot.slane %v2703, %v2752
    %v2754 = vlaneseq
    %v2755 = vshrl.u32 %v2754, 7
    %v2756 = vsub.s32 4, %v2755
    %v2757 = vrot.slane %v2703, %v2756
    %v2758 = vlaneseq
    %v2759 = vshrl.u32 %v2758, 7
    %v2760 = vsub.s32 5, %v2759
    %v2761 = vrot.slane %v2703, %v2760
    %v2762 = vlaneseq
    %v2763 = vshrl.u32 %v2762, 7
    %v2764 = vsub.s32 6, %v2763
    %v2765 = vrot.slane %v2703, %v2764
    %v2766 = vlaneseq
    %v2767 = vshrl.u32 %v2766, 7
    %v2768 = vsub.s32 7, %v2767
    %v2769 = vrot.slane %v2703, %v2768
    %v2914 = vunpack.c.l.b16 %v2574
    %v2915 = vunpack.c.h.b16 %v2574
    %v2916 = vunpack.c.l.b16 %v2575
    %v2917 = vunpack.c.h.b16 %v2575
    %v2918 = vunpack.c.l.b16 %v2576
    %v2919 = vunpack.c.h.b16 %v2576
    %v2920 = vunpack.c.l.b16 %v2577
    %v2921 = vunpack.c.h.b16 %v2577
    %v2922 = vunpack.c.l.b16 %v2578
    %v2923 = vunpack.c.h.b16 %v2578
    %v2924 = vunpack.c.l.b16 %v2579
    %v2925 = vunpack.c.h.b16 %v2579
    %v2926 = vunpack.c.l.b16 %v2580
    %v2927 = vunpack.c.h.b16 %v2580
    %v2928 = vunpack.c.l.b16 %v2581
    %v2929 = vunpack.c.h.b16 %v2581
    %v2930 = vunpack.c.l.b16 %v2582
    %v2931 = vunpack.c.h.b16 %v2582
    %v2932 = vunpack.c.l.b16 %v2583
    %v2933 = vunpack.c.h.b16 %v2583
    %v2934 = vunpack.c.l.b16 %v2584
    %v2935 = vunpack.c.h.b16 %v2584
    %v2936 = vunpack.c.l.b16 %v2585
    %v2937 = vunpack.c.h.b16 %v2585
    %v2938 = vunpack.c.l.b16 %v2586
    %v2939 = vunpack.c.h.b16 %v2586
    %v2940 = vunpack.c.l.b16 %v2587
    %v2941 = vunpack.c.h.b16 %v2587
    %v2942 = vunpack.c.l.b16 %v2588
    %v2943 = vunpack.c.h.b16 %v2588
    %v2944 = vunpack.c.l.b16 %v2589
    %v2945 = vunpack.c.h.b16 %v2589
    %v2946 = vunpack.c.l.b16 %v2590
    %v2947 = vunpack.c.h.b16 %v2590
    %v2948 = vunpack.c.l.b16 %v2591
    %v2949 = vunpack.c.h.b16 %v2591
    %v2950 = vunpack.c.l.b16 %v2592
    %v2951 = vunpack.c.h.b16 %v2592
    %v2952 = vunpack.c.l.b16 %v2593
    %v2953 = vunpack.c.h.b16 %v2593
    %v2954 = vunpack.c.l.b16 %v2594
    %v2955 = vunpack.c.h.b16 %v2594
    %v2956 = vunpack.c.l.b16 %v2595
    %v2957 = vunpack.c.h.b16 %v2595
    %v2958 = vunpack.c.l.b16 %v2596
    %v2959 = vunpack.c.h.b16 %v2596
    %v2960 = vunpack.c.l.b16 %v2597
    %v2961 = vunpack.c.h.b16 %v2597
    %v2962 = vunpack.c.l.b16 %v2598
    %v2963 = vunpack.c.h.b16 %v2598
    %v2964 = vunpack.c.l.b16 %v2599
    %v2965 = vunpack.c.h.b16 %v2599
    %v2966 = vunpack.c.l.b16 %v2600
    %v2967 = vunpack.c.h.b16 %v2600
    %v2968 = vunpack.c.l.b16 %v2601
    %v2969 = vunpack.c.h.b16 %v2601
    %v2970 = vunpack.c.l.b16 %v2602
    %v2971 = vunpack.c.h.b16 %v2602
    %v2972 = vunpack.c.l.b16 %v2603
    %v2973 = vunpack.c.h.b16 %v2603
    %v2974 = vunpack.c.l.b16 %v2604
    %v2975 = vunpack.c.h.b16 %v2604
    %v2976 = vunpack.c.l.b16 %v2605
    %v2977 = vunpack.c.h.b16 %v2605
    %v2978 = vunpack.c.l.b16 %v2606
    %v2979 = vunpack.c.h.b16 %v2606
    %v2980 = vunpack.c.l.b16 %v2607
    %v2981 = vunpack.c.h.b16 %v2607
    %v2982 = vunpack.c.l.b16 %v2608
    %v2983 = vunpack.c.h.b16 %v2608
    %v2984 = vunpack.c.l.b16 %v2609
    %v2985 = vunpack.c.h.b16 %v2609
    %v2986 = vunpack.c.l.b16 %v2610
    %v2987 = vunpack.c.h.b16 %v2610
    %v2988 = vunpack.c.l.b16 %v2611
    %v2989 = vunpack.c.h.b16 %v2611
    %v2990 = vunpack.c.l.b16 %v2612
    %v2991 = vunpack.c.h.b16 %v2612
    %v2992 = vunpack.c.l.b16 %v2613
    %v2993 = vunpack.c.h.b16 %v2613
    %v2994 = vunpack.c.l.b16 %v2614
    %v2995 = vunpack.c.h.b16 %v2614
    %v2996 = vunpack.c.l.b16 %v2615
    %v2997 = vunpack.c.h.b16 %v2615
    %v2998 = vunpack.c.l.b16 %v2616
    %v2999 = vunpack.c.h.b16 %v2616
    %v3000 = vunpack.c.l.b16 %v2617
    %v3001 = vunpack.c.h.b16 %v2617
    %v3002 = vunpack.c.l.b16 %v2618
    %v3003 = vunpack.c.h.b16 %v2618
    %v3004 = vunpack.c.l.b16 %v2619
    %v3005 = vunpack.c.h.b16 %v2619
    %v3006 = vunpack.c.l.b16 %v2620
    %v3007 = vunpack.c.h.b16 %v2620
    %v3008 = vunpack.c.l.b16 %v2621
    %v3009 = vunpack.c.h.b16 %v2621
    %v3010 = vunpack.c.l.b16 %v2622
    %v3011 = vunpack.c.h.b16 %v2622
    %v3012 = vunpack.c.l.b16 %v2623
    %v3013 = vunpack.c.h.b16 %v2623
    %v3014 = vunpack.c.l.b16 %v2624
    %v3015 = vunpack.c.h.b16 %v2624
    %v3016 = vunpack.c.l.b16 %v2625
    %v3017 = vunpack.c.h.b16 %v2625
    %v3018 = vunpack.c.l.b16 %v2626
    %v3019 = vunpack.c.h.b16 %v2626
    %v3020 = vunpack.c.l.b16 %v2627
    %v3021 = vunpack.c.h.b16 %v2627
    %v3022 = vunpack.c.l.b16 %v2628
    %v3023 = vunpack.c.h.b16 %v2628
    %v3024 = vunpack.c.l.b16 %v2629
    %v3025 = vunpack.c.h.b16 %v2629
    %v3026 = vunpack.c.l.b16 %v2630
    %v3027 = vunpack.c.h.b16 %v2630
    %v3028 = vunpack.c.l.b16 %v2631
    %v3029 = vunpack.c.h.b16 %v2631
    %v3030 = vunpack.c.l.b16 %v2632
    %v3031 = vunpack.c.h.b16 %v2632
    %v3032 = vunpack.c.l.b16 %v2633
    %v3033 = vunpack.c.h.b16 %v2633
    %v3034 = vunpack.c.l.b16 %v2634
    %v3035 = vunpack.c.h.b16 %v2634
    %v3036 = vunpack.c.l.b16 %v2635
    %v3037 = vunpack.c.h.b16 %v2635
    %v3038 = vunpack.c.l.b16 %v2636
    %v3039 = vunpack.c.h.b16 %v2636
    %v3040 = vunpack.c.l.b16 %v2637
    %v3041 = vunpack.c.h.b16 %v2637
    %v3042 = vunpack.c.l.b16 %v2638
    %v3043 = vunpack.c.h.b16 %v2638
    %v3044 = vunpack.c.l.b16 %v2639
    %v3045 = vunpack.c.h.b16 %v2639
    %v3046 = vunpack.c.l.b16 %v2640
    %v3047 = vunpack.c.h.b16 %v2640
    %v3048 = vunpack.c.l.b16 %v2641
    %v3049 = vunpack.c.h.b16 %v2641
    %v3050 = vunpack.c.l.b16 %v2642
    %v3051 = vunpack.c.h.b16 %v2642
    %v3052 = vunpack.c.l.b16 %v2643
    %v3053 = vunpack.c.h.b16 %v2643
    %v3054 = vunpack.c.l.b16 %v2644
    %v3055 = vunpack.c.h.b16 %v2644
    %v3056 = vunpack.c.l.b16 %v2645
    %v3057 = vunpack.c.h.b16 %v2645
    %v3058 = vunpack.c.l.b16 %v2646
    %v3059 = vunpack.c.h.b16 %v2646
    %v3060 = vunpack.c.l.b16 %v2647
    %v3061 = vunpack.c.h.b16 %v2647
    %v3062 = vunpack.c.l.b16 %v2648
    %v3063 = vunpack.c.h.b16 %v2648
    %v3064 = vunpack.c.l.b16 %v2649
    %v3065 = vunpack.c.h.b16 %v2649
    %v3066 = vunpack.c.l.b16 %v2650
    %v3067 = vunpack.c.h.b16 %v2650
    %v3068 = vunpack.c.l.b16 %v2651
    %v3069 = vunpack.c.h.b16 %v2651
    %v3070 = vunpack.c.l.b16 %v2652
    %v3071 = vunpack.c.h.b16 %v2652
    %v3072 = vunpack.c.l.b16 %v2653
    %v3073 = vunpack.c.h.b16 %v2653
    %v3074 = vunpack.c.l.b16 %v2654
    %v3075 = vunpack.c.h.b16 %v2654
    %v3076 = vunpack.c.l.b16 %v2655
    %v3077 = vunpack.c.h.b16 %v2655
    %v3078 = vunpack.c.l.b16 %v2656
    %v3079 = vunpack.c.h.b16 %v2656
    %v3080 = vunpack.c.l.b16 %v2657
    %v3081 = vunpack.c.h.b16 %v2657
    %v3082 = vunpack.c.l.b16 %v2658
    %v3083 = vunpack.c.h.b16 %v2658
    %v3084 = vunpack.c.l.b16 %v2659
    %v3085 = vunpack.c.h.b16 %v2659
    %v3086 = vunpack.c.l.b16 %v2660
    %v3087 = vunpack.c.h.b16 %v2660
    %v3088 = vunpack.c.l.b16 %v2661
    %v3089 = vunpack.c.h.b16 %v2661
    %v3090 = vunpack.c.l.b16 %v2662
    %v3091 = vunpack.c.h.b16 %v2662
    %v3092 = vunpack.c.l.b16 %v2663
    %v3093 = vunpack.c.h.b16 %v2663
    %v3094 = vunpack.c.l.b16 %v2664
    %v3095 = vunpack.c.h.b16 %v2664
    %v3096 = vunpack.c.l.b16 %v2665
    %v3097 = vunpack.c.h.b16 %v2665
    %v3098 = vunpack.c.l.b16 %v2666
    %v3099 = vunpack.c.h.b16 %v2666
    %v3100 = vunpack.c.l.b16 %v2667
    %v3101 = vunpack.c.h.b16 %v2667
    %v3102 = vunpack.c.l.b16 %v2668
    %v3103 = vunpack.c.h.b16 %v2668
    %v3104 = vunpack.c.l.b16 %v2669
    %v3105 = vunpack.c.h.b16 %v2669
    %v3106 = vunpack.c.l.b16 %v2670
    %v3107 = vunpack.c.h.b16 %v2670
    %v3108 = vunpack.c.l.b16 %v2671
    %v3109 = vunpack.c.h.b16 %v2671
    %v3110 = vunpack.c.l.b16 %v2672
    %v3111 = vunpack.c.h.b16 %v2672
    %v3112 = vunpack.c.l.b16 %v2673
    %v3113 = vunpack.c.h.b16 %v2673
    %v3114 = vunpack.c.l.b16 %v2674
    %v3115 = vunpack.c.h.b16 %v2674
    %v3116 = vunpack.c.l.b16 %v2675
    %v3117 = vunpack.c.h.b16 %v2675
    %v3118 = vunpack.c.l.b16 %v2676
    %v3119 = vunpack.c.h.b16 %v2676
    %v3120 = vunpack.c.l.b16 %v2677
    %v3121 = vunpack.c.h.b16 %v2677
    %v3122 = vunpack.c.l.b16 %v2678
    %v3123 = vunpack.c.h.b16 %v2678
    %v3124 = vunpack.c.l.b16 %v2679
    %v3125 = vunpack.c.h.b16 %v2679
    %v3126 = vunpack.c.l.b16 %v2680
    %v3127 = vunpack.c.h.b16 %v2680
    %v3128 = vunpack.c.l.b16 %v2681
    %v3129 = vunpack.c.h.b16 %v2681
    %v3130 = vunpack.c.l.b16 %v2682
    %v3131 = vunpack.c.h.b16 %v2682
    %v3132 = vunpack.c.l.b16 %v2683
    %v3133 = vunpack.c.h.b16 %v2683
    %v3134 = vunpack.c.l.b16 %v2684
    %v3135 = vunpack.c.h.b16 %v2684
    %v3136 = vunpack.c.l.b16 %v2685
    %v3137 = vunpack.c.h.b16 %v2685
    %v3138 = vunpack.c.l.b16 %v2686
    %v3139 = vunpack.c.h.b16 %v2686
    %v3140 = vunpack.c.l.b16 %v2687
    %v3141 = vunpack.c.h.b16 %v2687
    %v3142 = vunpack.c.l.b16 %v2688
    %v3143 = vunpack.c.h.b16 %v2688
    %v3144 = vunpack.c.l.b16 %v2689
    %v3145 = vunpack.c.h.b16 %v2689
    %v3146 = vunpack.c.l.b16 %v2690
    %v3147 = vunpack.c.h.b16 %v2690
    %v3148 = vunpack.c.l.b16 %v2691
    %v3149 = vunpack.c.h.b16 %v2691
    %v3150 = vunpack.c.l.b16 %v2692
    %v3151 = vunpack.c.h.b16 %v2692
    %v3152 = vunpack.c.l.b16 %v2693
    %v3153 = vunpack.c.h.b16 %v2693
    %v3154 = vunpack.c.l.b16 %v2694
    %v3155 = vunpack.c.h.b16 %v2694
    %v3156 = vunpack.c.l.b16 %v2695
    %v3157 = vunpack.c.h.b16 %v2695
    %v3158 = vunpack.c.l.b16 %v2696
    %v3159 = vunpack.c.h.b16 %v2696
    %v3160 = vunpack.c.l.b16 %v2697
    %v3161 = vunpack.c.h.b16 %v2697
    %v3162 = vunpack.c.l.b16 %v2698
    %v3163 = vunpack.c.h.b16 %v2698
    %v3164 = vunpack.c.l.b16 %v2699
    %v3165 = vunpack.c.h.b16 %v2699
    %v3166 = vunpack.c.l.b16 %v2700
    %v3167 = vunpack.c.h.b16 %v2700
    %v3168 = vunpack.c.l.b16 %v2701
    %v3169 = vunpack.c.h.b16 %v2701
    %v3170 = vpack.c.b16 %v2930, %v2914
    %v3171 = vpack.c.b16 %v2931, %v2915
    %v3172 = vpack.c.b16 %v2932, %v2916
    %v3173 = vpack.c.b16 %v2933, %v2917
    %v3174 = vpack.c.b16 %v2934, %v2918
    %v3175 = vpack.c.b16 %v2935, %v2919
    %v3176 = vpack.c.b16 %v2936, %v2920
    %v3177 = vpack.c.b16 %v2937, %v2921
    %v3178 = vpack.c.b16 %v2938, %v2922
    %v3179 = vpack.c.b16 %v2939, %v2923
    %v3180 = vpack.c.b16 %v2940, %v2924
    %v3181 = vpack.c.b16 %v2941, %v2925
    %v3182 = vpack.c.b16 %v2942, %v2926
    %v3183 = vpack.c.b16 %v2943, %v2927
    %v3184 = vpack.c.b16 %v2944, %v2928
    %v3185 = vpack.c.b16 %v2945, %v2929
    %v3186 = vpack.c.b16 %v2962, %v2946
    %v3187 = vpack.c.b16 %v2963, %v2947
    %v3188 = vpack.c.b16 %v2964, %v2948
    %v3189 = vpack.c.b16 %v2965, %v2949
    %v3190 = vpack.c.b16 %v2966, %v2950
    %v3191 = vpack.c.b16 %v2967, %v2951
    %v3192 = vpack.c.b16 %v2968, %v2952
    %v3193 = vpack.c.b16 %v2969, %v2953
    %v3194 = vpack.c.b16 %v2970, %v2954
    %v3195 = vpack.c.b16 %v2971, %v2955
    %v3196 = vpack.c.b16 %v2972, %v2956
    %v3197 = vpack.c.b16 %v2973, %v2957
    %v3198 = vpack.c.b16 %v2974, %v2958
    %v3199 = vpack.c.b16 %v2975, %v2959
    %v3200 = vpack.c.b16 %v2976, %v2960
    %v3201 = vpack.c.b16 %v2977, %v2961
    %v3202 = vpack.c.b16 %v2994, %v2978
    %v3203 = vpack.c.b16 %v2995, %v2979
    %v3204 = vpack.c.b16 %v2996, %v2980
    %v3205 = vpack.c.b16 %v2997, %v2981
    %v3206 = vpack.c.b16 %v2998, %v2982
    %v3207 = vpack.c.b16 %v2999, %v2983
    %v3208 = vpack.c.b16 %v3000, %v2984
    %v3209 = vpack.c.b16 %v3001, %v2985
    %v3210 = vpack.c.b16 %v3002, %v2986
    %v3211 = vpack.c.b16 %v3003, %v2987
    %v3212 = vpack.c.b16 %v3004, %v2988
    %v3213 = vpack.c.b16 %v3005, %v2989
    %v3214 = vpack.c.b16 %v3006, %v2990
    %v3215 = vpack.c.b16 %v3007, %v2991
    %v3216 = vpack.c.b16 %v3008, %v2992
    %v3217 = vpack.c.b16 %v3009, %v2993
    %v3218 = vpack.c.b16 %v3026, %v3010
    %v3219 = vpack.c.b16 %v3027, %v3011
    %v3220 = vpack.c.b16 %v3028, %v3012
    %v3221 = vpack.c.b16 %v3029, %v3013
    %v3222 = vpack.c.b16 %v3030, %v3014
    %v3223 = vpack.c.b16 %v3031, %v3015
    %v3224 = vpack.c.b16 %v3032, %v3016
    %v3225 = vpack.c.b16 %v3033, %v3017
    %v3226 = vpack.c.b16 %v3034, %v3018
    %v3227 = vpack.c.b16 %v3035, %v3019
    %v3228 = vpack.c.b16 %v3036, %v3020
    %v3229 = vpack.c.b16 %v3037, %v3021
    %v3230 = vpack.c.b16 %v3038, %v3022
    %v3231 = vpack.c.b16 %v3039, %v3023
    %v3232 = vpack.c.b16 %v3040, %v3024
    %v3233 = vpack.c.b16 %v3041, %v3025
    %v3234 = vpack.c.b16 %v3058, %v3042
    %v3235 = vpack.c.b16 %v3059, %v3043
    %v3236 = vpack.c.b16 %v3060, %v3044
    %v3237 = vpack.c.b16 %v3061, %v3045
    %v3238 = vpack.c.b16 %v3062, %v3046
    %v3239 = vpack.c.b16 %v3063, %v3047
    %v3240 = vpack.c.b16 %v3064, %v3048
    %v3241 = vpack.c.b16 %v3065, %v3049
    %v3242 = vpack.c.b16 %v3066, %v3050
    %v3243 = vpack.c.b16 %v3067, %v3051
    %v3244 = vpack.c.b16 %v3068, %v3052
    %v3245 = vpack.c.b16 %v3069, %v3053
    %v3246 = vpack.c.b16 %v3070, %v3054
    %v3247 = vpack.c.b16 %v3071, %v3055
    %v3248 = vpack.c.b16 %v3072, %v3056
    %v3249 = vpack.c.b16 %v3073, %v3057
    %v3250 = vpack.c.b16 %v3090, %v3074
    %v3251 = vpack.c.b16 %v3091, %v3075
    %v3252 = vpack.c.b16 %v3092, %v3076
    %v3253 = vpack.c.b16 %v3093, %v3077
    %v3254 = vpack.c.b16 %v3094, %v3078
    %v3255 = vpack.c.b16 %v3095, %v3079
    %v3256 = vpack.c.b16 %v3096, %v3080
    %v3257 = vpack.c.b16 %v3097, %v3081
    %v3258 = vpack.c.b16 %v3098, %v3082
    %v3259 = vpack.c.b16 %v3099, %v3083
    %v3260 = vpack.c.b16 %v3100, %v3084
    %v3261 = vpack.c.b16 %v3101, %v3085
    %v3262 = vpack.c.b16 %v3102, %v3086
    %v3263 = vpack.c.b16 %v3103, %v3087
    %v3264 = vpack.c.b16 %v3104, %v3088
    %v3265 = vpack.c.b16 %v3105, %v3089
    %v3266 = vpack.c.b16 %v3122, %v3106
    %v3267 = vpack.c.b16 %v3123, %v3107
    %v3268 = vpack.c.b16 %v3124, %v3108
    %v3269 = vpack.c.b16 %v3125, %v3109
    %v3270 = vpack.c.b16 %v3126, %v3110
    %v3271 = vpack.c.b16 %v3127, %v3111
    %v3272 = vpack.c.b16 %v3128, %v3112
    %v3273 = vpack.c.b16 %v3129, %v3113
    %v3274 = vpack.c.b16 %v3130, %v3114
    %v3275 = vpack.c.b16 %v3131, %v3115
    %v3276 = vpack.c.b16 %v3132, %v3116
    %v3277 = vpack.c.b16 %v3133, %v3117
    %v3278 = vpack.c.b16 %v3134, %v3118
    %v3279 = vpack.c.b16 %v3135, %v3119
    %v3280 = vpack.c.b16 %v3136, %v3120
    %v3281 = vpack.c.b16 %v3137, %v3121
    %v3282 = vpack.c.b16 %v3154, %v3138
    %v3283 = vpack.c.b16 %v3155, %v3139
    %v3284 = vpack.c.b16 %v3156, %v3140
    %v3285 = vpack.c.b16 %v3157, %v3141
    %v3286 = vpack.c.b16 %v3158, %v3142
    %v3287 = vpack.c.b16 %v3159, %v3143
    %v3288 = vpack.c.b16 %v3160, %v3144
    %v3289 = vpack.c.b16 %v3161, %v3145
    %v3290 = vpack.c.b16 %v3162, %v3146
    %v3291 = vpack.c.b16 %v3163, %v3147
    %v3292 = vpack.c.b16 %v3164, %v3148
    %v3293 = vpack.c.b16 %v3165, %v3149
    %v3294 = vpack.c.b16 %v3166, %v3150
    %v3295 = vpack.c.b16 %v3167, %v3151
    %v3296 = vpack.c.b16 %v3168, %v3152
    %v3297 = vpack.c.b16 %v3169, %v3153
    %3426 = vmatprep.subr.bf16.mxu0 %v3171
    %3427 = vmatpush1.bf16.msra.mxu0 %v3170
    %3428 = vmatprep.subr.bf16.mxu0 %v3187
    %3429 = vmatpush1.bf16.msra.mxu0 %v3186
    %3430 = vmatprep.subr.bf16.mxu0 %v3203
    %3431 = vmatpush1.bf16.msra.mxu0 %v3202
    %3432 = vmatprep.subr.bf16.mxu0 %v3219
    %3433 = vmatpush1.bf16.msra.mxu0 %v3218
    %3434 = vmatprep.subr.bf16.mxu0 %v3235
    %3435 = vmatpush1.bf16.msra.mxu0 %v3234
    %3436 = vmatprep.subr.bf16.mxu0 %v3251
    %3437 = vmatpush1.bf16.msra.mxu0 %v3250
    %3438 = vmatprep.subr.bf16.mxu0 %v3267
    %3439 = vmatpush1.bf16.msra.mxu0 %v3266
    %3440 = vmatprep.subr.bf16.mxu0 %v3283
    %3441 = vmatpush1.bf16.msra.mxu0 %v3282
    %3442 = vmatprep.subr.bf16.mxu0 0
    %3443 = vmatpush1.bf16.msra.mxu0 0
    %3444 = vmatprep.subr.bf16.mxu0 0
    %3445 = vmatpush1.bf16.msra.mxu0 0
    %3446 = vmatprep.subr.bf16.mxu0 0
    %3447 = vmatpush1.bf16.msra.mxu0 0
    %3448 = vmatprep.subr.bf16.mxu0 0
    %3449 = vmatpush1.bf16.msra.mxu0 0
    %3450 = vmatprep.subr.bf16.mxu0 0
    %3451 = vmatpush1.bf16.msra.mxu0 0
    %3452 = vmatprep.subr.bf16.mxu0 0
    %3453 = vmatpush1.bf16.msra.mxu0 0
    %3454 = vmatprep.subr.bf16.mxu0 0
    %3455 = vmatpush1.bf16.msra.mxu0 0
    %3456 = vmatprep.subr.bf16.mxu0 0
    %3457 = vmatpush1.bf16.msra.mxu0 0
    %3458 = vmatprep.mubr.bf16.mxu0 0
    %3459 = vmatmul.mubr.bf16.gmra.mrb[0].mxu0 %v2573
    %v3460 = vpop.f32.mrb[0].mxu0
    %v3461 = vadd.f32 %v2709, %v3460
    %v3462 = vpop.f32.mrb[0].mxu0
    %v3463 = vadd.f32 %v2713, %v3462
    %v3464 = vpop.f32.mrb[0].mxu0
    %v3465 = vadd.f32 %v2709, %v3464
    %v3466 = vpop.f32.mrb[0].mxu0
    %v3467 = vadd.f32 %v2713, %v3466
    %3468 = vdwg.mxu0
    %3469 = vmatprep.subr.bf16.mxu0 %v3173
    %3470 = vmatpush1.bf16.msra.mxu0 %v3172
    %3471 = vmatprep.subr.bf16.mxu0 %v3189
    %3472 = vmatpush1.bf16.msra.mxu0 %v3188
    %3473 = vmatprep.subr.bf16.mxu0 %v3205
    %3474 = vmatpush1.bf16.msra.mxu0 %v3204
    %3475 = vmatprep.subr.bf16.mxu0 %v3221
    %3476 = vmatpush1.bf16.msra.mxu0 %v3220
    %3477 = vmatprep.subr.bf16.mxu0 %v3237
    %3478 = vmatpush1.bf16.msra.mxu0 %v3236
    %3479 = vmatprep.subr.bf16.mxu0 %v3253
    %3480 = vmatpush1.bf16.msra.mxu0 %v3252
    %3481 = vmatprep.subr.bf16.mxu0 %v3269
    %3482 = vmatpush1.bf16.msra.mxu0 %v3268
    %3483 = vmatprep.subr.bf16.mxu0 %v3285
    %3484 = vmatpush1.bf16.msra.mxu0 %v3284
    %3485 = vmatprep.subr.bf16.mxu0 0
    %3486 = vmatpush1.bf16.msra.mxu0 0
    %3487 = vmatprep.subr.bf16.mxu0 0
    %3488 = vmatpush1.bf16.msra.mxu0 0
    %3489 = vmatprep.subr.bf16.mxu0 0
    %3490 = vmatpush1.bf16.msra.mxu0 0
    %3491 = vmatprep.subr.bf16.mxu0 0
    %3492 = vmatpush1.bf16.msra.mxu0 0
    %3493 = vmatprep.subr.bf16.mxu0 0
    %3494 = vmatpush1.bf16.msra.mxu0 0
    %3495 = vmatprep.subr.bf16.mxu0 0
    %3496 = vmatpush1.bf16.msra.mxu0 0
    %3497 = vmatprep.subr.bf16.mxu0 0
    %3498 = vmatpush1.bf16.msra.mxu0 0
    %3499 = vmatprep.subr.bf16.mxu0 0
    %3500 = vmatpush1.bf16.msra.mxu0 0
    %3501 = vmatprep.mubr.bf16.mxu0 0
    %3502 = vmatmul.mubr.bf16.gmra.mrb[0].mxu0 %v2573
    %v3503 = vpop.f32.mrb[0].mxu0
    %v3504 = vadd.f32 %v2717, %v3503
    %v3505 = vpop.f32.mrb[0].mxu0
    %v3506 = vadd.f32 %v2721, %v3505
    %v3507 = vpop.f32.mrb[0].mxu0
    %v3508 = vadd.f32 %v2717, %v3507
    %v3509 = vpop.f32.mrb[0].mxu0
    %v3510 = vadd.f32 %v2721, %v3509
    %3511 = vdwg.mxu0
    %3512 = vmatprep.subr.bf16.mxu0 %v3175
    %3513 = vmatpush1.bf16.msra.mxu0 %v3174
    %3514 = vmatprep.subr.bf16.mxu0 %v3191
    %3515 = vmatpush1.bf16.msra.mxu0 %v3190
    %3516 = vmatprep.subr.bf16.mxu0 %v3207
    %3517 = vmatpush1.bf16.msra.mxu0 %v3206
    %3518 = vmatprep.subr.bf16.mxu0 %v3223
    %3519 = vmatpush1.bf16.msra.mxu0 %v3222
    %3520 = vmatprep.subr.bf16.mxu0 %v3239
    %3521 = vmatpush1.bf16.msra.mxu0 %v3238
    %3522 = vmatprep.subr.bf16.mxu0 %v3255
    %3523 = vmatpush1.bf16.msra.mxu0 %v3254
    %3524 = vmatprep.subr.bf16.mxu0 %v3271
    %3525 = vmatpush1.bf16.msra.mxu0 %v3270
    %3526 = vmatprep.subr.bf16.mxu0 %v3287
    %3527 = vmatpush1.bf16.msra.mxu0 %v3286
    %3528 = vmatprep.subr.bf16.mxu0 0
    %3529 = vmatpush1.bf16.msra.mxu0 0
    %3530 = vmatprep.subr.bf16.mxu0 0
    %3531 = vmatpush1.bf16.msra.mxu0 0
    %3532 = vmatprep.subr.bf16.mxu0 0
    %3533 = vmatpush1.bf16.msra.mxu0 0
    %3534 = vmatprep.subr.bf16.mxu0 0
    %3535 = vmatpush1.bf16.msra.mxu0 0
    %3536 = vmatprep.subr.bf16.mxu0 0
    %3537 = vmatpush1.bf16.msra.mxu0 0
    %3538 = vmatprep.subr.bf16.mxu0 0
    %3539 = vmatpush1.bf16.msra.mxu0 0
    %3540 = vmatprep.subr.bf16.mxu0 0
    %3541 = vmatpush1.bf16.msra.mxu0 0
    %3542 = vmatprep.subr.bf16.mxu0 0
    %3543 = vmatpush1.bf16.msra.mxu0 0
    %3544 = vmatprep.mubr.bf16.mxu0 0
    %3545 = vmatmul.mubr.bf16.gmra.mrb[0].mxu0 %v2573
    %v3546 = vpop.f32.mrb[0].mxu0
    %v3547 = vadd.f32 %v2725, %v3546
    %v3548 = vpop.f32.mrb[0].mxu0
    %v3549 = vadd.f32 %v2729, %v3548
    %v3550 = vpop.f32.mrb[0].mxu0
    %v3551 = vadd.f32 %v2725, %v3550
    %v3552 = vpop.f32.mrb[0].mxu0
    %v3553 = vadd.f32 %v2729, %v3552
    %3554 = vdwg.mxu0
    %3555 = vmatprep.subr.bf16.mxu0 %v3177
    %3556 = vmatpush1.bf16.msra.mxu0 %v3176
    %3557 = vmatprep.subr.bf16.mxu0 %v3193
    %3558 = vmatpush1.bf16.msra.mxu0 %v3192
    %3559 = vmatprep.subr.bf16.mxu0 %v3209
    %3560 = vmatpush1.bf16.msra.mxu0 %v3208
    %3561 = vmatprep.subr.bf16.mxu0 %v3225
    %3562 = vmatpush1.bf16.msra.mxu0 %v3224
    %3563 = vmatprep.subr.bf16.mxu0 %v3241
    %3564 = vmatpush1.bf16.msra.mxu0 %v3240
    %3565 = vmatprep.subr.bf16.mxu0 %v3257
    %3566 = vmatpush1.bf16.msra.mxu0 %v3256
    %3567 = vmatprep.subr.bf16.mxu0 %v3273
    %3568 = vmatpush1.bf16.msra.mxu0 %v3272
    %3569 = vmatprep.subr.bf16.mxu0 %v3289
    %3570 = vmatpush1.bf16.msra.mxu0 %v3288
    %3571 = vmatprep.subr.bf16.mxu0 0
    %3572 = vmatpush1.bf16.msra.mxu0 0
    %3573 = vmatprep.subr.bf16.mxu0 0
    %3574 = vmatpush1.bf16.msra.mxu0 0
    %3575 = vmatprep.subr.bf16.mxu0 0
    %3576 = vmatpush1.bf16.msra.mxu0 0
    %3577 = vmatprep.subr.bf16.mxu0 0
    %3578 = vmatpush1.bf16.msra.mxu0 0
    %3579 = vmatprep.subr.bf16.mxu0 0
    %3580 = vmatpush1.bf16.msra.mxu0 0
    %3581 = vmatprep.subr.bf16.mxu0 0
    %3582 = vmatpush1.bf16.msra.mxu0 0
    %3583 = vmatprep.subr.bf16.mxu0 0
    %3584 = vmatpush1.bf16.msra.mxu0 0
    %3585 = vmatprep.subr.bf16.mxu0 0
    %3586 = vmatpush1.bf16.msra.mxu0 0
    %3587 = vmatprep.mubr.bf16.mxu0 0
    %3588 = vmatmul.mubr.bf16.gmra.mrb[0].mxu0 %v2573
    %v3589 = vpop.f32.mrb[0].mxu0
    %v3590 = vadd.f32 %v2733, %v3589
    %v3591 = vpop.f32.mrb[0].mxu0
    %v3592 = vadd.f32 %v2737, %v3591
    %v3593 = vpop.f32.mrb[0].mxu0
    %v3594 = vadd.f32 %v2733, %v3593
    %v3595 = vpop.f32.mrb[0].mxu0
    %v3596 = vadd.f32 %v2737, %v3595
    %3597 = vdwg.mxu0
    %3598 = vmatprep.subr.bf16.mxu0 %v3179
    %3599 = vmatpush1.bf16.msra.mxu0 %v3178
    %3600 = vmatprep.subr.bf16.mxu0 %v3195
    %3601 = vmatpush1.bf16.msra.mxu0 %v3194
    %3602 = vmatprep.subr.bf16.mxu0 %v3211
    %3603 = vmatpush1.bf16.msra.mxu0 %v3210
    %3604 = vmatprep.subr.bf16.mxu0 %v3227
    %3605 = vmatpush1.bf16.msra.mxu0 %v3226
    %3606 = vmatprep.subr.bf16.mxu0 %v3243
    %3607 = vmatpush1.bf16.msra.mxu0 %v3242
    %3608 = vmatprep.subr.bf16.mxu0 %v3259
    %3609 = vmatpush1.bf16.msra.mxu0 %v3258
    %3610 = vmatprep.subr.bf16.mxu0 %v3275
    %3611 = vmatpush1.bf16.msra.mxu0 %v3274
    %3612 = vmatprep.subr.bf16.mxu0 %v3291
    %3613 = vmatpush1.bf16.msra.mxu0 %v3290
    %3614 = vmatprep.subr.bf16.mxu0 0
    %3615 = vmatpush1.bf16.msra.mxu0 0
    %3616 = vmatprep.subr.bf16.mxu0 0
    %3617 = vmatpush1.bf16.msra.mxu0 0
    %3618 = vmatprep.subr.bf16.mxu0 0
    %3619 = vmatpush1.bf16.msra.mxu0 0
    %3620 = vmatprep.subr.bf16.mxu0 0
    %3621 = vmatpush1.bf16.msra.mxu0 0
    %3622 = vmatprep.subr.bf16.mxu0 0
    %3623 = vmatpush1.bf16.msra.mxu0 0
    %3624 = vmatprep.subr.bf16.mxu0 0
    %3625 = vmatpush1.bf16.msra.mxu0 0
    %3626 = vmatprep.subr.bf16.mxu0 0
    %3627 = vmatpush1.bf16.msra.mxu0 0
    %3628 = vmatprep.subr.bf16.mxu0 0
    %3629 = vmatpush1.bf16.msra.mxu0 0
    %3630 = vmatprep.mubr.bf16.mxu0 0
    %3631 = vmatmul.mubr.bf16.gmra.mrb[0].mxu0 %v2573
    %v3632 = vpop.f32.mrb[0].mxu0
    %v3633 = vadd.f32 %v2741, %v3632
    %v3634 = vpop.f32.mrb[0].mxu0
    %v3635 = vadd.f32 %v2745, %v3634
    %v3636 = vpop.f32.mrb[0].mxu0
    %v3637 = vadd.f32 %v2741, %v3636
    %v3638 = vpop.f32.mrb[0].mxu0
    %v3639 = vadd.f32 %v2745, %v3638
    %3640 = vdwg.mxu0
    %3641 = vmatprep.subr.bf16.mxu0 %v3181
    %3642 = vmatpush1.bf16.msra.mxu0 %v3180
    %3643 = vmatprep.subr.bf16.mxu0 %v3197
    %3644 = vmatpush1.bf16.msra.mxu0 %v3196
    %3645 = vmatprep.subr.bf16.mxu0 %v3213
    %3646 = vmatpush1.bf16.msra.mxu0 %v3212
    %3647 = vmatprep.subr.bf16.mxu0 %v3229
    %3648 = vmatpush1.bf16.msra.mxu0 %v3228
    %3649 = vmatprep.subr.bf16.mxu0 %v3245
    %3650 = vmatpush1.bf16.msra.mxu0 %v3244
    %3651 = vmatprep.subr.bf16.mxu0 %v3261
    %3652 = vmatpush1.bf16.msra.mxu0 %v3260
    %3653 = vmatprep.subr.bf16.mxu0 %v3277
    %3654 = vmatpush1.bf16.msra.mxu0 %v3276
    %3655 = vmatprep.subr.bf16.mxu0 %v3293
    %3656 = vmatpush1.bf16.msra.mxu0 %v3292
    %3657 = vmatprep.subr.bf16.mxu0 0
    %3658 = vmatpush1.bf16.msra.mxu0 0
    %3659 = vmatprep.subr.bf16.mxu0 0
    %3660 = vmatpush1.bf16.msra.mxu0 0
    %3661 = vmatprep.subr.bf16.mxu0 0
    %3662 = vmatpush1.bf16.msra.mxu0 0
    %3663 = vmatprep.subr.bf16.mxu0 0
    %3664 = vmatpush1.bf16.msra.mxu0 0
    %3665 = vmatprep.subr.bf16.mxu0 0
    %3666 = vmatpush1.bf16.msra.mxu0 0
    %3667 = vmatprep.subr.bf16.mxu0 0
    %3668 = vmatpush1.bf16.msra.mxu0 0
    %3669 = vmatprep.subr.bf16.mxu0 0
    %3670 = vmatpush1.bf16.msra.mxu0 0
    %3671 = vmatprep.subr.bf16.mxu0 0
    %3672 = vmatpush1.bf16.msra.mxu0 0
    %3673 = vmatprep.mubr.bf16.mxu0 0
    %3674 = vmatmul.mubr.bf16.gmra.mrb[0].mxu0 %v2573
    %v3675 = vpop.f32.mrb[0].mxu0
    %v3676 = vadd.f32 %v2749, %v3675
    %v3677 = vpop.f32.mrb[0].mxu0
    %v3678 = vadd.f32 %v2753, %v3677
    %v3679 = vpop.f32.mrb[0].mxu0
    %v3680 = vadd.f32 %v2749, %v3679
    %v3681 = vpop.f32.mrb[0].mxu0
    %v3682 = vadd.f32 %v2753, %v3681
    %3683 = vdwg.mxu0
    %3684 = vmatprep.subr.bf16.mxu0 %v3183
    %3685 = vmatpush1.bf16.msra.mxu0 %v3182
    %3686 = vmatprep.subr.bf16.mxu0 %v3199
    %3687 = vmatpush1.bf16.msra.mxu0 %v3198
    %3688 = vmatprep.subr.bf16.mxu0 %v3215
    %3689 = vmatpush1.bf16.msra.mxu0 %v3214
    %3690 = vmatprep.subr.bf16.mxu0 %v3231
    %3691 = vmatpush1.bf16.msra.mxu0 %v3230
    %3692 = vmatprep.subr.bf16.mxu0 %v3247
    %3693 = vmatpush1.bf16.msra.mxu0 %v3246
    %3694 = vmatprep.subr.bf16.mxu0 %v3263
    %3695 = vmatpush1.bf16.msra.mxu0 %v3262
    %3696 = vmatprep.subr.bf16.mxu0 %v3279
    %3697 = vmatpush1.bf16.msra.mxu0 %v3278
    %3698 = vmatprep.subr.bf16.mxu0 %v3295
    %3699 = vmatpush1.bf16.msra.mxu0 %v3294
    %3700 = vmatprep.subr.bf16.mxu0 0
    %3701 = vmatpush1.bf16.msra.mxu0 0
    %3702 = vmatprep.subr.bf16.mxu0 0
    %3703 = vmatpush1.bf16.msra.mxu0 0
    %3704 = vmatprep.subr.bf16.mxu0 0
    %3705 = vmatpush1.bf16.msra.mxu0 0
    %3706 = vmatprep.subr.bf16.mxu0 0
    %3707 = vmatpush1.bf16.msra.mxu0 0
    %3708 = vmatprep.subr.bf16.mxu0 0
    %3709 = vmatpush1.bf16.msra.mxu0 0
    %3710 = vmatprep.subr.bf16.mxu0 0
    %3711 = vmatpush1.bf16.msra.mxu0 0
    %3712 = vmatprep.subr.bf16.mxu0 0
    %3713 = vmatpush1.bf16.msra.mxu0 0
    %3714 = vmatprep.subr.bf16.mxu0 0
    %3715 = vmatpush1.bf16.msra.mxu0 0
    %3716 = vmatprep.mubr.bf16.mxu0 0
    %3717 = vmatmul.mubr.bf16.gmra.mrb[0].mxu0 %v2573
    %v3718 = vpop.f32.mrb[0].mxu0
    %v3719 = vadd.f32 %v2757, %v3718
    %v3720 = vpop.f32.mrb[0].mxu0
    %v3721 = vadd.f32 %v2761, %v3720
    %v3722 = vpop.f32.mrb[0].mxu0
    %v3723 = vadd.f32 %v2757, %v3722
    %v3724 = vpop.f32.mrb[0].mxu0
    %v3725 = vadd.f32 %v2761, %v3724
    %3726 = vdwg.mxu0
    %3727 = vmatprep.subr.bf16.mxu0 %v3185
    %3728 = vmatpush1.bf16.msra.mxu0 %v3184
    %3729 = vmatprep.subr.bf16.mxu0 %v3201
    %3730 = vmatpush1.bf16.msra.mxu0 %v3200
    %3731 = vmatprep.subr.bf16.mxu0 %v3217
    %3732 = vmatpush1.bf16.msra.mxu0 %v3216
    %3733 = vmatprep.subr.bf16.mxu0 %v3233
    %3734 = vmatpush1.bf16.msra.mxu0 %v3232
    %3735 = vmatprep.subr.bf16.mxu0 %v3249
    %3736 = vmatpush1.bf16.msra.mxu0 %v3248
    %3737 = vmatprep.subr.bf16.mxu0 %v3265
    %3738 = vmatpush1.bf16.msra.mxu0 %v3264
    %3739 = vmatprep.subr.bf16.mxu0 %v3281
    %3740 = vmatpush1.bf16.msra.mxu0 %v3280
    %3741 = vmatprep.subr.bf16.mxu0 %v3297
    %3742 = vmatpush1.bf16.msra.mxu0 %v3296
    %3743 = vmatprep.subr.bf16.mxu0 0
    %3744 = vmatpush1.bf16.msra.mxu0 0
    %3745 = vmatprep.subr.bf16.mxu0 0
    %3746 = vmatpush1.bf16.msra.mxu0 0
    %3747 = vmatprep.subr.bf16.mxu0 0
    %3748 = vmatpush1.bf16.msra.mxu0 0
    %3749 = vmatprep.subr.bf16.mxu0 0
    %3750 = vmatpush1.bf16.msra.mxu0 0
    %3751 = vmatprep.subr.bf16.mxu0 0
    %3752 = vmatpush1.bf16.msra.mxu0 0
    %3753 = vmatprep.subr.bf16.mxu0 0
    %3754 = vmatpush1.bf16.msra.mxu0 0
    %3755 = vmatprep.subr.bf16.mxu0 0
    %3756 = vmatpush1.bf16.msra.mxu0 0
    %3757 = vmatprep.subr.bf16.mxu0 0
    %3758 = vmatpush1.bf16.msra.mxu0 0
    %3759 = vmatprep.mubr.bf16.mxu0 0
    %3760 = vmatmul.mubr.bf16.gmra.mrb[0].mxu0 %v2573
    %v3761 = vpop.f32.mrb[0].mxu0
    %v3762 = vadd.f32 %v2765, %v3761
    %v3763 = vpop.f32.mrb[0].mxu0
    %v3764 = vadd.f32 %v2769, %v3763
    %v3765 = vpop.f32.mrb[0].mxu0
    %v3766 = vadd.f32 %v2765, %v3765
    %v3767 = vpop.f32.mrb[0].mxu0
    %v3768 = vadd.f32 %v2769, %v3767
    %3769 = vdwg.mxu0
    %v3770 = vmax.f32 %v3461, 0.0
    %v3771 = vmax.f32 %v3463, 0.0
    %v3772 = vmax.f32 %v3504, 0.0
    %v3773 = vmax.f32 %v3506, 0.0
    %v3774 = vmax.f32 %v3547, 0.0
    %v3775 = vmax.f32 %v3549, 0.0
    %v3776 = vmax.f32 %v3590, 0.0
    %v3777 = vmax.f32 %v3592, 0.0
    %v3778 = vmax.f32 %v3633, 0.0
    %v3779 = vmax.f32 %v3635, 0.0
    %v3780 = vmax.f32 %v3676, 0.0
    %v3781 = vmax.f32 %v3678, 0.0
    %v3782 = vmax.f32 %v3719, 0.0
    %v3783 = vmax.f32 %v3721, 0.0
    %v3784 = vmax.f32 %v3762, 0.0
    %v3785 = vmax.f32 %v3764, 0.0
    %v3786 = vmax.f32 %v3465, 0.0
    %v3787 = vmax.f32 %v3467, 0.0
    %v3788 = vmax.f32 %v3508, 0.0
    %v3789 = vmax.f32 %v3510, 0.0
    %v3790 = vmax.f32 %v3551, 0.0
    %v3791 = vmax.f32 %v3553, 0.0
    %v3792 = vmax.f32 %v3594, 0.0
    %v3793 = vmax.f32 %v3596, 0.0
    %v3794 = vmax.f32 %v3637, 0.0
    %v3795 = vmax.f32 %v3639, 0.0
    %v3796 = vmax.f32 %v3680, 0.0
    %v3797 = vmax.f32 %v3682, 0.0
    %v3798 = vmax.f32 %v3723, 0.0
    %v3799 = vmax.f32 %v3725, 0.0
    %v3800 = vmax.f32 %v3766, 0.0
    %v3801 = vmax.f32 %v3768, 0.0
    %v3802 = vpack.c.bf16 %v3786, %v3770
    %v3803 = vpack.c.bf16 %v3787, %v3771
    %v3804 = vpack.c.bf16 %v3788, %v3772
    %v3805 = vpack.c.bf16 %v3789, %v3773
    %v3806 = vpack.c.bf16 %v3790, %v3774
    %v3807 = vpack.c.bf16 %v3791, %v3775
    %v3808 = vpack.c.bf16 %v3792, %v3776
    %v3809 = vpack.c.bf16 %v3793, %v3777
    %v3810 = vpack.c.bf16 %v3794, %v3778
    %v3811 = vpack.c.bf16 %v3795, %v3779
    %v3812 = vpack.c.bf16 %v3796, %v3780
    %v3813 = vpack.c.bf16 %v3797, %v3781
    %v3814 = vpack.c.bf16 %v3798, %v3782
    %v3815 = vpack.c.bf16 %v3799, %v3783
    %v3816 = vpack.c.bf16 %v3800, %v3784
    %v3817 = vpack.c.bf16 %v3801, %v3785
    %v3818 = vld [vmem:[#allocation11] sm:$0xf]
    %v3819 = vld [vmem:[#allocation11 + $0x4] sm:$0xf]
    %v3820 = vld [vmem:[#allocation11 + $0x8] sm:$0xf]
    %v3821 = vld [vmem:[#allocation11 + $0xc] sm:$0xf]
    %v3822 = vld [vmem:[#allocation11 + $0x10] sm:$0xf]
    %v3823 = vld [vmem:[#allocation11 + $0x14] sm:$0xf]
    %v3824 = vld [vmem:[#allocation11 + $0x18] sm:$0xf]
    %v3825 = vld [vmem:[#allocation11 + $0x1c] sm:$0xf]
    %v3826 = vld [vmem:[#allocation11 + $0x20] sm:$0xf]
    %v3827 = vld [vmem:[#allocation11 + $0x24] sm:$0xf]
    %v3828 = vld [vmem:[#allocation11 + $0x28] sm:$0xf]
    %v3829 = vld [vmem:[#allocation11 + $0x2c] sm:$0xf]
    %v3830 = vld [vmem:[#allocation11 + $0x30] sm:$0xf]
    %v3831 = vld [vmem:[#allocation11 + $0x34] sm:$0xf]
    %v3832 = vld [vmem:[#allocation11 + $0x38] sm:$0xf]
    %v3833 = vld [vmem:[#allocation11 + $0x3c] sm:$0xf]
    %v3834 = vld [vmem:[#allocation11 + $0x40] sm:$0xf]
    %v3835 = vld [vmem:[#allocation11 + $0x44] sm:$0xf]
    %v3836 = vld [vmem:[#allocation11 + $0x48] sm:$0xf]
    %v3837 = vld [vmem:[#allocation11 + $0x4c] sm:$0xf]
    %v3838 = vld [vmem:[#allocation11 + $0x50] sm:$0xf]
    %v3839 = vld [vmem:[#allocation11 + $0x54] sm:$0xf]
    %v3840 = vld [vmem:[#allocation11 + $0x58] sm:$0xf]
    %v3841 = vld [vmem:[#allocation11 + $0x5c] sm:$0xf]
    %v3842 = vld [vmem:[#allocation11 + $0x60] sm:$0xf]
    %v3843 = vld [vmem:[#allocation11 + $0x64] sm:$0xf]
    %v3844 = vld [vmem:[#allocation11 + $0x68] sm:$0xf]
    %v3845 = vld [vmem:[#allocation11 + $0x6c] sm:$0xf]
    %v3846 = vld [vmem:[#allocation11 + $0x70] sm:$0xf]
    %v3847 = vld [vmem:[#allocation11 + $0x74] sm:$0xf]
    %v3848 = vld [vmem:[#allocation11 + $0x78] sm:$0xf]
    %v3849 = vld [vmem:[#allocation11 + $0x7c] sm:$0xf]
    %v3850 = vld [vmem:[#allocation11 + $0x80] sm:$0xf]
    %v3851 = vld [vmem:[#allocation11 + $0x84] sm:$0xf]
    %v3852 = vld [vmem:[#allocation11 + $0x88] sm:$0xf]
    %v3853 = vld [vmem:[#allocation11 + $0x8c] sm:$0xf]
    %v3854 = vld [vmem:[#allocation11 + $0x90] sm:$0xf]
    %v3855 = vld [vmem:[#allocation11 + $0x94] sm:$0xf]
    %v3856 = vld [vmem:[#allocation11 + $0x98] sm:$0xf]
    %v3857 = vld [vmem:[#allocation11 + $0x9c] sm:$0xf]
    %v3858 = vld [vmem:[#allocation11 + $0xa0] sm:$0xf]
    %v3859 = vld [vmem:[#allocation11 + $0xa4] sm:$0xf]
    %v3860 = vld [vmem:[#allocation11 + $0xa8] sm:$0xf]
    %v3861 = vld [vmem:[#allocation11 + $0xac] sm:$0xf]
    %v3862 = vld [vmem:[#allocation11 + $0xb0] sm:$0xf]
    %v3863 = vld [vmem:[#allocation11 + $0xb4] sm:$0xf]
    %v3864 = vld [vmem:[#allocation11 + $0xb8] sm:$0xf]
    %v3865 = vld [vmem:[#allocation11 + $0xbc] sm:$0xf]
    %v3866 = vld [vmem:[#allocation11 + $0xc0] sm:$0xf]
    %v3867 = vld [vmem:[#allocation11 + $0xc4] sm:$0xf]
    %v3868 = vld [vmem:[#allocation11 + $0xc8] sm:$0xf]
    %v3869 = vld [vmem:[#allocation11 + $0xcc] sm:$0xf]
    %v3870 = vld [vmem:[#allocation11 + $0xd0] sm:$0xf]
    %v3871 = vld [vmem:[#allocation11 + $0xd4] sm:$0xf]
    %v3872 = vld [vmem:[#allocation11 + $0xd8] sm:$0xf]
    %v3873 = vld [vmem:[#allocation11 + $0xdc] sm:$0xf]
    %v3874 = vld [vmem:[#allocation11 + $0xe0] sm:$0xf]
    %v3875 = vld [vmem:[#allocation11 + $0xe4] sm:$0xf]
    %v3876 = vld [vmem:[#allocation11 + $0xe8] sm:$0xf]
    %v3877 = vld [vmem:[#allocation11 + $0xec] sm:$0xf]
    %v3878 = vld [vmem:[#allocation11 + $0xf0] sm:$0xf]
    %v3879 = vld [vmem:[#allocation11 + $0xf4] sm:$0xf]
    %v3880 = vld [vmem:[#allocation11 + $0xf8] sm:$0xf]
    %v3881 = vld [vmem:[#allocation11 + $0xfc] sm:$0xf]
    %v3882 = vld [vmem:[#allocation11 + $0x100] sm:$0xf]
    %v3883 = vld [vmem:[#allocation11 + $0x104] sm:$0xf]
    %v3884 = vld [vmem:[#allocation11 + $0x108] sm:$0xf]
    %v3885 = vld [vmem:[#allocation11 + $0x10c] sm:$0xf]
    %v3886 = vld [vmem:[#allocation11 + $0x110] sm:$0xf]
    %v3887 = vld [vmem:[#allocation11 + $0x114] sm:$0xf]
    %v3888 = vld [vmem:[#allocation11 + $0x118] sm:$0xf]
    %v3889 = vld [vmem:[#allocation11 + $0x11c] sm:$0xf]
    %v3890 = vld [vmem:[#allocation11 + $0x120] sm:$0xf]
    %v3891 = vld [vmem:[#allocation11 + $0x124] sm:$0xf]
    %v3892 = vld [vmem:[#allocation11 + $0x128] sm:$0xf]
    %v3893 = vld [vmem:[#allocation11 + $0x12c] sm:$0xf]
    %v3894 = vld [vmem:[#allocation11 + $0x130] sm:$0xf]
    %v3895 = vld [vmem:[#allocation11 + $0x134] sm:$0xf]
    %v3896 = vld [vmem:[#allocation11 + $0x138] sm:$0xf]
    %v3897 = vld [vmem:[#allocation11 + $0x13c] sm:$0xf]
    %v3898 = vld [vmem:[#allocation11 + $0x140] sm:$0xf]
    %v3899 = vld [vmem:[#allocation11 + $0x144] sm:$0xf]
    %v3900 = vld [vmem:[#allocation11 + $0x148] sm:$0xf]
    %v3901 = vld [vmem:[#allocation11 + $0x14c] sm:$0xf]
    %v3902 = vld [vmem:[#allocation11 + $0x150] sm:$0xf]
    %v3903 = vld [vmem:[#allocation11 + $0x154] sm:$0xf]
    %v3904 = vld [vmem:[#allocation11 + $0x158] sm:$0xf]
    %v3905 = vld [vmem:[#allocation11 + $0x15c] sm:$0xf]
    %v3906 = vld [vmem:[#allocation11 + $0x160] sm:$0xf]
    %v3907 = vld [vmem:[#allocation11 + $0x164] sm:$0xf]
    %v3908 = vld [vmem:[#allocation11 + $0x168] sm:$0xf]
    %v3909 = vld [vmem:[#allocation11 + $0x16c] sm:$0xf]
    %v3910 = vld [vmem:[#allocation11 + $0x170] sm:$0xf]
    %v3911 = vld [vmem:[#allocation11 + $0x174] sm:$0xf]
    %v3912 = vld [vmem:[#allocation11 + $0x178] sm:$0xf]
    %v3913 = vld [vmem:[#allocation11 + $0x17c] sm:$0xf]
    %v3914 = vld [vmem:[#allocation11 + $0x180] sm:$0xf]
    %v3915 = vld [vmem:[#allocation11 + $0x184] sm:$0xf]
    %v3916 = vld [vmem:[#allocation11 + $0x188] sm:$0xf]
    %v3917 = vld [vmem:[#allocation11 + $0x18c] sm:$0xf]
    %v3918 = vld [vmem:[#allocation11 + $0x190] sm:$0xf]
    %v3919 = vld [vmem:[#allocation11 + $0x194] sm:$0xf]
    %v3920 = vld [vmem:[#allocation11 + $0x198] sm:$0xf]
    %v3921 = vld [vmem:[#allocation11 + $0x19c] sm:$0xf]
    %v3922 = vld [vmem:[#allocation11 + $0x1a0] sm:$0xf]
    %v3923 = vld [vmem:[#allocation11 + $0x1a4] sm:$0xf]
    %v3924 = vld [vmem:[#allocation11 + $0x1a8] sm:$0xf]
    %v3925 = vld [vmem:[#allocation11 + $0x1ac] sm:$0xf]
    %v3926 = vld [vmem:[#allocation11 + $0x1b0] sm:$0xf]
    %v3927 = vld [vmem:[#allocation11 + $0x1b4] sm:$0xf]
    %v3928 = vld [vmem:[#allocation11 + $0x1b8] sm:$0xf]
    %v3929 = vld [vmem:[#allocation11 + $0x1bc] sm:$0xf]
    %v3930 = vld [vmem:[#allocation11 + $0x1c0] sm:$0xf]
    %v3931 = vld [vmem:[#allocation11 + $0x1c4] sm:$0xf]
    %v3932 = vld [vmem:[#allocation11 + $0x1c8] sm:$0xf]
    %v3933 = vld [vmem:[#allocation11 + $0x1cc] sm:$0xf]
    %v3934 = vld [vmem:[#allocation11 + $0x1d0] sm:$0xf]
    %v3935 = vld [vmem:[#allocation11 + $0x1d4] sm:$0xf]
    %v3936 = vld [vmem:[#allocation11 + $0x1d8] sm:$0xf]
    %v3937 = vld [vmem:[#allocation11 + $0x1dc] sm:$0xf]
    %v3938 = vld [vmem:[#allocation11 + $0x1e0] sm:$0xf]
    %v3939 = vld [vmem:[#allocation11 + $0x1e4] sm:$0xf]
    %v3940 = vld [vmem:[#allocation11 + $0x1e8] sm:$0xf]
    %v3941 = vld [vmem:[#allocation11 + $0x1ec] sm:$0xf]
    %v3942 = vld [vmem:[#allocation11 + $0x1f0] sm:$0xf]
    %v3943 = vld [vmem:[#allocation11 + $0x1f4] sm:$0xf]
    %v3944 = vld [vmem:[#allocation11 + $0x1f8] sm:$0xf]
    %v3945 = vld [vmem:[#allocation11 + $0x1fc] sm:$0xf]
    %v3946 = vld [vmem:[#allocation11 + $0x200] sm:$0xf]
    %v3947 = vld [vmem:[#allocation11 + $0x204] sm:$0xf]
    %v3948 = vld [vmem:[#allocation11 + $0x208] sm:$0xf]
    %v3949 = vld [vmem:[#allocation11 + $0x20c] sm:$0xf]
    %v3950 = vld [vmem:[#allocation11 + $0x210] sm:$0xf]
    %v3951 = vld [vmem:[#allocation11 + $0x214] sm:$0xf]
    %v3952 = vld [vmem:[#allocation11 + $0x218] sm:$0xf]
    %v3953 = vld [vmem:[#allocation11 + $0x21c] sm:$0xf]
    %v3954 = vld [vmem:[#allocation11 + $0x220] sm:$0xf]
    %v3955 = vld [vmem:[#allocation11 + $0x224] sm:$0xf]
    %v3956 = vld [vmem:[#allocation11 + $0x228] sm:$0xf]
    %v3957 = vld [vmem:[#allocation11 + $0x22c] sm:$0xf]
    %v3958 = vld [vmem:[#allocation11 + $0x230] sm:$0xf]
    %v3959 = vld [vmem:[#allocation11 + $0x234] sm:$0xf]
    %v3960 = vld [vmem:[#allocation11 + $0x238] sm:$0xf]
    %v3961 = vld [vmem:[#allocation11 + $0x23c] sm:$0xf]
    %v3962 = vld [vmem:[#allocation11 + $0x240] sm:$0xf]
    %v3963 = vld [vmem:[#allocation11 + $0x244] sm:$0xf]
    %v3964 = vld [vmem:[#allocation11 + $0x248] sm:$0xf]
    %v3965 = vld [vmem:[#allocation11 + $0x24c] sm:$0xf]
    %v3966 = vld [vmem:[#allocation11 + $0x250] sm:$0xf]
    %v3967 = vld [vmem:[#allocation11 + $0x254] sm:$0xf]
    %v3968 = vld [vmem:[#allocation11 + $0x258] sm:$0xf]
    %v3969 = vld [vmem:[#allocation11 + $0x25c] sm:$0xf]
    %v3970 = vld [vmem:[#allocation11 + $0x260] sm:$0xf]
    %v3971 = vld [vmem:[#allocation11 + $0x264] sm:$0xf]
    %v3972 = vld [vmem:[#allocation11 + $0x268] sm:$0xf]
    %v3973 = vld [vmem:[#allocation11 + $0x26c] sm:$0xf]
    %v3974 = vld [vmem:[#allocation11 + $0x270] sm:$0xf]
    %v3975 = vld [vmem:[#allocation11 + $0x274] sm:$0xf]
    %v3976 = vld [vmem:[#allocation11 + $0x278] sm:$0xf]
    %v3977 = vld [vmem:[#allocation11 + $0x27c] sm:$0xf]
    %v3978 = vld [vmem:[#allocation11 + $0x280] sm:$0xf]
    %v3979 = vld [vmem:[#allocation11 + $0x284] sm:$0xf]
    %v3980 = vld [vmem:[#allocation11 + $0x288] sm:$0xf]
    %v3981 = vld [vmem:[#allocation11 + $0x28c] sm:$0xf]
    %v3982 = vld [vmem:[#allocation11 + $0x290] sm:$0xf]
    %v3983 = vld [vmem:[#allocation11 + $0x294] sm:$0xf]
    %v3984 = vld [vmem:[#allocation11 + $0x298] sm:$0xf]
    %v3985 = vld [vmem:[#allocation11 + $0x29c] sm:$0xf]
    %v3986 = vld [vmem:[#allocation11 + $0x2a0] sm:$0xf]
    %v3987 = vld [vmem:[#allocation11 + $0x2a4] sm:$0xf]
    %v3988 = vld [vmem:[#allocation11 + $0x2a8] sm:$0xf]
    %v3989 = vld [vmem:[#allocation11 + $0x2ac] sm:$0xf]
    %v3990 = vld [vmem:[#allocation11 + $0x2b0] sm:$0xf]
    %v3991 = vld [vmem:[#allocation11 + $0x2b4] sm:$0xf]
    %v3992 = vld [vmem:[#allocation11 + $0x2b8] sm:$0xf]
    %v3993 = vld [vmem:[#allocation11 + $0x2bc] sm:$0xf]
    %v3994 = vld [vmem:[#allocation11 + $0x2c0] sm:$0xf]
    %v3995 = vld [vmem:[#allocation11 + $0x2c4] sm:$0xf]
    %v3996 = vld [vmem:[#allocation11 + $0x2c8] sm:$0xf]
    %v3997 = vld [vmem:[#allocation11 + $0x2cc] sm:$0xf]
    %v3998 = vld [vmem:[#allocation11 + $0x2d0] sm:$0xf]
    %v3999 = vld [vmem:[#allocation11 + $0x2d4] sm:$0xf]
    %v4000 = vld [vmem:[#allocation11 + $0x2d8] sm:$0xf]
    %v4001 = vld [vmem:[#allocation11 + $0x2dc] sm:$0xf]
    %v4002 = vld [vmem:[#allocation11 + $0x2e0] sm:$0xf]
    %v4003 = vld [vmem:[#allocation11 + $0x2e4] sm:$0xf]
    %v4004 = vld [vmem:[#allocation11 + $0x2e8] sm:$0xf]
    %v4005 = vld [vmem:[#allocation11 + $0x2ec] sm:$0xf]
    %v4006 = vld [vmem:[#allocation11 + $0x2f0] sm:$0xf]
    %v4007 = vld [vmem:[#allocation11 + $0x2f4] sm:$0xf]
    %v4008 = vld [vmem:[#allocation11 + $0x2f8] sm:$0xf]
    %v4009 = vld [vmem:[#allocation11 + $0x2fc] sm:$0xf]
    %v4010 = vld [vmem:[#allocation11 + $0x300] sm:$0xf]
    %v4011 = vld [vmem:[#allocation11 + $0x304] sm:$0xf]
    %v4012 = vld [vmem:[#allocation11 + $0x308] sm:$0xf]
    %v4013 = vld [vmem:[#allocation11 + $0x30c] sm:$0xf]
    %v4014 = vld [vmem:[#allocation11 + $0x310] sm:$0xf]
    %v4015 = vld [vmem:[#allocation11 + $0x314] sm:$0xf]
    %v4016 = vld [vmem:[#allocation11 + $0x318] sm:$0xf]
    %v4017 = vld [vmem:[#allocation11 + $0x31c] sm:$0xf]
    %v4018 = vld [vmem:[#allocation11 + $0x320] sm:$0xf]
    %v4019 = vld [vmem:[#allocation11 + $0x324] sm:$0xf]
    %v4020 = vld [vmem:[#allocation11 + $0x328] sm:$0xf]
    %v4021 = vld [vmem:[#allocation11 + $0x32c] sm:$0xf]
    %v4022 = vld [vmem:[#allocation11 + $0x330] sm:$0xf]
    %v4023 = vld [vmem:[#allocation11 + $0x334] sm:$0xf]
    %v4024 = vld [vmem:[#allocation11 + $0x338] sm:$0xf]
    %v4025 = vld [vmem:[#allocation11 + $0x33c] sm:$0xf]
    %v4026 = vld [vmem:[#allocation11 + $0x340] sm:$0xf]
    %v4027 = vld [vmem:[#allocation11 + $0x344] sm:$0xf]
    %v4028 = vld [vmem:[#allocation11 + $0x348] sm:$0xf]
    %v4029 = vld [vmem:[#allocation11 + $0x34c] sm:$0xf]
    %v4030 = vld [vmem:[#allocation11 + $0x350] sm:$0xf]
    %v4031 = vld [vmem:[#allocation11 + $0x354] sm:$0xf]
    %v4032 = vld [vmem:[#allocation11 + $0x358] sm:$0xf]
    %v4033 = vld [vmem:[#allocation11 + $0x35c] sm:$0xf]
    %v4034 = vld [vmem:[#allocation11 + $0x360] sm:$0xf]
    %v4035 = vld [vmem:[#allocation11 + $0x364] sm:$0xf]
    %v4036 = vld [vmem:[#allocation11 + $0x368] sm:$0xf]
    %v4037 = vld [vmem:[#allocation11 + $0x36c] sm:$0xf]
    %v4038 = vld [vmem:[#allocation11 + $0x370] sm:$0xf]
    %v4039 = vld [vmem:[#allocation11 + $0x374] sm:$0xf]
    %v4040 = vld [vmem:[#allocation11 + $0x378] sm:$0xf]
    %v4041 = vld [vmem:[#allocation11 + $0x37c] sm:$0xf]
    %v4042 = vld [vmem:[#allocation11 + $0x380] sm:$0xf]
    %v4043 = vld [vmem:[#allocation11 + $0x384] sm:$0xf]
    %v4044 = vld [vmem:[#allocation11 + $0x388] sm:$0xf]
    %v4045 = vld [vmem:[#allocation11 + $0x38c] sm:$0xf]
    %v4046 = vld [vmem:[#allocation11 + $0x390] sm:$0xf]
    %v4047 = vld [vmem:[#allocation11 + $0x394] sm:$0xf]
    %v4048 = vld [vmem:[#allocation11 + $0x398] sm:$0xf]
    %v4049 = vld [vmem:[#allocation11 + $0x39c] sm:$0xf]
    %v4050 = vld [vmem:[#allocation11 + $0x3a0] sm:$0xf]
    %v4051 = vld [vmem:[#allocation11 + $0x3a4] sm:$0xf]
    %v4052 = vld [vmem:[#allocation11 + $0x3a8] sm:$0xf]
    %v4053 = vld [vmem:[#allocation11 + $0x3ac] sm:$0xf]
    %v4054 = vld [vmem:[#allocation11 + $0x3b0] sm:$0xf]
    %v4055 = vld [vmem:[#allocation11 + $0x3b4] sm:$0xf]
    %v4056 = vld [vmem:[#allocation11 + $0x3b8] sm:$0xf]
    %v4057 = vld [vmem:[#allocation11 + $0x3bc] sm:$0xf]
    %v4058 = vld [vmem:[#allocation11 + $0x3c0] sm:$0xf]
    %v4059 = vld [vmem:[#allocation11 + $0x3c4] sm:$0xf]
    %v4060 = vld [vmem:[#allocation11 + $0x3c8] sm:$0xf]
    %v4061 = vld [vmem:[#allocation11 + $0x3cc] sm:$0xf]
    %v4062 = vld [vmem:[#allocation11 + $0x3d0] sm:$0xf]
    %v4063 = vld [vmem:[#allocation11 + $0x3d4] sm:$0xf]
    %v4064 = vld [vmem:[#allocation11 + $0x3d8] sm:$0xf]
    %v4065 = vld [vmem:[#allocation11 + $0x3dc] sm:$0xf]
    %v4066 = vld [vmem:[#allocation11 + $0x3e0] sm:$0xf]
    %v4067 = vld [vmem:[#allocation11 + $0x3e4] sm:$0xf]
    %v4068 = vld [vmem:[#allocation11 + $0x3e8] sm:$0xf]
    %v4069 = vld [vmem:[#allocation11 + $0x3ec] sm:$0xf]
    %v4070 = vld [vmem:[#allocation11 + $0x3f0] sm:$0xf]
    %v4071 = vld [vmem:[#allocation11 + $0x3f4] sm:$0xf]
    %v4072 = vld [vmem:[#allocation11 + $0x3f8] sm:$0xf]
    %v4073 = vld [vmem:[#allocation11 + $0x3fc] sm:$0xf]
    %v4074 = vld [vmem:[#allocation5 + $0x7] sm:$0x1]
    %v4076 = vlaneseq
    %v4077 = vshrl.u32 %v4076, 7
    %v4078 = vsub.s32 0, %v4077
    %v4079 = vrot.slane %v4074, %v4078
    %v4337 = vunpack.c.l.b16 %v3818
    %v4338 = vunpack.c.l.b16 %v3819
    %v4339 = vunpack.c.l.b16 %v3820
    %v4340 = vunpack.c.l.b16 %v3821
    %v4341 = vunpack.c.l.b16 %v3822
    %v4342 = vunpack.c.l.b16 %v3823
    %v4343 = vunpack.c.l.b16 %v3824
    %v4344 = vunpack.c.l.b16 %v3825
    %v4345 = vunpack.c.l.b16 %v3826
    %v4346 = vunpack.c.l.b16 %v3827
    %v4347 = vunpack.c.l.b16 %v3828
    %v4348 = vunpack.c.l.b16 %v3829
    %v4349 = vunpack.c.l.b16 %v3830
    %v4350 = vunpack.c.l.b16 %v3831
    %v4351 = vunpack.c.l.b16 %v3832
    %v4352 = vunpack.c.l.b16 %v3833
    %v4353 = vunpack.c.l.b16 %v3834
    %v4354 = vunpack.c.l.b16 %v3835
    %v4355 = vunpack.c.l.b16 %v3836
    %v4356 = vunpack.c.l.b16 %v3837
    %v4357 = vunpack.c.l.b16 %v3838
    %v4358 = vunpack.c.l.b16 %v3839
    %v4359 = vunpack.c.l.b16 %v3840
    %v4360 = vunpack.c.l.b16 %v3841
    %v4361 = vunpack.c.l.b16 %v3842
    %v4362 = vunpack.c.l.b16 %v3843
    %v4363 = vunpack.c.l.b16 %v3844
    %v4364 = vunpack.c.l.b16 %v3845
    %v4365 = vunpack.c.l.b16 %v3846
    %v4366 = vunpack.c.l.b16 %v3847
    %v4367 = vunpack.c.l.b16 %v3848
    %v4368 = vunpack.c.l.b16 %v3849
    %v4369 = vunpack.c.l.b16 %v3850
    %v4370 = vunpack.c.l.b16 %v3851
    %v4371 = vunpack.c.l.b16 %v3852
    %v4372 = vunpack.c.l.b16 %v3853
    %v4373 = vunpack.c.l.b16 %v3854
    %v4374 = vunpack.c.l.b16 %v3855
    %v4375 = vunpack.c.l.b16 %v3856
    %v4376 = vunpack.c.l.b16 %v3857
    %v4377 = vunpack.c.l.b16 %v3858
    %v4378 = vunpack.c.l.b16 %v3859
    %v4379 = vunpack.c.l.b16 %v3860
    %v4380 = vunpack.c.l.b16 %v3861
    %v4381 = vunpack.c.l.b16 %v3862
    %v4382 = vunpack.c.l.b16 %v3863
    %v4383 = vunpack.c.l.b16 %v3864
    %v4384 = vunpack.c.l.b16 %v3865
    %v4385 = vunpack.c.l.b16 %v3866
    %v4386 = vunpack.c.l.b16 %v3867
    %v4387 = vunpack.c.l.b16 %v3868
    %v4388 = vunpack.c.l.b16 %v3869
    %v4389 = vunpack.c.l.b16 %v3870
    %v4390 = vunpack.c.l.b16 %v3871
    %v4391 = vunpack.c.l.b16 %v3872
    %v4392 = vunpack.c.l.b16 %v3873
    %v4393 = vunpack.c.l.b16 %v3874
    %v4394 = vunpack.c.l.b16 %v3875
    %v4395 = vunpack.c.l.b16 %v3876
    %v4396 = vunpack.c.l.b16 %v3877
    %v4397 = vunpack.c.l.b16 %v3878
    %v4398 = vunpack.c.l.b16 %v3879
    %v4399 = vunpack.c.l.b16 %v3880
    %v4400 = vunpack.c.l.b16 %v3881
    %v4401 = vunpack.c.l.b16 %v3882
    %v4402 = vunpack.c.l.b16 %v3883
    %v4403 = vunpack.c.l.b16 %v3884
    %v4404 = vunpack.c.l.b16 %v3885
    %v4405 = vunpack.c.l.b16 %v3886
    %v4406 = vunpack.c.l.b16 %v3887
    %v4407 = vunpack.c.l.b16 %v3888
    %v4408 = vunpack.c.l.b16 %v3889
    %v4409 = vunpack.c.l.b16 %v3890
    %v4410 = vunpack.c.l.b16 %v3891
    %v4411 = vunpack.c.l.b16 %v3892
    %v4412 = vunpack.c.l.b16 %v3893
    %v4413 = vunpack.c.l.b16 %v3894
    %v4414 = vunpack.c.l.b16 %v3895
    %v4415 = vunpack.c.l.b16 %v3896
    %v4416 = vunpack.c.l.b16 %v3897
    %v4417 = vunpack.c.l.b16 %v3898
    %v4418 = vunpack.c.l.b16 %v3899
    %v4419 = vunpack.c.l.b16 %v3900
    %v4420 = vunpack.c.l.b16 %v3901
    %v4421 = vunpack.c.l.b16 %v3902
    %v4422 = vunpack.c.l.b16 %v3903
    %v4423 = vunpack.c.l.b16 %v3904
    %v4424 = vunpack.c.l.b16 %v3905
    %v4425 = vunpack.c.l.b16 %v3906
    %v4426 = vunpack.c.l.b16 %v3907
    %v4427 = vunpack.c.l.b16 %v3908
    %v4428 = vunpack.c.l.b16 %v3909
    %v4429 = vunpack.c.l.b16 %v3910
    %v4430 = vunpack.c.l.b16 %v3911
    %v4431 = vunpack.c.l.b16 %v3912
    %v4432 = vunpack.c.l.b16 %v3913
    %v4433 = vunpack.c.l.b16 %v3914
    %v4434 = vunpack.c.l.b16 %v3915
    %v4435 = vunpack.c.l.b16 %v3916
    %v4436 = vunpack.c.l.b16 %v3917
    %v4437 = vunpack.c.l.b16 %v3918
    %v4438 = vunpack.c.l.b16 %v3919
    %v4439 = vunpack.c.l.b16 %v3920
    %v4440 = vunpack.c.l.b16 %v3921
    %v4441 = vunpack.c.l.b16 %v3922
    %v4442 = vunpack.c.l.b16 %v3923
    %v4443 = vunpack.c.l.b16 %v3924
    %v4444 = vunpack.c.l.b16 %v3925
    %v4445 = vunpack.c.l.b16 %v3926
    %v4446 = vunpack.c.l.b16 %v3927
    %v4447 = vunpack.c.l.b16 %v3928
    %v4448 = vunpack.c.l.b16 %v3929
    %v4449 = vunpack.c.l.b16 %v3930
    %v4450 = vunpack.c.l.b16 %v3931
    %v4451 = vunpack.c.l.b16 %v3932
    %v4452 = vunpack.c.l.b16 %v3933
    %v4453 = vunpack.c.l.b16 %v3934
    %v4454 = vunpack.c.l.b16 %v3935
    %v4455 = vunpack.c.l.b16 %v3936
    %v4456 = vunpack.c.l.b16 %v3937
    %v4457 = vunpack.c.l.b16 %v3938
    %v4458 = vunpack.c.l.b16 %v3939
    %v4459 = vunpack.c.l.b16 %v3940
    %v4460 = vunpack.c.l.b16 %v3941
    %v4461 = vunpack.c.l.b16 %v3942
    %v4462 = vunpack.c.l.b16 %v3943
    %v4463 = vunpack.c.l.b16 %v3944
    %v4464 = vunpack.c.l.b16 %v3945
    %v4465 = vunpack.c.l.b16 %v3946
    %v4466 = vunpack.c.l.b16 %v3947
    %v4467 = vunpack.c.l.b16 %v3948
    %v4468 = vunpack.c.l.b16 %v3949
    %v4469 = vunpack.c.l.b16 %v3950
    %v4470 = vunpack.c.l.b16 %v3951
    %v4471 = vunpack.c.l.b16 %v3952
    %v4472 = vunpack.c.l.b16 %v3953
    %v4473 = vunpack.c.l.b16 %v3954
    %v4474 = vunpack.c.l.b16 %v3955
    %v4475 = vunpack.c.l.b16 %v3956
    %v4476 = vunpack.c.l.b16 %v3957
    %v4477 = vunpack.c.l.b16 %v3958
    %v4478 = vunpack.c.l.b16 %v3959
    %v4479 = vunpack.c.l.b16 %v3960
    %v4480 = vunpack.c.l.b16 %v3961
    %v4481 = vunpack.c.l.b16 %v3962
    %v4482 = vunpack.c.l.b16 %v3963
    %v4483 = vunpack.c.l.b16 %v3964
    %v4484 = vunpack.c.l.b16 %v3965
    %v4485 = vunpack.c.l.b16 %v3966
    %v4486 = vunpack.c.l.b16 %v3967
    %v4487 = vunpack.c.l.b16 %v3968
    %v4488 = vunpack.c.l.b16 %v3969
    %v4489 = vunpack.c.l.b16 %v3970
    %v4490 = vunpack.c.l.b16 %v3971
    %v4491 = vunpack.c.l.b16 %v3972
    %v4492 = vunpack.c.l.b16 %v3973
    %v4493 = vunpack.c.l.b16 %v3974
    %v4494 = vunpack.c.l.b16 %v3975
    %v4495 = vunpack.c.l.b16 %v3976
    %v4496 = vunpack.c.l.b16 %v3977
    %v4497 = vunpack.c.l.b16 %v3978
    %v4498 = vunpack.c.l.b16 %v3979
    %v4499 = vunpack.c.l.b16 %v3980
    %v4500 = vunpack.c.l.b16 %v3981
    %v4501 = vunpack.c.l.b16 %v3982
    %v4502 = vunpack.c.l.b16 %v3983
    %v4503 = vunpack.c.l.b16 %v3984
    %v4504 = vunpack.c.l.b16 %v3985
    %v4505 = vunpack.c.l.b16 %v3986
    %v4506 = vunpack.c.l.b16 %v3987
    %v4507 = vunpack.c.l.b16 %v3988
    %v4508 = vunpack.c.l.b16 %v3989
    %v4509 = vunpack.c.l.b16 %v3990
    %v4510 = vunpack.c.l.b16 %v3991
    %v4511 = vunpack.c.l.b16 %v3992
    %v4512 = vunpack.c.l.b16 %v3993
    %v4513 = vunpack.c.l.b16 %v3994
    %v4514 = vunpack.c.l.b16 %v3995
    %v4515 = vunpack.c.l.b16 %v3996
    %v4516 = vunpack.c.l.b16 %v3997
    %v4517 = vunpack.c.l.b16 %v3998
    %v4518 = vunpack.c.l.b16 %v3999
    %v4519 = vunpack.c.l.b16 %v4000
    %v4520 = vunpack.c.l.b16 %v4001
    %v4521 = vunpack.c.l.b16 %v4002
    %v4522 = vunpack.c.l.b16 %v4003
    %v4523 = vunpack.c.l.b16 %v4004
    %v4524 = vunpack.c.l.b16 %v4005
    %v4525 = vunpack.c.l.b16 %v4006
    %v4526 = vunpack.c.l.b16 %v4007
    %v4527 = vunpack.c.l.b16 %v4008
    %v4528 = vunpack.c.l.b16 %v4009
    %v4529 = vunpack.c.l.b16 %v4010
    %v4530 = vunpack.c.l.b16 %v4011
    %v4531 = vunpack.c.l.b16 %v4012
    %v4532 = vunpack.c.l.b16 %v4013
    %v4533 = vunpack.c.l.b16 %v4014
    %v4534 = vunpack.c.l.b16 %v4015
    %v4535 = vunpack.c.l.b16 %v4016
    %v4536 = vunpack.c.l.b16 %v4017
    %v4537 = vunpack.c.l.b16 %v4018
    %v4538 = vunpack.c.l.b16 %v4019
    %v4539 = vunpack.c.l.b16 %v4020
    %v4540 = vunpack.c.l.b16 %v4021
    %v4541 = vunpack.c.l.b16 %v4022
    %v4542 = vunpack.c.l.b16 %v4023
    %v4543 = vunpack.c.l.b16 %v4024
    %v4544 = vunpack.c.l.b16 %v4025
    %v4545 = vunpack.c.l.b16 %v4026
    %v4546 = vunpack.c.l.b16 %v4027
    %v4547 = vunpack.c.l.b16 %v4028
    %v4548 = vunpack.c.l.b16 %v4029
    %v4549 = vunpack.c.l.b16 %v4030
    %v4550 = vunpack.c.l.b16 %v4031
    %v4551 = vunpack.c.l.b16 %v4032
    %v4552 = vunpack.c.l.b16 %v4033
    %v4553 = vunpack.c.l.b16 %v4034
    %v4554 = vunpack.c.l.b16 %v4035
    %v4555 = vunpack.c.l.b16 %v4036
    %v4556 = vunpack.c.l.b16 %v4037
    %v4557 = vunpack.c.l.b16 %v4038
    %v4558 = vunpack.c.l.b16 %v4039
    %v4559 = vunpack.c.l.b16 %v4040
    %v4560 = vunpack.c.l.b16 %v4041
    %v4561 = vunpack.c.l.b16 %v4042
    %v4562 = vunpack.c.l.b16 %v4043
    %v4563 = vunpack.c.l.b16 %v4044
    %v4564 = vunpack.c.l.b16 %v4045
    %v4565 = vunpack.c.l.b16 %v4046
    %v4566 = vunpack.c.l.b16 %v4047
    %v4567 = vunpack.c.l.b16 %v4048
    %v4568 = vunpack.c.l.b16 %v4049
    %v4569 = vunpack.c.l.b16 %v4050
    %v4570 = vunpack.c.l.b16 %v4051
    %v4571 = vunpack.c.l.b16 %v4052
    %v4572 = vunpack.c.l.b16 %v4053
    %v4573 = vunpack.c.l.b16 %v4054
    %v4574 = vunpack.c.l.b16 %v4055
    %v4575 = vunpack.c.l.b16 %v4056
    %v4576 = vunpack.c.l.b16 %v4057
    %v4577 = vunpack.c.l.b16 %v4058
    %v4578 = vunpack.c.l.b16 %v4059
    %v4579 = vunpack.c.l.b16 %v4060
    %v4580 = vunpack.c.l.b16 %v4061
    %v4581 = vunpack.c.l.b16 %v4062
    %v4582 = vunpack.c.l.b16 %v4063
    %v4583 = vunpack.c.l.b16 %v4064
    %v4584 = vunpack.c.l.b16 %v4065
    %v4585 = vunpack.c.l.b16 %v4066
    %v4586 = vunpack.c.l.b16 %v4067
    %v4587 = vunpack.c.l.b16 %v4068
    %v4588 = vunpack.c.l.b16 %v4069
    %v4589 = vunpack.c.l.b16 %v4070
    %v4590 = vunpack.c.l.b16 %v4071
    %v4591 = vunpack.c.l.b16 %v4072
    %v4592 = vunpack.c.l.b16 %v4073
    %v4593 = vpack.c.b16 %v4338, %v4337
    %v4594 = vpack.c.b16 %v4340, %v4339
    %v4595 = vpack.c.b16 %v4342, %v4341
    %v4596 = vpack.c.b16 %v4344, %v4343
    %v4597 = vpack.c.b16 %v4346, %v4345
    %v4598 = vpack.c.b16 %v4348, %v4347
    %v4599 = vpack.c.b16 %v4350, %v4349
    %v4600 = vpack.c.b16 %v4352, %v4351
    %v4601 = vpack.c.b16 %v4354, %v4353
    %v4602 = vpack.c.b16 %v4356, %v4355
    %v4603 = vpack.c.b16 %v4358, %v4357
    %v4604 = vpack.c.b16 %v4360, %v4359
    %v4605 = vpack.c.b16 %v4362, %v4361
    %v4606 = vpack.c.b16 %v4364, %v4363
    %v4607 = vpack.c.b16 %v4366, %v4365
    %v4608 = vpack.c.b16 %v4368, %v4367
    %v4609 = vpack.c.b16 %v4370, %v4369
    %v4610 = vpack.c.b16 %v4372, %v4371
    %v4611 = vpack.c.b16 %v4374, %v4373
    %v4612 = vpack.c.b16 %v4376, %v4375
    %v4613 = vpack.c.b16 %v4378, %v4377
    %v4614 = vpack.c.b16 %v4380, %v4379
    %v4615 = vpack.c.b16 %v4382, %v4381
    %v4616 = vpack.c.b16 %v4384, %v4383
    %v4617 = vpack.c.b16 %v4386, %v4385
    %v4618 = vpack.c.b16 %v4388, %v4387
    %v4619 = vpack.c.b16 %v4390, %v4389
    %v4620 = vpack.c.b16 %v4392, %v4391
    %v4621 = vpack.c.b16 %v4394, %v4393
    %v4622 = vpack.c.b16 %v4396, %v4395
    %v4623 = vpack.c.b16 %v4398, %v4397
    %v4624 = vpack.c.b16 %v4400, %v4399
    %v4625 = vpack.c.b16 %v4402, %v4401
    %v4626 = vpack.c.b16 %v4404, %v4403
    %v4627 = vpack.c.b16 %v4406, %v4405
    %v4628 = vpack.c.b16 %v4408, %v4407
    %v4629 = vpack.c.b16 %v4410, %v4409
    %v4630 = vpack.c.b16 %v4412, %v4411
    %v4631 = vpack.c.b16 %v4414, %v4413
    %v4632 = vpack.c.b16 %v4416, %v4415
    %v4633 = vpack.c.b16 %v4418, %v4417
    %v4634 = vpack.c.b16 %v4420, %v4419
    %v4635 = vpack.c.b16 %v4422, %v4421
    %v4636 = vpack.c.b16 %v4424, %v4423
    %v4637 = vpack.c.b16 %v4426, %v4425
    %v4638 = vpack.c.b16 %v4428, %v4427
    %v4639 = vpack.c.b16 %v4430, %v4429
    %v4640 = vpack.c.b16 %v4432, %v4431
    %v4641 = vpack.c.b16 %v4434, %v4433
    %v4642 = vpack.c.b16 %v4436, %v4435
    %v4643 = vpack.c.b16 %v4438, %v4437
    %v4644 = vpack.c.b16 %v4440, %v4439
    %v4645 = vpack.c.b16 %v4442, %v4441
    %v4646 = vpack.c.b16 %v4444, %v4443
    %v4647 = vpack.c.b16 %v4446, %v4445
    %v4648 = vpack.c.b16 %v4448, %v4447
    %v4649 = vpack.c.b16 %v4450, %v4449
    %v4650 = vpack.c.b16 %v4452, %v4451
    %v4651 = vpack.c.b16 %v4454, %v4453
    %v4652 = vpack.c.b16 %v4456, %v4455
    %v4653 = vpack.c.b16 %v4458, %v4457
    %v4654 = vpack.c.b16 %v4460, %v4459
    %v4655 = vpack.c.b16 %v4462, %v4461
    %v4656 = vpack.c.b16 %v4464, %v4463
    %v4657 = vpack.c.b16 %v4466, %v4465
    %v4658 = vpack.c.b16 %v4468, %v4467
    %v4659 = vpack.c.b16 %v4470, %v4469
    %v4660 = vpack.c.b16 %v4472, %v4471
    %v4661 = vpack.c.b16 %v4474, %v4473
    %v4662 = vpack.c.b16 %v4476, %v4475
    %v4663 = vpack.c.b16 %v4478, %v4477
    %v4664 = vpack.c.b16 %v4480, %v4479
    %v4665 = vpack.c.b16 %v4482, %v4481
    %v4666 = vpack.c.b16 %v4484, %v4483
    %v4667 = vpack.c.b16 %v4486, %v4485
    %v4668 = vpack.c.b16 %v4488, %v4487
    %v4669 = vpack.c.b16 %v4490, %v4489
    %v4670 = vpack.c.b16 %v4492, %v4491
    %v4671 = vpack.c.b16 %v4494, %v4493
    %v4672 = vpack.c.b16 %v4496, %v4495
    %v4673 = vpack.c.b16 %v4498, %v4497
    %v4674 = vpack.c.b16 %v4500, %v4499
    %v4675 = vpack.c.b16 %v4502, %v4501
    %v4676 = vpack.c.b16 %v4504, %v4503
    %v4677 = vpack.c.b16 %v4506, %v4505
    %v4678 = vpack.c.b16 %v4508, %v4507
    %v4679 = vpack.c.b16 %v4510, %v4509
    %v4680 = vpack.c.b16 %v4512, %v4511
    %v4681 = vpack.c.b16 %v4514, %v4513
    %v4682 = vpack.c.b16 %v4516, %v4515
    %v4683 = vpack.c.b16 %v4518, %v4517
    %v4684 = vpack.c.b16 %v4520, %v4519
    %v4685 = vpack.c.b16 %v4522, %v4521
    %v4686 = vpack.c.b16 %v4524, %v4523
    %v4687 = vpack.c.b16 %v4526, %v4525
    %v4688 = vpack.c.b16 %v4528, %v4527
    %v4689 = vpack.c.b16 %v4530, %v4529
    %v4690 = vpack.c.b16 %v4532, %v4531
    %v4691 = vpack.c.b16 %v4534, %v4533
    %v4692 = vpack.c.b16 %v4536, %v4535
    %v4693 = vpack.c.b16 %v4538, %v4537
    %v4694 = vpack.c.b16 %v4540, %v4539
    %v4695 = vpack.c.b16 %v4542, %v4541
    %v4696 = vpack.c.b16 %v4544, %v4543
    %v4697 = vpack.c.b16 %v4546, %v4545
    %v4698 = vpack.c.b16 %v4548, %v4547
    %v4699 = vpack.c.b16 %v4550, %v4549
    %v4700 = vpack.c.b16 %v4552, %v4551
    %v4701 = vpack.c.b16 %v4554, %v4553
    %v4702 = vpack.c.b16 %v4556, %v4555
    %v4703 = vpack.c.b16 %v4558, %v4557
    %v4704 = vpack.c.b16 %v4560, %v4559
    %v4705 = vpack.c.b16 %v4562, %v4561
    %v4706 = vpack.c.b16 %v4564, %v4563
    %v4707 = vpack.c.b16 %v4566, %v4565
    %v4708 = vpack.c.b16 %v4568, %v4567
    %v4709 = vpack.c.b16 %v4570, %v4569
    %v4710 = vpack.c.b16 %v4572, %v4571
    %v4711 = vpack.c.b16 %v4574, %v4573
    %v4712 = vpack.c.b16 %v4576, %v4575
    %v4713 = vpack.c.b16 %v4578, %v4577
    %v4714 = vpack.c.b16 %v4580, %v4579
    %v4715 = vpack.c.b16 %v4582, %v4581
    %v4716 = vpack.c.b16 %v4584, %v4583
    %v4717 = vpack.c.b16 %v4586, %v4585
    %v4718 = vpack.c.b16 %v4588, %v4587
    %v4719 = vpack.c.b16 %v4590, %v4589
    %v4720 = vpack.c.b16 %v4592, %v4591
    %4849 = vmatprep.subr.bf16.mxu0 0
    %4850 = vmatpush1.bf16.msra.mxu0 %v4593
    %4851 = vmatprep.subr.bf16.mxu0 0
    %4852 = vmatpush1.bf16.msra.mxu0 %v4594
    %4853 = vmatprep.subr.bf16.mxu0 0
    %4854 = vmatpush1.bf16.msra.mxu0 %v4595
    %4855 = vmatprep.subr.bf16.mxu0 0
    %4856 = vmatpush1.bf16.msra.mxu0 %v4596
    %4857 = vmatprep.subr.bf16.mxu0 0
    %4858 = vmatpush1.bf16.msra.mxu0 %v4597
    %4859 = vmatprep.subr.bf16.mxu0 0
    %4860 = vmatpush1.bf16.msra.mxu0 %v4598
    %4861 = vmatprep.subr.bf16.mxu0 0
    %4862 = vmatpush1.bf16.msra.mxu0 %v4599
    %4863 = vmatprep.subr.bf16.mxu0 0
    %4864 = vmatpush1.bf16.msra.mxu0 %v4600
    %4865 = vmatprep.subr.bf16.mxu0 0
    %4866 = vmatpush1.bf16.msra.mxu0 %v4601
    %4867 = vmatprep.subr.bf16.mxu0 0
    %4868 = vmatpush1.bf16.msra.mxu0 %v4602
    %4869 = vmatprep.subr.bf16.mxu0 0
    %4870 = vmatpush1.bf16.msra.mxu0 %v4603
    %4871 = vmatprep.subr.bf16.mxu0 0
    %4872 = vmatpush1.bf16.msra.mxu0 %v4604
    %4873 = vmatprep.subr.bf16.mxu0 0
    %4874 = vmatpush1.bf16.msra.mxu0 %v4605
    %4875 = vmatprep.subr.bf16.mxu0 0
    %4876 = vmatpush1.bf16.msra.mxu0 %v4606
    %4877 = vmatprep.subr.bf16.mxu0 0
    %4878 = vmatpush1.bf16.msra.mxu0 %v4607
    %4879 = vmatprep.subr.bf16.mxu0 0
    %4880 = vmatpush1.bf16.msra.mxu0 %v4608
    %4881 = vmatprep.mubr.bf16.mxu0 %v3803
    %4882 = vmatmul.mubr.bf16.gmra.mrb[0].mxu0 %v3802
    %v4883 = vpop.f32.mrb[0].mxu0
    %v4884 = vadd.f32 %v4079, %v4883
    %v4885 = vpop.f32.mrb[0].mxu0
    %v4886 = vpop.f32.mrb[0].mxu0
    %v4887 = vadd.f32 %v4079, %v4886
    %v4888 = vpop.f32.mrb[0].mxu0
    %4889 = vdwg.mxu0
    %4890 = vmatprep.subr.bf16.mxu0 0
    %4891 = vmatpush1.bf16.msra.mxu0 %v4609
    %4892 = vmatprep.subr.bf16.mxu0 0
    %4893 = vmatpush1.bf16.msra.mxu0 %v4610
    %4894 = vmatprep.subr.bf16.mxu0 0
    %4895 = vmatpush1.bf16.msra.mxu0 %v4611
    %4896 = vmatprep.subr.bf16.mxu0 0
    %4897 = vmatpush1.bf16.msra.mxu0 %v4612
    %4898 = vmatprep.subr.bf16.mxu0 0
    %4899 = vmatpush1.bf16.msra.mxu0 %v4613
    %4900 = vmatprep.subr.bf16.mxu0 0
    %4901 = vmatpush1.bf16.msra.mxu0 %v4614
    %4902 = vmatprep.subr.bf16.mxu0 0
    %4903 = vmatpush1.bf16.msra.mxu0 %v4615
    %4904 = vmatprep.subr.bf16.mxu0 0
    %4905 = vmatpush1.bf16.msra.mxu0 %v4616
    %4906 = vmatprep.subr.bf16.mxu0 0
    %4907 = vmatpush1.bf16.msra.mxu0 %v4617
    %4908 = vmatprep.subr.bf16.mxu0 0
    %4909 = vmatpush1.bf16.msra.mxu0 %v4618
    %4910 = vmatprep.subr.bf16.mxu0 0
    %4911 = vmatpush1.bf16.msra.mxu0 %v4619
    %4912 = vmatprep.subr.bf16.mxu0 0
    %4913 = vmatpush1.bf16.msra.mxu0 %v4620
    %4914 = vmatprep.subr.bf16.mxu0 0
    %4915 = vmatpush1.bf16.msra.mxu0 %v4621
    %4916 = vmatprep.subr.bf16.mxu0 0
    %4917 = vmatpush1.bf16.msra.mxu0 %v4622
    %4918 = vmatprep.subr.bf16.mxu0 0
    %4919 = vmatpush1.bf16.msra.mxu0 %v4623
    %4920 = vmatprep.subr.bf16.mxu0 0
    %4921 = vmatpush1.bf16.msra.mxu0 %v4624
    %4922 = vmatprep.mubr.bf16.mxu0 %v3805
    %4923 = vmatmul.mubr.bf16.gmra.mrb[0].mxu0 %v3804
    %v4924 = vpop.f32.mrb[0].mxu0
    %v4925 = vadd.f32 %v4884, %v4924
    %v4926 = vpop.f32.mrb[0].mxu0
    %v4927 = vpop.f32.mrb[0].mxu0
    %v4928 = vadd.f32 %v4887, %v4927
    %v4929 = vpop.f32.mrb[0].mxu0
    %4930 = vdwg.mxu0
    %4931 = vmatprep.subr.bf16.mxu0 0
    %4932 = vmatpush1.bf16.msra.mxu0 %v4625
    %4933 = vmatprep.subr.bf16.mxu0 0
    %4934 = vmatpush1.bf16.msra.mxu0 %v4626
    %4935 = vmatprep.subr.bf16.mxu0 0
    %4936 = vmatpush1.bf16.msra.mxu0 %v4627
    %4937 = vmatprep.subr.bf16.mxu0 0
    %4938 = vmatpush1.bf16.msra.mxu0 %v4628
    %4939 = vmatprep.subr.bf16.mxu0 0
    %4940 = vmatpush1.bf16.msra.mxu0 %v4629
    %4941 = vmatprep.subr.bf16.mxu0 0
    %4942 = vmatpush1.bf16.msra.mxu0 %v4630
    %4943 = vmatprep.subr.bf16.mxu0 0
    %4944 = vmatpush1.bf16.msra.mxu0 %v4631
    %4945 = vmatprep.subr.bf16.mxu0 0
    %4946 = vmatpush1.bf16.msra.mxu0 %v4632
    %4947 = vmatprep.subr.bf16.mxu0 0
    %4948 = vmatpush1.bf16.msra.mxu0 %v4633
    %4949 = vmatprep.subr.bf16.mxu0 0
    %4950 = vmatpush1.bf16.msra.mxu0 %v4634
    %4951 = vmatprep.subr.bf16.mxu0 0
    %4952 = vmatpush1.bf16.msra.mxu0 %v4635
    %4953 = vmatprep.subr.bf16.mxu0 0
    %4954 = vmatpush1.bf16.msra.mxu0 %v4636
    %4955 = vmatprep.subr.bf16.mxu0 0
    %4956 = vmatpush1.bf16.msra.mxu0 %v4637
    %4957 = vmatprep.subr.bf16.mxu0 0
    %4958 = vmatpush1.bf16.msra.mxu0 %v4638
    %4959 = vmatprep.subr.bf16.mxu0 0
    %4960 = vmatpush1.bf16.msra.mxu0 %v4639
    %4961 = vmatprep.subr.bf16.mxu0 0
    %4962 = vmatpush1.bf16.msra.mxu0 %v4640
    %4963 = vmatprep.mubr.bf16.mxu0 %v3807
    %4964 = vmatmul.mubr.bf16.gmra.mrb[0].mxu0 %v3806
    %v4965 = vpop.f32.mrb[0].mxu0
    %v4966 = vadd.f32 %v4925, %v4965
    %v4967 = vpop.f32.mrb[0].mxu0
    %v4968 = vpop.f32.mrb[0].mxu0
    %v4969 = vadd.f32 %v4928, %v4968
    %v4970 = vpop.f32.mrb[0].mxu0
    %4971 = vdwg.mxu0
    %4972 = vmatprep.subr.bf16.mxu0 0
    %4973 = vmatpush1.bf16.msra.mxu0 %v4641
    %4974 = vmatprep.subr.bf16.mxu0 0
    %4975 = vmatpush1.bf16.msra.mxu0 %v4642
    %4976 = vmatprep.subr.bf16.mxu0 0
    %4977 = vmatpush1.bf16.msra.mxu0 %v4643
    %4978 = vmatprep.subr.bf16.mxu0 0
    %4979 = vmatpush1.bf16.msra.mxu0 %v4644
    %4980 = vmatprep.subr.bf16.mxu0 0
    %4981 = vmatpush1.bf16.msra.mxu0 %v4645
    %4982 = vmatprep.subr.bf16.mxu0 0
    %4983 = vmatpush1.bf16.msra.mxu0 %v4646
    %4984 = vmatprep.subr.bf16.mxu0 0
    %4985 = vmatpush1.bf16.msra.mxu0 %v4647
    %4986 = vmatprep.subr.bf16.mxu0 0
    %4987 = vmatpush1.bf16.msra.mxu0 %v4648
    %4988 = vmatprep.subr.bf16.mxu0 0
    %4989 = vmatpush1.bf16.msra.mxu0 %v4649
    %4990 = vmatprep.subr.bf16.mxu0 0
    %4991 = vmatpush1.bf16.msra.mxu0 %v4650
    %4992 = vmatprep.subr.bf16.mxu0 0
    %4993 = vmatpush1.bf16.msra.mxu0 %v4651
    %4994 = vmatprep.subr.bf16.mxu0 0
    %4995 = vmatpush1.bf16.msra.mxu0 %v4652
    %4996 = vmatprep.subr.bf16.mxu0 0
    %4997 = vmatpush1.bf16.msra.mxu0 %v4653
    %4998 = vmatprep.subr.bf16.mxu0 0
    %4999 = vmatpush1.bf16.msra.mxu0 %v4654
    %5000 = vmatprep.subr.bf16.mxu0 0
    %5001 = vmatpush1.bf16.msra.mxu0 %v4655
    %5002 = vmatprep.subr.bf16.mxu0 0
    %5003 = vmatpush1.bf16.msra.mxu0 %v4656
    %5004 = vmatprep.mubr.bf16.mxu0 %v3809
    %5005 = vmatmul.mubr.bf16.gmra.mrb[0].mxu0 %v3808
    %v5006 = vpop.f32.mrb[0].mxu0
    %v5007 = vadd.f32 %v4966, %v5006
    %v5008 = vpop.f32.mrb[0].mxu0
    %v5009 = vpop.f32.mrb[0].mxu0
    %v5010 = vadd.f32 %v4969, %v5009
    %v5011 = vpop.f32.mrb[0].mxu0
    %5012 = vdwg.mxu0
    %5013 = vmatprep.subr.bf16.mxu0 0
    %5014 = vmatpush1.bf16.msra.mxu0 %v4657
    %5015 = vmatprep.subr.bf16.mxu0 0
    %5016 = vmatpush1.bf16.msra.mxu0 %v4658
    %5017 = vmatprep.subr.bf16.mxu0 0
    %5018 = vmatpush1.bf16.msra.mxu0 %v4659
    %5019 = vmatprep.subr.bf16.mxu0 0
    %5020 = vmatpush1.bf16.msra.mxu0 %v4660
    %5021 = vmatprep.subr.bf16.mxu0 0
    %5022 = vmatpush1.bf16.msra.mxu0 %v4661
    %5023 = vmatprep.subr.bf16.mxu0 0
    %5024 = vmatpush1.bf16.msra.mxu0 %v4662
    %5025 = vmatprep.subr.bf16.mxu0 0
    %5026 = vmatpush1.bf16.msra.mxu0 %v4663
    %5027 = vmatprep.subr.bf16.mxu0 0
    %5028 = vmatpush1.bf16.msra.mxu0 %v4664
    %5029 = vmatprep.subr.bf16.mxu0 0
    %5030 = vmatpush1.bf16.msra.mxu0 %v4665
    %5031 = vmatprep.subr.bf16.mxu0 0
    %5032 = vmatpush1.bf16.msra.mxu0 %v4666
    %5033 = vmatprep.subr.bf16.mxu0 0
    %5034 = vmatpush1.bf16.msra.mxu0 %v4667
    %5035 = vmatprep.subr.bf16.mxu0 0
    %5036 = vmatpush1.bf16.msra.mxu0 %v4668
    %5037 = vmatprep.subr.bf16.mxu0 0
    %5038 = vmatpush1.bf16.msra.mxu0 %v4669
    %5039 = vmatprep.subr.bf16.mxu0 0
    %5040 = vmatpush1.bf16.msra.mxu0 %v4670
    %5041 = vmatprep.subr.bf16.mxu0 0
    %5042 = vmatpush1.bf16.msra.mxu0 %v4671
    %5043 = vmatprep.subr.bf16.mxu0 0
    %5044 = vmatpush1.bf16.msra.mxu0 %v4672
    %5045 = vmatprep.mubr.bf16.mxu0 %v3811
    %5046 = vmatmul.mubr.bf16.gmra.mrb[0].mxu0 %v3810
    %v5047 = vpop.f32.mrb[0].mxu0
    %v5048 = vadd.f32 %v5007, %v5047
    %v5049 = vpop.f32.mrb[0].mxu0
    %v5050 = vpop.f32.mrb[0].mxu0
    %v5051 = vadd.f32 %v5010, %v5050
    %v5052 = vpop.f32.mrb[0].mxu0
    %5053 = vdwg.mxu0
    %5054 = vmatprep.subr.bf16.mxu0 0
    %5055 = vmatpush1.bf16.msra.mxu0 %v4673
    %5056 = vmatprep.subr.bf16.mxu0 0
    %5057 = vmatpush1.bf16.msra.mxu0 %v4674
    %5058 = vmatprep.subr.bf16.mxu0 0
    %5059 = vmatpush1.bf16.msra.mxu0 %v4675
    %5060 = vmatprep.subr.bf16.mxu0 0
    %5061 = vmatpush1.bf16.msra.mxu0 %v4676
    %5062 = vmatprep.subr.bf16.mxu0 0
    %5063 = vmatpush1.bf16.msra.mxu0 %v4677
    %5064 = vmatprep.subr.bf16.mxu0 0
    %5065 = vmatpush1.bf16.msra.mxu0 %v4678
    %5066 = vmatprep.subr.bf16.mxu0 0
    %5067 = vmatpush1.bf16.msra.mxu0 %v4679
    %5068 = vmatprep.subr.bf16.mxu0 0
    %5069 = vmatpush1.bf16.msra.mxu0 %v4680
    %5070 = vmatprep.subr.bf16.mxu0 0
    %5071 = vmatpush1.bf16.msra.mxu0 %v4681
    %5072 = vmatprep.subr.bf16.mxu0 0
    %5073 = vmatpush1.bf16.msra.mxu0 %v4682
    %5074 = vmatprep.subr.bf16.mxu0 0
    %5075 = vmatpush1.bf16.msra.mxu0 %v4683
    %5076 = vmatprep.subr.bf16.mxu0 0
    %5077 = vmatpush1.bf16.msra.mxu0 %v4684
    %5078 = vmatprep.subr.bf16.mxu0 0
    %5079 = vmatpush1.bf16.msra.mxu0 %v4685
    %5080 = vmatprep.subr.bf16.mxu0 0
    %5081 = vmatpush1.bf16.msra.mxu0 %v4686
    %5082 = vmatprep.subr.bf16.mxu0 0
    %5083 = vmatpush1.bf16.msra.mxu0 %v4687
    %5084 = vmatprep.subr.bf16.mxu0 0
    %5085 = vmatpush1.bf16.msra.mxu0 %v4688
    %5086 = vmatprep.mubr.bf16.mxu0 %v3813
    %5087 = vmatmul.mubr.bf16.gmra.mrb[0].mxu0 %v3812
    %v5088 = vpop.f32.mrb[0].mxu0
    %v5089 = vadd.f32 %v5048, %v5088
    %v5090 = vpop.f32.mrb[0].mxu0
    %v5091 = vpop.f32.mrb[0].mxu0
    %v5092 = vadd.f32 %v5051, %v5091
    %v5093 = vpop.f32.mrb[0].mxu0
    %5094 = vdwg.mxu0
    %5095 = vmatprep.subr.bf16.mxu0 0
    %5096 = vmatpush1.bf16.msra.mxu0 %v4689
    %5097 = vmatprep.subr.bf16.mxu0 0
    %5098 = vmatpush1.bf16.msra.mxu0 %v4690
    %5099 = vmatprep.subr.bf16.mxu0 0
    %5100 = vmatpush1.bf16.msra.mxu0 %v4691
    %5101 = vmatprep.subr.bf16.mxu0 0
    %5102 = vmatpush1.bf16.msra.mxu0 %v4692
    %5103 = vmatprep.subr.bf16.mxu0 0
    %5104 = vmatpush1.bf16.msra.mxu0 %v4693
    %5105 = vmatprep.subr.bf16.mxu0 0
    %5106 = vmatpush1.bf16.msra.mxu0 %v4694
    %5107 = vmatprep.subr.bf16.mxu0 0
    %5108 = vmatpush1.bf16.msra.mxu0 %v4695
    %5109 = vmatprep.subr.bf16.mxu0 0
    %5110 = vmatpush1.bf16.msra.mxu0 %v4696
    %5111 = vmatprep.subr.bf16.mxu0 0
    %5112 = vmatpush1.bf16.msra.mxu0 %v4697
    %5113 = vmatprep.subr.bf16.mxu0 0
    %5114 = vmatpush1.bf16.msra.mxu0 %v4698
    %5115 = vmatprep.subr.bf16.mxu0 0
    %5116 = vmatpush1.bf16.msra.mxu0 %v4699
    %5117 = vmatprep.subr.bf16.mxu0 0
    %5118 = vmatpush1.bf16.msra.mxu0 %v4700
    %5119 = vmatprep.subr.bf16.mxu0 0
    %5120 = vmatpush1.bf16.msra.mxu0 %v4701
    %5121 = vmatprep.subr.bf16.mxu0 0
    %5122 = vmatpush1.bf16.msra.mxu0 %v4702
    %5123 = vmatprep.subr.bf16.mxu0 0
    %5124 = vmatpush1.bf16.msra.mxu0 %v4703
    %5125 = vmatprep.subr.bf16.mxu0 0
    %5126 = vmatpush1.bf16.msra.mxu0 %v4704
    %5127 = vmatprep.mubr.bf16.mxu0 %v3815
    %5128 = vmatmul.mubr.bf16.gmra.mrb[0].mxu0 %v3814
    %v5129 = vpop.f32.mrb[0].mxu0
    %v5130 = vadd.f32 %v5089, %v5129
    %v5131 = vpop.f32.mrb[0].mxu0
    %v5132 = vpop.f32.mrb[0].mxu0
    %v5133 = vadd.f32 %v5092, %v5132
    %v5134 = vpop.f32.mrb[0].mxu0
    %5135 = vdwg.mxu0
    %5136 = vmatprep.subr.bf16.mxu0 0
    %5137 = vmatpush1.bf16.msra.mxu0 %v4705
    %5138 = vmatprep.subr.bf16.mxu0 0
    %5139 = vmatpush1.bf16.msra.mxu0 %v4706
    %5140 = vmatprep.subr.bf16.mxu0 0
    %5141 = vmatpush1.bf16.msra.mxu0 %v4707
    %5142 = vmatprep.subr.bf16.mxu0 0
    %5143 = vmatpush1.bf16.msra.mxu0 %v4708
    %5144 = vmatprep.subr.bf16.mxu0 0
    %5145 = vmatpush1.bf16.msra.mxu0 %v4709
    %5146 = vmatprep.subr.bf16.mxu0 0
    %5147 = vmatpush1.bf16.msra.mxu0 %v4710
    %5148 = vmatprep.subr.bf16.mxu0 0
    %5149 = vmatpush1.bf16.msra.mxu0 %v4711
    %5150 = vmatprep.subr.bf16.mxu0 0
    %5151 = vmatpush1.bf16.msra.mxu0 %v4712
    %5152 = vmatprep.subr.bf16.mxu0 0
    %5153 = vmatpush1.bf16.msra.mxu0 %v4713
    %5154 = vmatprep.subr.bf16.mxu0 0
    %5155 = vmatpush1.bf16.msra.mxu0 %v4714
    %5156 = vmatprep.subr.bf16.mxu0 0
    %5157 = vmatpush1.bf16.msra.mxu0 %v4715
    %5158 = vmatprep.subr.bf16.mxu0 0
    %5159 = vmatpush1.bf16.msra.mxu0 %v4716
    %5160 = vmatprep.subr.bf16.mxu0 0
    %5161 = vmatpush1.bf16.msra.mxu0 %v4717
    %5162 = vmatprep.subr.bf16.mxu0 0
    %5163 = vmatpush1.bf16.msra.mxu0 %v4718
    %5164 = vmatprep.subr.bf16.mxu0 0
    %5165 = vmatpush1.bf16.msra.mxu0 %v4719
    %5166 = vmatprep.subr.bf16.mxu0 0
    %5167 = vmatpush1.bf16.msra.mxu0 %v4720
    %5168 = vmatprep.mubr.bf16.mxu0 %v3817
    %5169 = vmatmul.mubr.bf16.gmra.mrb[0].mxu0 %v3816
    %v5170 = vpop.f32.mrb[0].mxu0
    %v5171 = vadd.f32 %v5130, %v5170
    %v5172 = vpop.f32.mrb[0].mxu0
    %v5173 = vpop.f32.mrb[0].mxu0
    %v5174 = vadd.f32 %v5133, %v5173
    %v5175 = vpop.f32.mrb[0].mxu0
    %5176 = vdwg.mxu0
    %v5177 = vadd.f32 %v2531, %v5171
    %v5178 = vadd.f32 %v2532, %v5174
    %v5179 = vld [vmem:[#allocation5 + $0x4] sm:$0x1]
    %v5180 = vld [vmem:[#allocation5 + $0x5] sm:$0x1]
    %5181 = vadd.xlane.f32.xlu0 %v5177
    %v5182 = vpop.xlane.xlu0 %5181
    %5183 = vadd.xlane.f32.xlu0 %v5178
    %v5184 = vpop.xlane.xlu0 %5183
    %v5185 = vmul.f32 %v5182, %v187
    %v5186 = vmul.f32 %v5184, %v187
    %v5187 = vsub.f32 %v5177, %v5185
    %v5188 = vsub.f32 %v5178, %v5186
    %v5189 = vmul.f32 %v5187, %v5187
    %v5190 = vmul.f32 %v5188, %v5188
    %5191 = vadd.xlane.f32.xlu0 %v5189
    %v5192 = vpop.xlane.xlu0 %5191
    %5193 = vadd.xlane.f32.xlu0 %v5190
    %v5194 = vpop.xlane.xlu0 %5193
    %v5195 = vmul.f32 %v5192, %v187
    %v5196 = vmul.f32 %v5194, %v187
    %v5197 = vadd.f32 %v5195, 1e-05
    %v5198 = vadd.f32 %v5196, 1e-05
    %v5199 = vrsqrt.pop %v5197
    %v5200 = vrsqrt.pop %v5198
    %v5201 = vmul.f32 %v5187, %v5199
    %v5202 = vmul.f32 %v5188, %v5200
    %v5204 = vlaneseq
    %v5205 = vshrl.u32 %v5204, 7
    %v5206 = vsub.s32 0, %v5205
    %v5207 = vrot.slane %v5179, %v5206
    %v5209 = vmul.f32 %v5201, %v5207
    %v5210 = vmul.f32 %v5202, %v5207
    %v5212 = vlaneseq
    %v5213 = vshrl.u32 %v5212, 7
    %v5214 = vsub.s32 0, %v5213
    %v5215 = vrot.slane %v5180, %v5214
    %v5217 = vadd.f32 %v5209, %v5215
    %v5218 = vadd.f32 %v5210, %v5215
    %v5219 = vpack.c.bf16 %v5218, %v5217
    %v5220 = vld [vmem:[#allocation13] sm:$0xff]
    %v5221 = vld [vmem:[#allocation13 + $0x8] sm:$0xff]
    %v5222 = vld [vmem:[#allocation13 + $0x10] sm:$0xff]
    %v5223 = vld [vmem:[#allocation13 + $0x18] sm:$0xff]
    %v5224 = vld [vmem:[#allocation13 + $0x20] sm:$0xff]
    %v5225 = vld [vmem:[#allocation13 + $0x28] sm:$0xff]
    %v5226 = vld [vmem:[#allocation13 + $0x30] sm:$0xff]
    %v5227 = vld [vmem:[#allocation13 + $0x38] sm:$0xff]
    %v5228 = vld [vmem:[#allocation13 + $0x40] sm:$0xff]
    %v5229 = vld [vmem:[#allocation13 + $0x48] sm:$0xff]
    %v5230 = vld [vmem:[#allocation13 + $0x50] sm:$0xff]
    %v5231 = vld [vmem:[#allocation13 + $0x58] sm:$0xff]
    %v5232 = vld [vmem:[#allocation13 + $0x60] sm:$0xff]
    %v5233 = vld [vmem:[#allocation13 + $0x68] sm:$0xff]
    %v5234 = vld [vmem:[#allocation13 + $0x70] sm:$0xff]
    %v5235 = vld [vmem:[#allocation13 + $0x78] sm:$0xff]
    %v5236 = vld [vmem:[#allocation5 + $0xd] sm:$0x3]
    %v5238 = vlaneseq
    %v5239 = vshrl.u32 %v5238, 7
    %v5240 = vsub.s32 0, %v5239
    %v5241 = vrot.slane %v5236, %v5240
    %v5242 = vlaneseq
    %v5243 = vshrl.u32 %v5242, 7
    %v5244 = vsub.s32 1, %v5243
    %v5245 = vrot.slane %v5236, %v5244
    %v5264 = vunpack.c.l.b16 %v5220
    %v5265 = vunpack.c.h.b16 %v5220
    %v5266 = vunpack.c.l.b16 %v5221
    %v5267 = vunpack.c.h.b16 %v5221
    %v5268 = vunpack.c.l.b16 %v5222
    %v5269 = vunpack.c.h.b16 %v5222
    %v5270 = vunpack.c.l.b16 %v5223
    %v5271 = vunpack.c.h.b16 %v5223
    %v5272 = vunpack.c.l.b16 %v5224
    %v5273 = vunpack.c.h.b16 %v5224
    %v5274 = vunpack.c.l.b16 %v5225
    %v5275 = vunpack.c.h.b16 %v5225
    %v5276 = vunpack.c.l.b16 %v5226
    %v5277 = vunpack.c.h.b16 %v5226
    %v5278 = vunpack.c.l.b16 %v5227
    %v5279 = vunpack.c.h.b16 %v5227
    %v5280 = vunpack.c.l.b16 %v5228
    %v5281 = vunpack.c.h.b16 %v5228
    %v5282 = vunpack.c.l.b16 %v5229
    %v5283 = vunpack.c.h.b16 %v5229
    %v5284 = vunpack.c.l.b16 %v5230
    %v5285 = vunpack.c.h.b16 %v5230
    %v5286 = vunpack.c.l.b16 %v5231
    %v5287 = vunpack.c.h.b16 %v5231
    %v5288 = vunpack.c.l.b16 %v5232
    %v5289 = vunpack.c.h.b16 %v5232
    %v5290 = vunpack.c.l.b16 %v5233
    %v5291 = vunpack.c.h.b16 %v5233
    %v5292 = vunpack.c.l.b16 %v5234
    %v5293 = vunpack.c.h.b16 %v5234
    %v5294 = vunpack.c.l.b16 %v5235
    %v5295 = vunpack.c.h.b16 %v5235
    %v5296 = vpack.c.b16 %v5266, %v5264
    %v5297 = vpack.c.b16 %v5267, %v5265
    %v5298 = vpack.c.b16 %v5270, %v5268
    %v5299 = vpack.c.b16 %v5271, %v5269
    %v5300 = vpack.c.b16 %v5274, %v5272
    %v5301 = vpack.c.b16 %v5275, %v5273
    %v5302 = vpack.c.b16 %v5278, %v5276
    %v5303 = vpack.c.b16 %v5279, %v5277
    %v5304 = vpack.c.b16 %v5282, %v5280
    %v5305 = vpack.c.b16 %v5283, %v5281
    %v5306 = vpack.c.b16 %v5286, %v5284
    %v5307 = vpack.c.b16 %v5287, %v5285
    %v5308 = vpack.c.b16 %v5290, %v5288
    %v5309 = vpack.c.b16 %v5291, %v5289
    %v5310 = vpack.c.b16 %v5294, %v5292
    %v5311 = vpack.c.b16 %v5295, %v5293
    %5328 = vmatprep.subr.bf16.mxu0 %v5297
    %5329 = vmatpush1.bf16.msra.mxu0 %v5296
    %5330 = vmatprep.subr.bf16.mxu0 %v5299
    %5331 = vmatpush1.bf16.msra.mxu0 %v5298
    %5332 = vmatprep.subr.bf16.mxu0 %v5301
    %5333 = vmatpush1.bf16.msra.mxu0 %v5300
    %5334 = vmatprep.subr.bf16.mxu0 %v5303
    %5335 = vmatpush1.bf16.msra.mxu0 %v5302
    %5336 = vmatprep.subr.bf16.mxu0 %v5305
    %5337 = vmatpush1.bf16.msra.mxu0 %v5304
    %5338 = vmatprep.subr.bf16.mxu0 %v5307
    %5339 = vmatpush1.bf16.msra.mxu0 %v5306
    %5340 = vmatprep.subr.bf16.mxu0 %v5309
    %5341 = vmatpush1.bf16.msra.mxu0 %v5308
    %5342 = vmatprep.subr.bf16.mxu0 %v5311
    %5343 = vmatpush1.bf16.msra.mxu0 %v5310
    %5344 = vmatprep.subr.bf16.mxu0 0
    %5345 = vmatpush1.bf16.msra.mxu0 0
    %5346 = vmatprep.subr.bf16.mxu0 0
    %5347 = vmatpush1.bf16.msra.mxu0 0
    %5348 = vmatprep.subr.bf16.mxu0 0
    %5349 = vmatpush1.bf16.msra.mxu0 0
    %5350 = vmatprep.subr.bf16.mxu0 0
    %5351 = vmatpush1.bf16.msra.mxu0 0
    %5352 = vmatprep.subr.bf16.mxu0 0
    %5353 = vmatpush1.bf16.msra.mxu0 0
    %5354 = vmatprep.subr.bf16.mxu0 0
    %5355 = vmatpush1.bf16.msra.mxu0 0
    %5356 = vmatprep.subr.bf16.mxu0 0
    %5357 = vmatpush1.bf16.msra.mxu0 0
    %5358 = vmatprep.subr.bf16.mxu0 0
    %5359 = vmatpush1.bf16.msra.mxu0 0
    %5360 = vmatprep.mubr.bf16.mxu0 0
    %5361 = vmatmul.mubr.bf16.gmra.mrb[0].mxu0 %v5219
    %v5362 = vpop.f32.mrb[0].mxu0
    %v5363 = vadd.f32 %v5241, %v5362
    %v5364 = vpop.f32.mrb[0].mxu0
    %v5365 = vadd.f32 %v5245, %v5364
    %v5366 = vpop.f32.mrb[0].mxu0
    %v5367 = vadd.f32 %v5241, %v5366
    %v5368 = vpop.f32.mrb[0].mxu0
    %v5369 = vadd.f32 %v5245, %v5368
    %5370 = vdwg.mxu0
    %v5371 = vmax.f32 %v5363, 0.0
    %v5372 = vmax.f32 %v5365, 0.0
    %v5373 = vmax.f32 %v5367, 0.0
    %v5374 = vmax.f32 %v5369, 0.0
    %v5375 = vpack.c.bf16 %v5373, %v5371
    %v5376 = vpack.c.bf16 %v5374, %v5372
    %v5377 = vld [vmem:[%s8] sm:$0xf]
    %v5378 = vld [vmem:[%s8 + $0x4] sm:$0xf]
    %v5379 = vld [vmem:[%s8 + $0x8] sm:$0xf]
    %v5380 = vld [vmem:[%s8 + $0xc] sm:$0xf]
    %v5381 = vld [vmem:[%s8 + $0x10] sm:$0xf]
    %v5382 = vld [vmem:[%s8 + $0x14] sm:$0xf]
    %v5383 = vld [vmem:[%s8 + $0x18] sm:$0xf]
    %v5384 = vld [vmem:[%s8 + $0x1c] sm:$0xf]
    %v5385 = vld [vmem:[%s8 + $0x20] sm:$0xf]
    %v5386 = vld [vmem:[%s8 + $0x24] sm:$0xf]
    %v5387 = vld [vmem:[%s8 + $0x28] sm:$0xf]
    %v5388 = vld [vmem:[%s8 + $0x2c] sm:$0xf]
    %v5389 = vld [vmem:[%s8 + $0x30] sm:$0xf]
    %v5390 = vld [vmem:[%s8 + $0x34] sm:$0xf]
    %v5391 = vld [vmem:[%s8 + $0x38] sm:$0xf]
    %v5392 = vld [vmem:[%s8 + $0x3c] sm:$0xf]
    %v5393 = vld [vmem:[%s8 + $0x40] sm:$0xf]
    %v5394 = vld [vmem:[%s8 + $0x44] sm:$0xf]
    %v5395 = vld [vmem:[%s8 + $0x48] sm:$0xf]
    %v5396 = vld [vmem:[%s8 + $0x4c] sm:$0xf]
    %v5397 = vld [vmem:[%s8 + $0x50] sm:$0xf]
    %v5398 = vld [vmem:[%s8 + $0x54] sm:$0xf]
    %v5399 = vld [vmem:[%s8 + $0x58] sm:$0xf]
    %v5400 = vld [vmem:[%s8 + $0x5c] sm:$0xf]
    %v5401 = vld [vmem:[%s8 + $0x60] sm:$0xf]
    %v5402 = vld [vmem:[%s8 + $0x64] sm:$0xf]
    %v5403 = vld [vmem:[%s8 + $0x68] sm:$0xf]
    %v5404 = vld [vmem:[%s8 + $0x6c] sm:$0xf]
    %v5405 = vld [vmem:[%s8 + $0x70] sm:$0xf]
    %v5406 = vld [vmem:[%s8 + $0x74] sm:$0xf]
    %v5407 = vld [vmem:[%s8 + $0x78] sm:$0xf]
    %v5408 = vld [vmem:[%s8 + $0x7c] sm:$0xf]
    %v5409 = vld [vmem:[#allocation5 + $0x21] sm:$0x1]
    %v5411 = vlaneseq
    %v5412 = vshrl.u32 %v5411, 7
    %v5413 = vsub.s32 0, %v5412
    %v5414 = vrot.slane %v5409, %v5413
    %v5448 = vunpack.c.l.b16 %v5377
    %v5449 = vunpack.c.l.b16 %v5378
    %v5450 = vunpack.c.l.b16 %v5379
    %v5451 = vunpack.c.l.b16 %v5380
    %v5452 = vunpack.c.l.b16 %v5381
    %v5453 = vunpack.c.l.b16 %v5382
    %v5454 = vunpack.c.l.b16 %v5383
    %v5455 = vunpack.c.l.b16 %v5384
    %v5456 = vunpack.c.l.b16 %v5385
    %v5457 = vunpack.c.l.b16 %v5386
    %v5458 = vunpack.c.l.b16 %v5387
    %v5459 = vunpack.c.l.b16 %v5388
    %v5460 = vunpack.c.l.b16 %v5389
    %v5461 = vunpack.c.l.b16 %v5390
    %v5462 = vunpack.c.l.b16 %v5391
    %v5463 = vunpack.c.l.b16 %v5392
    %v5464 = vunpack.c.l.b16 %v5393
    %v5465 = vunpack.c.l.b16 %v5394
    %v5466 = vunpack.c.l.b16 %v5395
    %v5467 = vunpack.c.l.b16 %v5396
    %v5468 = vunpack.c.l.b16 %v5397
    %v5469 = vunpack.c.l.b16 %v5398
    %v5470 = vunpack.c.l.b16 %v5399
    %v5471 = vunpack.c.l.b16 %v5400
    %v5472 = vunpack.c.l.b16 %v5401
    %v5473 = vunpack.c.l.b16 %v5402
    %v5474 = vunpack.c.l.b16 %v5403
    %v5475 = vunpack.c.l.b16 %v5404
    %v5476 = vunpack.c.l.b16 %v5405
    %v5477 = vunpack.c.l.b16 %v5406
    %v5478 = vunpack.c.l.b16 %v5407
    %v5479 = vunpack.c.l.b16 %v5408
    %v5480 = vpack.c.b16 %v5449, %v5448
    %v5481 = vpack.c.b16 %v5451, %v5450
    %v5482 = vpack.c.b16 %v5453, %v5452
    %v5483 = vpack.c.b16 %v5455, %v5454
    %v5484 = vpack.c.b16 %v5457, %v5456
    %v5485 = vpack.c.b16 %v5459, %v5458
    %v5486 = vpack.c.b16 %v5461, %v5460
    %v5487 = vpack.c.b16 %v5463, %v5462
    %v5488 = vpack.c.b16 %v5465, %v5464
    %v5489 = vpack.c.b16 %v5467, %v5466
    %v5490 = vpack.c.b16 %v5469, %v5468
    %v5491 = vpack.c.b16 %v5471, %v5470
    %v5492 = vpack.c.b16 %v5473, %v5472
    %v5493 = vpack.c.b16 %v5475, %v5474
    %v5494 = vpack.c.b16 %v5477, %v5476
    %v5495 = vpack.c.b16 %v5479, %v5478
    %5512 = vmatprep.subr.bf16.mxu0 0
    %5513 = vmatpush1.bf16.msra.mxu0 %v5480
    %5514 = vmatprep.subr.bf16.mxu0 0
    %5515 = vmatpush1.bf16.msra.mxu0 %v5481
    %5516 = vmatprep.subr.bf16.mxu0 0
    %5517 = vmatpush1.bf16.msra.mxu0 %v5482
    %5518 = vmatprep.subr.bf16.mxu0 0
    %5519 = vmatpush1.bf16.msra.mxu0 %v5483
    %5520 = vmatprep.subr.bf16.mxu0 0
    %5521 = vmatpush1.bf16.msra.mxu0 %v5484
    %5522 = vmatprep.subr.bf16.mxu0 0
    %5523 = vmatpush1.bf16.msra.mxu0 %v5485
    %5524 = vmatprep.subr.bf16.mxu0 0
    %5525 = vmatpush1.bf16.msra.mxu0 %v5486
    %5526 = vmatprep.subr.bf16.mxu0 0
    %5527 = vmatpush1.bf16.msra.mxu0 %v5487
    %5528 = vmatprep.subr.bf16.mxu0 0
    %5529 = vmatpush1.bf16.msra.mxu0 %v5488
    %5530 = vmatprep.subr.bf16.mxu0 0
    %5531 = vmatpush1.bf16.msra.mxu0 %v5489
    %5532 = vmatprep.subr.bf16.mxu0 0
    %5533 = vmatpush1.bf16.msra.mxu0 %v5490
    %5534 = vmatprep.subr.bf16.mxu0 0
    %5535 = vmatpush1.bf16.msra.mxu0 %v5491
    %5536 = vmatprep.subr.bf16.mxu0 0
    %5537 = vmatpush1.bf16.msra.mxu0 %v5492
    %5538 = vmatprep.subr.bf16.mxu0 0
    %5539 = vmatpush1.bf16.msra.mxu0 %v5493
    %5540 = vmatprep.subr.bf16.mxu0 0
    %5541 = vmatpush1.bf16.msra.mxu0 %v5494
    %5542 = vmatprep.subr.bf16.mxu0 0
    %5543 = vmatpush1.bf16.msra.mxu0 %v5495
    %5544 = vmatprep.mubr.bf16.mxu0 %v5376
    %5545 = vmatmul.mubr.bf16.gmra.mrb[0].mxu0 %v5375
    %v5546 = vpop.f32.mrb[0].mxu0
    %v5547 = vadd.f32 %v5414, %v5546
    %v5548 = vpop.f32.mrb[0].mxu0
    %v5549 = vpop.f32.mrb[0].mxu0
    %v5550 = vadd.f32 %v5414, %v5549
    %v5551 = vpop.f32.mrb[0].mxu0
    %5552 = vdwg.mxu0
    %v5553 = vmax.f32 %v5547, 0.0
    %v5554 = vmax.f32 %v5550, 0.0
    %v5555 = vpack.c.bf16 %v5554, %v5553
    %v5556 = vld [vmem:[#allocation14] sm:$0xff]
    %v5557 = vld [vmem:[#allocation14 + $0x8] sm:$0xff]
    %v5558 = vld [vmem:[#allocation14 + $0x10] sm:$0xff]
    %v5559 = vld [vmem:[#allocation14 + $0x18] sm:$0xff]
    %v5560 = vld [vmem:[#allocation14 + $0x20] sm:$0xff]
    %v5561 = vld [vmem:[#allocation14 + $0x28] sm:$0xff]
    %v5562 = vld [vmem:[#allocation14 + $0x30] sm:$0xff]
    %v5563 = vld [vmem:[#allocation14 + $0x38] sm:$0xff]
    %v5564 = vld [vmem:[#allocation5 + $0xf] sm:$0x3]
    %v5566 = vlaneseq
    %v5567 = vshrl.u32 %v5566, 7
    %v5568 = vsub.s32 0, %v5567
    %v5569 = vrot.slane %v5564, %v5568
    %v5570 = vlaneseq
    %v5571 = vshrl.u32 %v5570, 7
    %v5572 = vsub.s32 1, %v5571
    %v5573 = vrot.slane %v5564, %v5572
    %v5584 = vunpack.c.l.b16 %v5556
    %v5585 = vunpack.c.h.b16 %v5556
    %v5586 = vunpack.c.l.b16 %v5557
    %v5587 = vunpack.c.h.b16 %v5557
    %v5588 = vunpack.c.l.b16 %v5558
    %v5589 = vunpack.c.h.b16 %v5558
    %v5590 = vunpack.c.l.b16 %v5559
    %v5591 = vunpack.c.h.b16 %v5559
    %v5592 = vunpack.c.l.b16 %v5560
    %v5593 = vunpack.c.h.b16 %v5560
    %v5594 = vunpack.c.l.b16 %v5561
    %v5595 = vunpack.c.h.b16 %v5561
    %v5596 = vunpack.c.l.b16 %v5562
    %v5597 = vunpack.c.h.b16 %v5562
    %v5598 = vunpack.c.l.b16 %v5563
    %v5599 = vunpack.c.h.b16 %v5563
    %v5600 = vpack.c.b16 %v5586, %v5584
    %v5601 = vpack.c.b16 %v5587, %v5585
    %v5602 = vpack.c.b16 %v5590, %v5588
    %v5603 = vpack.c.b16 %v5591, %v5589
    %v5604 = vpack.c.b16 %v5594, %v5592
    %v5605 = vpack.c.b16 %v5595, %v5593
    %v5606 = vpack.c.b16 %v5598, %v5596
    %v5607 = vpack.c.b16 %v5599, %v5597
    %vm5616 = vcmask 523264
    %v5618 = vsel %vm5616, %v5555, 0
    %5620 = vmatprep.subr.bf16.mxu0 %v5601
    %5621 = vmatpush1.bf16.msra.mxu0 %v5600
    %5622 = vmatprep.subr.bf16.mxu0 %v5603
    %5623 = vmatpush1.bf16.msra.mxu0 %v5602
    %5624 = vmatprep.subr.bf16.mxu0 %v5605
    %5625 = vmatpush1.bf16.msra.mxu0 %v5604
    %5626 = vmatprep.subr.bf16.mxu0 %v5607
    %5627 = vmatpush1.bf16.msra.mxu0 %v5606
    %5628 = vmatprep.subr.bf16.mxu0 0
    %5629 = vmatpush1.bf16.msra.mxu0 0
    %5630 = vmatprep.subr.bf16.mxu0 0
    %5631 = vmatpush1.bf16.msra.mxu0 0
    %5632 = vmatprep.subr.bf16.mxu0 0
    %5633 = vmatpush1.bf16.msra.mxu0 0
    %5634 = vmatprep.subr.bf16.mxu0 0
    %5635 = vmatpush1.bf16.msra.mxu0 0
    %5636 = vmatprep.subr.bf16.mxu0 0
    %5637 = vmatpush1.bf16.msra.mxu0 0
    %5638 = vmatprep.subr.bf16.mxu0 0
    %5639 = vmatpush1.bf16.msra.mxu0 0
    %5640 = vmatprep.subr.bf16.mxu0 0
    %5641 = vmatpush1.bf16.msra.mxu0 0
    %5642 = vmatprep.subr.bf16.mxu0 0
    %5643 = vmatpush1.bf16.msra.mxu0 0
    %5644 = vmatprep.subr.bf16.mxu0 0
    %5645 = vmatpush1.bf16.msra.mxu0 0
    %5646 = vmatprep.subr.bf16.mxu0 0
    %5647 = vmatpush1.bf16.msra.mxu0 0
    %5648 = vmatprep.subr.bf16.mxu0 0
    %5649 = vmatpush1.bf16.msra.mxu0 0
    %5650 = vmatprep.subr.bf16.mxu0 0
    %5651 = vmatpush1.bf16.msra.mxu0 0
    %5652 = vmatprep.mubr.bf16.mxu0 0
    %5653 = vmatmul.mubr.bf16.gmra.mrb[0].mxu0 %v5618
    %v5654 = vpop.f32.mrb[0].mxu0
    %v5655 = vadd.f32 %v5569, %v5654
    %v5656 = vpop.f32.mrb[0].mxu0
    %v5657 = vadd.f32 %v5573, %v5656
    %v5658 = vpop.f32.mrb[0].mxu0
    %v5659 = vadd.f32 %v5569, %v5658
    %v5660 = vpop.f32.mrb[0].mxu0
    %v5661 = vadd.f32 %v5573, %v5660
    %5662 = vdwg.mxu0
    %v5663 = vmax.f32 %v5655, 0.0
    %v5664 = vmax.f32 %v5657, 0.0
    %v5665 = vmax.f32 %v5659, 0.0
    %v5666 = vmax.f32 %v5661, 0.0
    %v5667 = vpack.c.bf16 %v5665, %v5663
    %v5668 = vpack.c.bf16 %v5666, %v5664
    %v5669 = vld [vmem:[#allocation16] sm:$0xf]
    %v5670 = vld [vmem:[#allocation16 + $0x4] sm:$0xf]
    %v5671 = vld [vmem:[#allocation16 + $0x8] sm:$0xf]
    %v5672 = vld [vmem:[#allocation16 + $0xc] sm:$0xf]
    %v5673 = vld [vmem:[#allocation16 + $0x10] sm:$0xf]
    %v5674 = vld [vmem:[#allocation16 + $0x14] sm:$0xf]
    %v5675 = vld [vmem:[#allocation16 + $0x18] sm:$0xf]
    %v5676 = vld [vmem:[#allocation16 + $0x1c] sm:$0xf]
    %v5677 = vld [vmem:[#allocation16 + $0x20] sm:$0xf]
    %v5678 = vld [vmem:[#allocation16 + $0x24] sm:$0xf]
    %v5679 = vld [vmem:[#allocation16 + $0x28] sm:$0xf]
    %v5680 = vld [vmem:[#allocation16 + $0x2c] sm:$0xf]
    %v5681 = vld [vmem:[#allocation16 + $0x30] sm:$0xf]
    %v5682 = vld [vmem:[#allocation16 + $0x34] sm:$0xf]
    %v5683 = vld [vmem:[#allocation16 + $0x38] sm:$0xf]
    %v5684 = vld [vmem:[#allocation16 + $0x3c] sm:$0xf]
    %v5685 = vld [vmem:[#allocation16 + $0x40] sm:$0xf]
    %v5686 = vld [vmem:[#allocation16 + $0x44] sm:$0xf]
    %v5687 = vld [vmem:[#allocation16 + $0x48] sm:$0xf]
    %v5688 = vld [vmem:[#allocation16 + $0x4c] sm:$0xf]
    %v5689 = vld [vmem:[#allocation16 + $0x50] sm:$0xf]
    %v5690 = vld [vmem:[#allocation16 + $0x54] sm:$0xf]
    %v5691 = vld [vmem:[#allocation16 + $0x58] sm:$0xf]
    %v5692 = vld [vmem:[#allocation16 + $0x5c] sm:$0xf]
    %v5693 = vld [vmem:[#allocation16 + $0x60] sm:$0xf]
    %v5694 = vld [vmem:[#allocation16 + $0x64] sm:$0xf]
    %v5695 = vld [vmem:[#allocation16 + $0x68] sm:$0xf]
    %v5696 = vld [vmem:[#allocation16 + $0x6c] sm:$0xf]
    %v5697 = vld [vmem:[#allocation16 + $0x70] sm:$0xf]
    %v5698 = vld [vmem:[#allocation16 + $0x74] sm:$0xf]
    %v5699 = vld [vmem:[#allocation16 + $0x78] sm:$0xf]
    %v5700 = vld [vmem:[#allocation16 + $0x7c] sm:$0xf]
    %v5701 = vld [vmem:[#allocation5 + $0x8] sm:$0x1]
    %v5703 = vlaneseq
    %v5704 = vshrl.u32 %v5703, 7
    %v5705 = vsub.s32 0, %v5704
    %v5706 = vrot.slane %v5701, %v5705
    %v5740 = vunpack.c.l.b16 %v5669
    %v5741 = vunpack.c.l.b16 %v5670
    %v5742 = vunpack.c.l.b16 %v5671
    %v5743 = vunpack.c.l.b16 %v5672
    %v5744 = vunpack.c.l.b16 %v5673
    %v5745 = vunpack.c.l.b16 %v5674
    %v5746 = vunpack.c.l.b16 %v5675
    %v5747 = vunpack.c.l.b16 %v5676
    %v5748 = vunpack.c.l.b16 %v5677
    %v5749 = vunpack.c.l.b16 %v5678
    %v5750 = vunpack.c.l.b16 %v5679
    %v5751 = vunpack.c.l.b16 %v5680
    %v5752 = vunpack.c.l.b16 %v5681
    %v5753 = vunpack.c.l.b16 %v5682
    %v5754 = vunpack.c.l.b16 %v5683
    %v5755 = vunpack.c.l.b16 %v5684
    %v5756 = vunpack.c.l.b16 %v5685
    %v5757 = vunpack.c.l.b16 %v5686
    %v5758 = vunpack.c.l.b16 %v5687
    %v5759 = vunpack.c.l.b16 %v5688
    %v5760 = vunpack.c.l.b16 %v5689
    %v5761 = vunpack.c.l.b16 %v5690
    %v5762 = vunpack.c.l.b16 %v5691
    %v5763 = vunpack.c.l.b16 %v5692
    %v5764 = vunpack.c.l.b16 %v5693
    %v5765 = vunpack.c.l.b16 %v5694
    %v5766 = vunpack.c.l.b16 %v5695
    %v5767 = vunpack.c.l.b16 %v5696
    %v5768 = vunpack.c.l.b16 %v5697
    %v5769 = vunpack.c.l.b16 %v5698
    %v5770 = vunpack.c.l.b16 %v5699
    %v5771 = vunpack.c.l.b16 %v5700
    %v5772 = vpack.c.b16 %v5741, %v5740
    %v5773 = vpack.c.b16 %v5743, %v5742
    %v5774 = vpack.c.b16 %v5745, %v5744
    %v5775 = vpack.c.b16 %v5747, %v5746
    %v5776 = vpack.c.b16 %v5749, %v5748
    %v5777 = vpack.c.b16 %v5751, %v5750
    %v5778 = vpack.c.b16 %v5753, %v5752
    %v5779 = vpack.c.b16 %v5755, %v5754
    %v5780 = vpack.c.b16 %v5757, %v5756
    %v5781 = vpack.c.b16 %v5759, %v5758
    %v5782 = vpack.c.b16 %v5761, %v5760
    %v5783 = vpack.c.b16 %v5763, %v5762
    %v5784 = vpack.c.b16 %v5765, %v5764
    %v5785 = vpack.c.b16 %v5767, %v5766
    %v5786 = vpack.c.b16 %v5769, %v5768
    %v5787 = vpack.c.b16 %v5771, %v5770
    %5804 = vmatprep.subr.bf16.mxu0 0
    %5805 = vmatpush1.bf16.msra.mxu0 %v5772
    %5806 = vmatprep.subr.bf16.mxu0 0
    %5807 = vmatpush1.bf16.msra.mxu0 %v5773
    %5808 = vmatprep.subr.bf16.mxu0 0
    %5809 = vmatpush1.bf16.msra.mxu0 %v5774
    %5810 = vmatprep.subr.bf16.mxu0 0
    %5811 = vmatpush1.bf16.msra.mxu0 %v5775
    %5812 = vmatprep.subr.bf16.mxu0 0
    %5813 = vmatpush1.bf16.msra.mxu0 %v5776
    %5814 = vmatprep.subr.bf16.mxu0 0
    %5815 = vmatpush1.bf16.msra.mxu0 %v5777
    %5816 = vmatprep.subr.bf16.mxu0 0
    %5817 = vmatpush1.bf16.msra.mxu0 %v5778
    %5818 = vmatprep.subr.bf16.mxu0 0
    %5819 = vmatpush1.bf16.msra.mxu0 %v5779
    %5820 = vmatprep.subr.bf16.mxu0 0
    %5821 = vmatpush1.bf16.msra.mxu0 %v5780
    %5822 = vmatprep.subr.bf16.mxu0 0
    %5823 = vmatpush1.bf16.msra.mxu0 %v5781
    %5824 = vmatprep.subr.bf16.mxu0 0
    %5825 = vmatpush1.bf16.msra.mxu0 %v5782
    %5826 = vmatprep.subr.bf16.mxu0 0
    %5827 = vmatpush1.bf16.msra.mxu0 %v5783
    %5828 = vmatprep.subr.bf16.mxu0 0
    %5829 = vmatpush1.bf16.msra.mxu0 %v5784
    %5830 = vmatprep.subr.bf16.mxu0 0
    %5831 = vmatpush1.bf16.msra.mxu0 %v5785
    %5832 = vmatprep.subr.bf16.mxu0 0
    %5833 = vmatpush1.bf16.msra.mxu0 %v5786
    %5834 = vmatprep.subr.bf16.mxu0 0
    %5835 = vmatpush1.bf16.msra.mxu0 %v5787
    %5836 = vmatprep.mubr.bf16.mxu0 %v5668
    %5837 = vmatmul.mubr.bf16.gmra.mrb[0].mxu0 %v5667
    %v5838 = vpop.f32.mrb[0].mxu0
    %v5839 = vadd.f32 %v5706, %v5838
    %v5840 = vpop.f32.mrb[0].mxu0
    %v5841 = vpop.f32.mrb[0].mxu0
    %v5842 = vadd.f32 %v5706, %v5841
    %v5843 = vpop.f32.mrb[0].mxu0
    %5844 = vdwg.mxu0
    %v5845 = vmax.f32 %v5839, 0.0
    %v5846 = vmax.f32 %v5842, 0.0
    %v5847 = vpack.c.bf16 %v5846, %v5845
    %v5848 = vld [vmem:[#allocation17] sm:$0xf]
    %v5849 = vld [vmem:[#allocation17 + $0x4] sm:$0xf]
    %v5850 = vld [vmem:[#allocation17 + $0x8] sm:$0xf]
    %v5851 = vld [vmem:[#allocation17 + $0xc] sm:$0xf]
    %v5852 = vld [vmem:[#allocation17 + $0x10] sm:$0xf]
    %v5853 = vld [vmem:[#allocation17 + $0x14] sm:$0xf]
    %v5854 = vld [vmem:[#allocation17 + $0x18] sm:$0xf]
    %v5855 = vld [vmem:[#allocation17 + $0x1c] sm:$0xf]
    %v5856 = vld [vmem:[#allocation17 + $0x20] sm:$0xf]
    %v5857 = vld [vmem:[#allocation17 + $0x24] sm:$0xf]
    %v5858 = vld [vmem:[#allocation17 + $0x28] sm:$0xf]
    %v5859 = vld [vmem:[#allocation17 + $0x2c] sm:$0xf]
    %v5860 = vld [vmem:[#allocation17 + $0x30] sm:$0xf]
    %v5861 = vld [vmem:[#allocation17 + $0x34] sm:$0xf]
    %v5862 = vld [vmem:[#allocation17 + $0x38] sm:$0xf]
    %v5863 = vld [vmem:[#allocation17 + $0x3c] sm:$0xf]
    %v5864 = vld [vmem:[#allocation5 + $0x9] sm:$0x1]
    %v5866 = vlaneseq
    %v5867 = vshrl.u32 %v5866, 7
    %v5868 = vsub.s32 0, %v5867
    %v5869 = vrot.slane %v5864, %v5868
    %v5887 = vunpack.c.l.b16 %v5848
    %v5888 = vunpack.c.l.b16 %v5849
    %v5889 = vunpack.c.l.b16 %v5850
    %v5890 = vunpack.c.l.b16 %v5851
    %v5891 = vunpack.c.l.b16 %v5852
    %v5892 = vunpack.c.l.b16 %v5853
    %v5893 = vunpack.c.l.b16 %v5854
    %v5894 = vunpack.c.l.b16 %v5855
    %v5895 = vunpack.c.l.b16 %v5856
    %v5896 = vunpack.c.l.b16 %v5857
    %v5897 = vunpack.c.l.b16 %v5858
    %v5898 = vunpack.c.l.b16 %v5859
    %v5899 = vunpack.c.l.b16 %v5860
    %v5900 = vunpack.c.l.b16 %v5861
    %v5901 = vunpack.c.l.b16 %v5862
    %v5902 = vunpack.c.l.b16 %v5863
    %v5903 = vpack.c.b16 %v5888, %v5887
    %v5904 = vpack.c.b16 %v5890, %v5889
    %v5905 = vpack.c.b16 %v5892, %v5891
    %v5906 = vpack.c.b16 %v5894, %v5893
    %v5907 = vpack.c.b16 %v5896, %v5895
    %v5908 = vpack.c.b16 %v5898, %v5897
    %v5909 = vpack.c.b16 %v5900, %v5899
    %v5910 = vpack.c.b16 %v5902, %v5901
    %5919 = vmatprep.subr.bf16.mxu0 0
    %5920 = vmatpush1.bf16.msra.mxu0 %v5903
    %5921 = vmatprep.subr.bf16.mxu0 0
    %5922 = vmatpush1.bf16.msra.mxu0 %v5904
    %5923 = vmatprep.subr.bf16.mxu0 0
    %5924 = vmatpush1.bf16.msra.mxu0 %v5905
    %5925 = vmatprep.subr.bf16.mxu0 0
    %5926 = vmatpush1.bf16.msra.mxu0 %v5906
    %5927 = vmatprep.subr.bf16.mxu0 0
    %5928 = vmatpush1.bf16.msra.mxu0 %v5907
    %5929 = vmatprep.subr.bf16.mxu0 0
    %5930 = vmatpush1.bf16.msra.mxu0 %v5908
    %5931 = vmatprep.subr.bf16.mxu0 0
    %5932 = vmatpush1.bf16.msra.mxu0 %v5909
    %5933 = vmatprep.subr.bf16.mxu0 0
    %5934 = vmatpush1.bf16.msra.mxu0 %v5910
    %5935 = vmatprep.subr.bf16.mxu0 0
    %5936 = vmatpush1.bf16.msra.mxu0 0
    %5937 = vmatprep.subr.bf16.mxu0 0
    %5938 = vmatpush1.bf16.msra.mxu0 0
    %5939 = vmatprep.subr.bf16.mxu0 0
    %5940 = vmatpush1.bf16.msra.mxu0 0
    %5941 = vmatprep.subr.bf16.mxu0 0
    %5942 = vmatpush1.bf16.msra.mxu0 0
    %5943 = vmatprep.subr.bf16.mxu0 0
    %5944 = vmatpush1.bf16.msra.mxu0 0
    %5945 = vmatprep.subr.bf16.mxu0 0
    %5946 = vmatpush1.bf16.msra.mxu0 0
    %5947 = vmatprep.subr.bf16.mxu0 0
    %5948 = vmatpush1.bf16.msra.mxu0 0
    %5949 = vmatprep.subr.bf16.mxu0 0
    %5950 = vmatpush1.bf16.msra.mxu0 0
    %5951 = vmatprep.mubr.bf16.mxu0 0
    %5952 = vmatmul.mubr.bf16.gmra.mrb[0].mxu0 %v5847
    %v5953 = vpop.f32.mrb[0].mxu0
    %v5954 = vadd.f32 %v5869, %v5953
    %v5955 = vpop.f32.mrb[0].mxu0
    %v5956 = vpop.f32.mrb[0].mxu0
    %v5957 = vadd.f32 %v5869, %v5956
    %v5958 = vpop.f32.mrb[0].mxu0
    %5959 = vdwg.mxu0
    %5960 = vst [vmem:[#allocation19] sm:$0xff] %v5954
    %5961 = vst [vmem:[#allocation19 + $0x8] sm:$0xff] %v5957
    // Predicated region
    $region90: #{tpu_custom_call.1} parent=1 // pred_check
      _
    $region91: #{tpu_custom_call.1} parent=1 // pred_check_branch
      %5963 = sbr.rel (0) target = $region93
    $region92: #{tpu_custom_call.1} parent=1 // pred_region
      %s5965 = ssub.s32 256, 256
      %5966 = vsyncadd [#allocation4], %s5965
      %s5967 = sshll.u32 [#allocation19], 4
      %s5968 = int_to_ptr.vmem [resolvable:$true] %s5967
      %5973 = dma.vmem_to_hbm [thread:$0]  %s5968, 256, %s12, [#allocation4], 128, 128, 8
    $region93: #{tpu_custom_call.1} parent=1 // pred_fallthru
      _
    // Predicated region
    $region94: #{tpu_custom_call.1} parent=1 // pred_check
      _
    $region95: #{tpu_custom_call.1} parent=1 // pred_check_branch
      %5975 = sbr.rel (0) target = $region97
    $region96: #{tpu_custom_call.1} parent=1 // pred_region
      %5976 = dma.done [#allocation4], 256
    $region97: #{tpu_custom_call.1} parent=1 // pred_fallthru
      _
    %5977 = vsyncpa [#allocation3], 1
    %5978 = vsyncpa [#allocation6], 1
    %5979 = vsyncpa [#allocation9], 1
    %5980 = vsyncpa [#allocation12], 1
    %5981 = vsyncpa [#allocation15], 1
    %5982 = vsyncpa [#allocation18], 1
    %5983 = vsyncpa [#allocation4], 1

</llo_original>
